<compile_context>
chip_gen: v7x
topology: tpu7x:2x2x1
jax: 0.10.0
libtpu: 0.0.40
codegen_flags: <defaults>
</compile_context>

<pallas_src>
import functools
import math

import jax
import jax.numpy as jnp
from jax.experimental import pallas as pl
from jax.experimental.pallas import tpu as pltpu  # noqa: F401  (TPU backend)

# ---------------- model config (small, consistent with the module) ----------
NUM_LAYERS = 2
D_MODEL = 32
NUM_HEADS = 4
D_FF = 64
HEAD_DIM = D_MODEL // NUM_HEADS
LN_EPS = 1e-5          # PyTorch nn.LayerNorm default
VEC_W = 3 * D_MODEL    # packed-vector row width (>= 3*D_MODEL and >= D_FF)


# ---------------- Pallas kernel: the whole decoder stack in one call --------
def decoder_stack_kernel(x_ref, wqkv_ref, wo_ref, w1_ref, w2_ref, vec_ref,
                         out_ref, *, batch, seq):
    # x_ref: flattened activations (B*S, D); all math in f32.
    x = x_ref[...].astype(jnp.float32)

    def layer_norm(y, w, b):
        # One-pass stats: E[y] and E[y^2]; biased variance (matches nn.LayerNorm).
        mu = jnp.mean(y, axis=-1, keepdims=True)
        ey2 = jnp.mean(y * y, axis=-1, keepdims=True)
        var = ey2 - mu * mu
        return (y - mu) * jax.lax.rsqrt(var + LN_EPS) * w + b

    for l in range(NUM_LAYERS):  # static unroll (tiny L); stacked weights stay in VMEM
        # ---- unpack the per-layer bias / LayerNorm slab: (8, VEC_W) ----
        vec = vec_ref[l]
        bqkv = vec[0:1, :]                # (1, 3*D)  (q-part pre-scaled by 1/sqrt(hd))
        bo = vec[1:2, :D_MODEL]           # (1, D)
        b1 = vec[2:3, :D_FF]              # (1, D_FF)
        b2 = vec[3:4, :D_MODEL]           # (1, D)
        ln1w = vec[4:5, :D_MODEL]
        ln1b = vec[5:6, :D_MODEL]
        ln2w = vec[6:7, :D_MODEL]
        ln2b = vec[7:8, :D_MODEL]

        # ---- fused QKV projection: one matmul over all B*S rows ----
        qkv = jnp.dot(x, wqkv_ref[l],
                      preferred_element_type=jnp.float32) + bqkv     # (B*S, 3*D)
        qkv3 = qkv.reshape(batch, seq, 3 * D_MODEL)                  # major-dim split
        wo_l = wo_ref[l]                                             # (D, D)

        # ---- multi-head self-attention, batched over B; heads statically unrolled ----
        attn_out = jnp.zeros((batch * seq, D_MODEL), jnp.float32)
        for h in range(NUM_HEADS):
            lo = h * HEAD_DIM
            qh = qkv3[:, :, lo:lo + HEAD_DIM]                            # (B, S, hd)
            kh = qkv3[:, :, D_MODEL + lo:D_MODEL + lo + HEAD_DIM]
            vh = qkv3[:, :, 2 * D_MODEL + lo:2 * D_MODEL + lo + HEAD_DIM]

            # scale already folded into the Q weights/bias at init time
            scores = jnp.einsum('bqd,bkd->bqk', qh, kh,
                                preferred_element_type=jnp.float32)      # (B, S, S)
            m = jnp.max(scores, axis=-1, keepdims=True)
            p = jnp.exp(scores - m)
            attn = p / jnp.sum(p, axis=-1, keepdims=True)                # exact softmax
            ctx = jnp.einsum('bqk,bkd->bqd', attn, vh,
                             preferred_element_type=jnp.float32)         # (B, S, hd)

            # Head recombination fused into the output projection:
            #   out += ctx_h @ Wo[h*hd:(h+1)*hd, :]   (sublane-aligned weight slab)
            attn_out = attn_out + jnp.dot(
                ctx.reshape(batch * seq, HEAD_DIM),
                wo_l[lo:lo + HEAD_DIM, :],
                preferred_element_type=jnp.float32)                      # (B*S, D)

        attn_out = attn_out + bo

        # ---- residual + LayerNorm 1 (dropout == identity, eval mode) ----
        x = layer_norm(x + attn_out, ln1w, ln1b)

        # ---- feed-forward ----
        h1 = jnp.maximum(
            jnp.dot(x, w1_ref[l], preferred_element_type=jnp.float32) + b1, 0.0)
        ff = jnp.dot(h1, w2_ref[l], preferred_element_type=jnp.float32) + b2

        # ---- residual + LayerNorm 2 ----
        x = layer_norm(x + ff, ln2w, ln2b)

    out_ref[...] = x.astype(out_ref.dtype)


def transformer_decoder(x, packed_params):
    """x: (B, S, D). packed_params: (wqkv, wo, w1, w2, vecs), each with leading L axis."""
    B, S, D = x.shape
    x_flat = x.reshape(B * S, D)
    out_flat = pl.pallas_call(
        functools.partial(decoder_stack_kernel, batch=B, seq=S),
        out_shape=jax.ShapeDtypeStruct((B * S, D), x.dtype),
        # grid-less: single invocation, every operand DMA'd to VMEM exactly once
    )(x_flat, *packed_params)
    return out_flat.reshape(B, S, D)


# ---------------- deterministic parameter init (PyTorch-style uniform) ------
def init_linear(key, fan_in, fan_out):
    kw, kb = jax.random.split(key)
    bound = 1.0 / math.sqrt(fan_in)
    # stored as (in, out): kernel computes x @ W + b  (== x @ W_torch.T + b)
    w = jax.random.uniform(kw, (fan_in, fan_out), jnp.float32, -bound, bound)
    b = jax.random.uniform(kb, (fan_out,), jnp.float32, -bound, bound)
    return w, b


def _pad_row(v):
    return jnp.pad(v, (0, VEC_W - v.shape[0]))


def init_decoder_layer(key):
    keys = jax.random.split(key, 6)
    wq, bq = init_linear(keys[0], D_MODEL, D_MODEL)
    wk, bk = init_linear(keys[1], D_MODEL, D_MODEL)
    wv, bv = init_linear(keys[2], D_MODEL, D_MODEL)
    wo, bo = init_linear(keys[3], D_MODEL, D_MODEL)
    w1, b1 = init_linear(keys[4], D_MODEL, D_FF)
    w2, b2 = init_linear(keys[5], D_FF, D_MODEL)

    # Fold the 1/sqrt(head_dim) attention scale into the Q projection (one-time).
    scale = 1.0 / math.sqrt(float(HEAD_DIM))
    wqkv = jnp.concatenate([wq * scale, wk, wv], axis=1)          # (D, 3*D)
    bqkv = jnp.concatenate([bq * scale, bk, bv], axis=0)          # (3*D,)

    ln1w = jnp.ones((D_MODEL,), jnp.float32)
    ln1b = jnp.zeros((D_MODEL,), jnp.float32)
    ln2w = jnp.ones((D_MODEL,), jnp.float32)
    ln2b = jnp.zeros((D_MODEL,), jnp.float32)

    # Pack all per-layer vectors into one (8, VEC_W) slab: one sublane row each.
    vecs = jnp.stack([_pad_row(bqkv), _pad_row(bo), _pad_row(b1), _pad_row(b2),
                      _pad_row(ln1w), _pad_row(ln1b), _pad_row(ln2w), _pad_row(ln2b)],
                     axis=0)                                       # (8, VEC_W)
    return wqkv, wo, w1, w2, vecs


def init_params(key):
    layer_keys = jax.random.split(key, NUM_LAYERS)
    layers = [init_decoder_layer(k) for k in layer_keys]
    # Stack each parameter across layers -> leading L axis, one VMEM slab per type.
    return tuple(
        jnp.stack([layer[i] for layer in layers], axis=0)
        for i in range(len(layers[0]))
    )


if __name__ == "__main__":
    B, S = 2, 8
    root = jax.random.PRNGKey(0)
    kx, kp = jax.random.split(root)

    x = jax.random.normal(kx, (B, S, D_MODEL), jnp.float32)
    params = init_params(kp)

    out = jax.jit(transformer_decoder)(x, params)
    out = jax.block_until_ready(out)
    assert out.shape == (B, S, D_MODEL)
    assert bool(jnp.all(jnp.isfinite(out)))
    print("KERNEL_OK")
</pallas_src>

<mosaic_0001>
module attributes {stable_mosaic.version = 11 : i64} {
  func.func @decoder_stack_kernel(%arg0: memref<16x32xf32, #tpu.memory_space<vmem>>, %arg1: memref<2x32x96xf32, #tpu.memory_space<vmem>>, %arg2: memref<2x32x32xf32, #tpu.memory_space<vmem>>, %arg3: memref<2x32x64xf32, #tpu.memory_space<vmem>>, %arg4: memref<2x64x32xf32, #tpu.memory_space<vmem>>, %arg5: memref<2x8x96xf32, #tpu.memory_space<vmem>>, %arg6: memref<16x32xf32, #tpu.memory_space<vmem>>) attributes {dimension_semantics = [], scalar_prefetch = 0 : i64, scratch_operands = 0 : i64, tpu.core_type = #tpu.core_type<tc>} {
    %c0 = arith.constant 0 : index
    %c0_0 = arith.constant 0 : index
    %0 = vector.load %arg0[%c0, %c0_0] : memref<16x32xf32, #tpu.memory_space<vmem>>, vector<16x32xf32>
    %c0_1 = arith.constant 0 : index
    %c0_2 = arith.constant 0 : index
    %c0_3 = arith.constant 0 : index
    %1 = vector.load %arg5[%c0_1, %c0_2, %c0_3] : memref<2x8x96xf32, #tpu.memory_space<vmem>>, vector<1x8x96xf32>
    %2 = vector.shape_cast %1 : vector<1x8x96xf32> to vector<8x96xf32>
    %3 = vector.extract_strided_slice %2 {offsets = [0, 0], sizes = [1, 96], strides = [1, 1]} : vector<8x96xf32> to vector<1x96xf32>
    %4 = vector.extract_strided_slice %2 {offsets = [1, 0], sizes = [1, 32], strides = [1, 1]} : vector<8x96xf32> to vector<1x32xf32>
    %5 = vector.extract_strided_slice %2 {offsets = [2, 0], sizes = [1, 64], strides = [1, 1]} : vector<8x96xf32> to vector<1x64xf32>
    %6 = vector.extract_strided_slice %2 {offsets = [3, 0], sizes = [1, 32], strides = [1, 1]} : vector<8x96xf32> to vector<1x32xf32>
    %7 = vector.extract_strided_slice %2 {offsets = [4, 0], sizes = [1, 32], strides = [1, 1]} : vector<8x96xf32> to vector<1x32xf32>
    %8 = vector.extract_strided_slice %2 {offsets = [5, 0], sizes = [1, 32], strides = [1, 1]} : vector<8x96xf32> to vector<1x32xf32>
    %9 = vector.extract_strided_slice %2 {offsets = [6, 0], sizes = [1, 32], strides = [1, 1]} : vector<8x96xf32> to vector<1x32xf32>
    %10 = vector.extract_strided_slice %2 {offsets = [7, 0], sizes = [1, 32], strides = [1, 1]} : vector<8x96xf32> to vector<1x32xf32>
    %c0_4 = arith.constant 0 : index
    %c0_5 = arith.constant 0 : index
    %c0_6 = arith.constant 0 : index
    %11 = vector.load %arg1[%c0_4, %c0_5, %c0_6] : memref<2x32x96xf32, #tpu.memory_space<vmem>>, vector<1x32x96xf32>
    %12 = vector.shape_cast %11 : vector<1x32x96xf32> to vector<32x96xf32>
    %cst = arith.constant dense<0.000000e+00> : vector<16x96xf32>
    %13 = tpu.matmul %0, %12, %cst {dimension_numbers = #tpu.dot_dimension_numbers<[1], [0], [0], [1], [0, 0, 1, 1], [], []>} : vector<16x32xf32>, vector<32x96xf32>, vector<16x96xf32> -> vector<16x96xf32>
    %14 = vector.broadcast %3 : vector<1x96xf32> to vector<16x96xf32>
    %15 = arith.addf %13, %14 : vector<16x96xf32>
    %16 = vector.shape_cast %15 : vector<16x96xf32> to vector<2x8x96xf32>
    %c0_7 = arith.constant 0 : index
    %c0_8 = arith.constant 0 : index
    %c0_9 = arith.constant 0 : index
    %17 = vector.load %arg2[%c0_7, %c0_8, %c0_9] : memref<2x32x32xf32, #tpu.memory_space<vmem>>, vector<1x32x32xf32>
    %18 = vector.shape_cast %17 : vector<1x32x32xf32> to vector<32x32xf32>
    %cst_10 = arith.constant 0.000000e+00 : f32
    %19 = vector.broadcast %cst_10 : f32 to vector<16x32xf32>
    %20 = vector.extract_strided_slice %16 {offsets = [0, 0, 0], sizes = [2, 8, 8], strides = [1, 1, 1]} : vector<2x8x96xf32> to vector<2x8x8xf32>
    %21 = vector.extract_strided_slice %16 {offsets = [0, 0, 32], sizes = [2, 8, 8], strides = [1, 1, 1]} : vector<2x8x96xf32> to vector<2x8x8xf32>
    %22 = vector.extract_strided_slice %16 {offsets = [0, 0, 64], sizes = [2, 8, 8], strides = [1, 1, 1]} : vector<2x8x96xf32> to vector<2x8x8xf32>
    "tpu.trace_start"() <{level = 10 : i32, message = "bqd,bkd->bqk"}> : () -> ()
    %cst_11 = arith.constant dense<0.000000e+00> : vector<2x8x8xf32>
    %23 = tpu.matmul %20, %21, %cst_11 {dimension_numbers = #tpu.dot_dimension_numbers<[2], [2], [1], [1], [0, 0, 0, 1, 1, 1], [0], [0]>} : vector<2x8x8xf32>, vector<2x8x8xf32>, vector<2x8x8xf32> -> vector<2x8x8xf32>
    "tpu.trace_stop"() : () -> ()
    %cst_12 = arith.constant dense<0xFF800000> : vector<2x8xf32>
    %24 = vector.multi_reduction <maximumf>, %23, %cst_12 [2] : vector<2x8x8xf32> to vector<2x8xf32>
    %25 = vector.shape_cast %24 : vector<2x8xf32> to vector<2x8x1xf32>
    %26 = vector.broadcast %25 : vector<2x8x1xf32> to vector<2x8x8xf32>
    %27 = arith.subf %23, %26 : vector<2x8x8xf32>
    %28 = math.exp %27 : vector<2x8x8xf32>
    %cst_13 = arith.constant dense<0.000000e+00> : vector<2x8xf32>
    %29 = vector.multi_reduction <add>, %28, %cst_13 [2] : vector<2x8x8xf32> to vector<2x8xf32>
    %30 = vector.shape_cast %29 : vector<2x8xf32> to vector<2x8x1xf32>
    %31 = vector.broadcast %30 : vector<2x8x1xf32> to vector<2x8x8xf32>
    %32 = arith.divf %28, %31 : vector<2x8x8xf32>
    "tpu.trace_start"() <{level = 10 : i32, message = "bqk,bkd->bqd"}> : () -> ()
    %cst_14 = arith.constant dense<0.000000e+00> : vector<2x8x8xf32>
    %33 = tpu.matmul %32, %22, %cst_14 {dimension_numbers = #tpu.dot_dimension_numbers<[2], [1], [1], [2], [0, 0, 0, 1, 1, 2], [0], [0]>} : vector<2x8x8xf32>, vector<2x8x8xf32>, vector<2x8x8xf32> -> vector<2x8x8xf32>
    "tpu.trace_stop"() : () -> ()
    %34 = vector.shape_cast %33 : vector<2x8x8xf32> to vector<16x8xf32>
    %35 = vector.extract_strided_slice %18 {offsets = [0, 0], sizes = [8, 32], strides = [1, 1]} : vector<32x32xf32> to vector<8x32xf32>
    %cst_15 = arith.constant dense<0.000000e+00> : vector<16x32xf32>
    %36 = tpu.matmul %34, %35, %cst_15 {dimension_numbers = #tpu.dot_dimension_numbers<[1], [0], [0], [1], [0, 0, 1, 1], [], []>} : vector<16x8xf32>, vector<8x32xf32>, vector<16x32xf32> -> vector<16x32xf32>
    %37 = arith.addf %19, %36 : vector<16x32xf32>
    %38 = vector.extract_strided_slice %16 {offsets = [0, 0, 8], sizes = [2, 8, 8], strides = [1, 1, 1]} : vector<2x8x96xf32> to vector<2x8x8xf32>
    %39 = vector.extract_strided_slice %16 {offsets = [0, 0, 40], sizes = [2, 8, 8], strides = [1, 1, 1]} : vector<2x8x96xf32> to vector<2x8x8xf32>
    %40 = vector.extract_strided_slice %16 {offsets = [0, 0, 72], sizes = [2, 8, 8], strides = [1, 1, 1]} : vector<2x8x96xf32> to vector<2x8x8xf32>
    "tpu.trace_start"() <{level = 10 : i32, message = "bqd,bkd->bqk"}> : () -> ()
    %cst_16 = arith.constant dense<0.000000e+00> : vector<2x8x8xf32>
    %41 = tpu.matmul %38, %39, %cst_16 {dimension_numbers = #tpu.dot_dimension_numbers<[2], [2], [1], [1], [0, 0, 0, 1, 1, 1], [0], [0]>} : vector<2x8x8xf32>, vector<2x8x8xf32>, vector<2x8x8xf32> -> vector<2x8x8xf32>
    "tpu.trace_stop"() : () -> ()
    %cst_17 = arith.constant dense<0xFF800000> : vector<2x8xf32>
    %42 = vector.multi_reduction <maximumf>, %41, %cst_17 [2] : vector<2x8x8xf32> to vector<2x8xf32>
    %43 = vector.shape_cast %42 : vector<2x8xf32> to vector<2x8x1xf32>
    %44 = vector.broadcast %43 : vector<2x8x1xf32> to vector<2x8x8xf32>
    %45 = arith.subf %41, %44 : vector<2x8x8xf32>
    %46 = math.exp %45 : vector<2x8x8xf32>
    %cst_18 = arith.constant dense<0.000000e+00> : vector<2x8xf32>
    %47 = vector.multi_reduction <add>, %46, %cst_18 [2] : vector<2x8x8xf32> to vector<2x8xf32>
    %48 = vector.shape_cast %47 : vector<2x8xf32> to vector<2x8x1xf32>
    %49 = vector.broadcast %48 : vector<2x8x1xf32> to vector<2x8x8xf32>
    %50 = arith.divf %46, %49 : vector<2x8x8xf32>
    "tpu.trace_start"() <{level = 10 : i32, message = "bqk,bkd->bqd"}> : () -> ()
    %cst_19 = arith.constant dense<0.000000e+00> : vector<2x8x8xf32>
    %51 = tpu.matmul %50, %40, %cst_19 {dimension_numbers = #tpu.dot_dimension_numbers<[2], [1], [1], [2], [0, 0, 0, 1, 1, 2], [0], [0]>} : vector<2x8x8xf32>, vector<2x8x8xf32>, vector<2x8x8xf32> -> vector<2x8x8xf32>
    "tpu.trace_stop"() : () -> ()
    %52 = vector.shape_cast %51 : vector<2x8x8xf32> to vector<16x8xf32>
    %53 = vector.extract_strided_slice %18 {offsets = [8, 0], sizes = [8, 32], strides = [1, 1]} : vector<32x32xf32> to vector<8x32xf32>
    %cst_20 = arith.constant dense<0.000000e+00> : vector<16x32xf32>
    %54 = tpu.matmul %52, %53, %cst_20 {dimension_numbers = #tpu.dot_dimension_numbers<[1], [0], [0], [1], [0, 0, 1, 1], [], []>} : vector<16x8xf32>, vector<8x32xf32>, vector<16x32xf32> -> vector<16x32xf32>
    %55 = arith.addf %37, %54 : vector<16x32xf32>
    %56 = vector.extract_strided_slice %16 {offsets = [0, 0, 16], sizes = [2, 8, 8], strides = [1, 1, 1]} : vector<2x8x96xf32> to vector<2x8x8xf32>
    %57 = vector.extract_strided_slice %16 {offsets = [0, 0, 48], sizes = [2, 8, 8], strides = [1, 1, 1]} : vector<2x8x96xf32> to vector<2x8x8xf32>
    %58 = vector.extract_strided_slice %16 {offsets = [0, 0, 80], sizes = [2, 8, 8], strides = [1, 1, 1]} : vector<2x8x96xf32> to vector<2x8x8xf32>
    "tpu.trace_start"() <{level = 10 : i32, message = "bqd,bkd->bqk"}> : () -> ()
    %cst_21 = arith.constant dense<0.000000e+00> : vector<2x8x8xf32>
    %59 = tpu.matmul %56, %57, %cst_21 {dimension_numbers = #tpu.dot_dimension_numbers<[2], [2], [1], [1], [0, 0, 0, 1, 1, 1], [0], [0]>} : vector<2x8x8xf32>, vector<2x8x8xf32>, vector<2x8x8xf32> -> vector<2x8x8xf32>
    "tpu.trace_stop"() : () -> ()
    %cst_22 = arith.constant dense<0xFF800000> : vector<2x8xf32>
    %60 = vector.multi_reduction <maximumf>, %59, %cst_22 [2] : vector<2x8x8xf32> to vector<2x8xf32>
    %61 = vector.shape_cast %60 : vector<2x8xf32> to vector<2x8x1xf32>
    %62 = vector.broadcast %61 : vector<2x8x1xf32> to vector<2x8x8xf32>
    %63 = arith.subf %59, %62 : vector<2x8x8xf32>
    %64 = math.exp %63 : vector<2x8x8xf32>
    %cst_23 = arith.constant dense<0.000000e+00> : vector<2x8xf32>
    %65 = vector.multi_reduction <add>, %64, %cst_23 [2] : vector<2x8x8xf32> to vector<2x8xf32>
    %66 = vector.shape_cast %65 : vector<2x8xf32> to vector<2x8x1xf32>
    %67 = vector.broadcast %66 : vector<2x8x1xf32> to vector<2x8x8xf32>
    %68 = arith.divf %64, %67 : vector<2x8x8xf32>
    "tpu.trace_start"() <{level = 10 : i32, message = "bqk,bkd->bqd"}> : () -> ()
    %cst_24 = arith.constant dense<0.000000e+00> : vector<2x8x8xf32>
    %69 = tpu.matmul %68, %58, %cst_24 {dimension_numbers = #tpu.dot_dimension_numbers<[2], [1], [1], [2], [0, 0, 0, 1, 1, 2], [0], [0]>} : vector<2x8x8xf32>, vector<2x8x8xf32>, vector<2x8x8xf32> -> vector<2x8x8xf32>
    "tpu.trace_stop"() : () -> ()
    %70 = vector.shape_cast %69 : vector<2x8x8xf32> to vector<16x8xf32>
    %71 = vector.extract_strided_slice %18 {offsets = [16, 0], sizes = [8, 32], strides = [1, 1]} : vector<32x32xf32> to vector<8x32xf32>
    %cst_25 = arith.constant dense<0.000000e+00> : vector<16x32xf32>
    %72 = tpu.matmul %70, %71, %cst_25 {dimension_numbers = #tpu.dot_dimension_numbers<[1], [0], [0], [1], [0, 0, 1, 1], [], []>} : vector<16x8xf32>, vector<8x32xf32>, vector<16x32xf32> -> vector<16x32xf32>
    %73 = arith.addf %55, %72 : vector<16x32xf32>
    %74 = vector.extract_strided_slice %16 {offsets = [0, 0, 24], sizes = [2, 8, 8], strides = [1, 1, 1]} : vector<2x8x96xf32> to vector<2x8x8xf32>
    %75 = vector.extract_strided_slice %16 {offsets = [0, 0, 56], sizes = [2, 8, 8], strides = [1, 1, 1]} : vector<2x8x96xf32> to vector<2x8x8xf32>
    %76 = vector.extract_strided_slice %16 {offsets = [0, 0, 88], sizes = [2, 8, 8], strides = [1, 1, 1]} : vector<2x8x96xf32> to vector<2x8x8xf32>
    "tpu.trace_start"() <{level = 10 : i32, message = "bqd,bkd->bqk"}> : () -> ()
    %cst_26 = arith.constant dense<0.000000e+00> : vector<2x8x8xf32>
    %77 = tpu.matmul %74, %75, %cst_26 {dimension_numbers = #tpu.dot_dimension_numbers<[2], [2], [1], [1], [0, 0, 0, 1, 1, 1], [0], [0]>} : vector<2x8x8xf32>, vector<2x8x8xf32>, vector<2x8x8xf32> -> vector<2x8x8xf32>
    "tpu.trace_stop"() : () -> ()
    %cst_27 = arith.constant dense<0xFF800000> : vector<2x8xf32>
    %78 = vector.multi_reduction <maximumf>, %77, %cst_27 [2] : vector<2x8x8xf32> to vector<2x8xf32>
    %79 = vector.shape_cast %78 : vector<2x8xf32> to vector<2x8x1xf32>
    %80 = vector.broadcast %79 : vector<2x8x1xf32> to vector<2x8x8xf32>
    %81 = arith.subf %77, %80 : vector<2x8x8xf32>
    %82 = math.exp %81 : vector<2x8x8xf32>
    %cst_28 = arith.constant dense<0.000000e+00> : vector<2x8xf32>
    %83 = vector.multi_reduction <add>, %82, %cst_28 [2] : vector<2x8x8xf32> to vector<2x8xf32>
    %84 = vector.shape_cast %83 : vector<2x8xf32> to vector<2x8x1xf32>
    %85 = vector.broadcast %84 : vector<2x8x1xf32> to vector<2x8x8xf32>
    %86 = arith.divf %82, %85 : vector<2x8x8xf32>
    "tpu.trace_start"() <{level = 10 : i32, message = "bqk,bkd->bqd"}> : () -> ()
    %cst_29 = arith.constant dense<0.000000e+00> : vector<2x8x8xf32>
    %87 = tpu.matmul %86, %76, %cst_29 {dimension_numbers = #tpu.dot_dimension_numbers<[2], [1], [1], [2], [0, 0, 0, 1, 1, 2], [0], [0]>} : vector<2x8x8xf32>, vector<2x8x8xf32>, vector<2x8x8xf32> -> vector<2x8x8xf32>
    "tpu.trace_stop"() : () -> ()
    %88 = vector.shape_cast %87 : vector<2x8x8xf32> to vector<16x8xf32>
    %89 = vector.extract_strided_slice %18 {offsets = [24, 0], sizes = [8, 32], strides = [1, 1]} : vector<32x32xf32> to vector<8x32xf32>
    %cst_30 = arith.constant dense<0.000000e+00> : vector<16x32xf32>
    %90 = tpu.matmul %88, %89, %cst_30 {dimension_numbers = #tpu.dot_dimension_numbers<[1], [0], [0], [1], [0, 0, 1, 1], [], []>} : vector<16x8xf32>, vector<8x32xf32>, vector<16x32xf32> -> vector<16x32xf32>
    %91 = arith.addf %73, %90 : vector<16x32xf32>
    %92 = vector.broadcast %4 : vector<1x32xf32> to vector<16x32xf32>
    %93 = arith.addf %91, %92 : vector<16x32xf32>
    %94 = arith.addf %0, %93 : vector<16x32xf32>
    %cst_31 = arith.constant dense<0.000000e+00> : vector<16xf32>
    %95 = vector.multi_reduction <add>, %94, %cst_31 [1] : vector<16x32xf32> to vector<16xf32>
    %96 = vector.shape_cast %95 : vector<16xf32> to vector<16x1xf32>
    %cst_32 = arith.constant 3.200000e+01 : f32
    %97 = vector.broadcast %cst_32 : f32 to vector<16x1xf32>
    %98 = arith.divf %96, %97 : vector<16x1xf32>
    %99 = arith.mulf %94, %94 : vector<16x32xf32>
    %cst_33 = arith.constant dense<0.000000e+00> : vector<16xf32>
    %100 = vector.multi_reduction <add>, %99, %cst_33 [1] : vector<16x32xf32> to vector<16xf32>
    %101 = vector.shape_cast %100 : vector<16xf32> to vector<16x1xf32>
    %cst_34 = arith.constant 3.200000e+01 : f32
    %102 = vector.broadcast %cst_34 : f32 to vector<16x1xf32>
    %103 = arith.divf %101, %102 : vector<16x1xf32>
    %104 = arith.mulf %98, %98 : vector<16x1xf32>
    %105 = arith.subf %103, %104 : vector<16x1xf32>
    %106 = vector.broadcast %98 : vector<16x1xf32> to vector<16x32xf32>
    %107 = arith.subf %94, %106 : vector<16x32xf32>
    %cst_35 = arith.constant 9.99999974E-6 : f32
    %108 = vector.broadcast %cst_35 : f32 to vector<16x1xf32>
    %109 = arith.addf %105, %108 : vector<16x1xf32>
    %110 = math.rsqrt %109 : vector<16x1xf32>
    %111 = vector.broadcast %110 : vector<16x1xf32> to vector<16x32xf32>
    %112 = arith.mulf %107, %111 : vector<16x32xf32>
    %113 = vector.broadcast %7 : vector<1x32xf32> to vector<16x32xf32>
    %114 = arith.mulf %112, %113 : vector<16x32xf32>
    %115 = vector.broadcast %8 : vector<1x32xf32> to vector<16x32xf32>
    %116 = arith.addf %114, %115 : vector<16x32xf32>
    %c0_36 = arith.constant 0 : index
    %c0_37 = arith.constant 0 : index
    %c0_38 = arith.constant 0 : index
    %117 = vector.load %arg3[%c0_36, %c0_37, %c0_38] : memref<2x32x64xf32, #tpu.memory_space<vmem>>, vector<1x32x64xf32>
    %118 = vector.shape_cast %117 : vector<1x32x64xf32> to vector<32x64xf32>
    %cst_39 = arith.constant dense<0.000000e+00> : vector<16x64xf32>
    %119 = tpu.matmul %116, %118, %cst_39 {dimension_numbers = #tpu.dot_dimension_numbers<[1], [0], [0], [1], [0, 0, 1, 1], [], []>} : vector<16x32xf32>, vector<32x64xf32>, vector<16x64xf32> -> vector<16x64xf32>
    %120 = vector.broadcast %5 : vector<1x64xf32> to vector<16x64xf32>
    %121 = arith.addf %119, %120 : vector<16x64xf32>
    %cst_40 = arith.constant 0.000000e+00 : f32
    %122 = vector.broadcast %cst_40 : f32 to vector<16x64xf32>
    %123 = arith.maximumf %121, %122 : vector<16x64xf32>
    %c0_41 = arith.constant 0 : index
    %c0_42 = arith.constant 0 : index
    %c0_43 = arith.constant 0 : index
    %124 = vector.load %arg4[%c0_41, %c0_42, %c0_43] : memref<2x64x32xf32, #tpu.memory_space<vmem>>, vector<1x64x32xf32>
    %125 = vector.shape_cast %124 : vector<1x64x32xf32> to vector<64x32xf32>
    %cst_44 = arith.constant dense<0.000000e+00> : vector<16x32xf32>
    %126 = tpu.matmul %123, %125, %cst_44 {dimension_numbers = #tpu.dot_dimension_numbers<[1], [0], [0], [1], [0, 0, 1, 1], [], []>} : vector<16x64xf32>, vector<64x32xf32>, vector<16x32xf32> -> vector<16x32xf32>
    %127 = vector.broadcast %6 : vector<1x32xf32> to vector<16x32xf32>
    %128 = arith.addf %126, %127 : vector<16x32xf32>
    %129 = arith.addf %116, %128 : vector<16x32xf32>
    %cst_45 = arith.constant dense<0.000000e+00> : vector<16xf32>
    %130 = vector.multi_reduction <add>, %129, %cst_45 [1] : vector<16x32xf32> to vector<16xf32>
    %131 = vector.shape_cast %130 : vector<16xf32> to vector<16x1xf32>
    %cst_46 = arith.constant 3.200000e+01 : f32
    %132 = vector.broadcast %cst_46 : f32 to vector<16x1xf32>
    %133 = arith.divf %131, %132 : vector<16x1xf32>
    %134 = arith.mulf %129, %129 : vector<16x32xf32>
    %cst_47 = arith.constant dense<0.000000e+00> : vector<16xf32>
    %135 = vector.multi_reduction <add>, %134, %cst_47 [1] : vector<16x32xf32> to vector<16xf32>
    %136 = vector.shape_cast %135 : vector<16xf32> to vector<16x1xf32>
    %cst_48 = arith.constant 3.200000e+01 : f32
    %137 = vector.broadcast %cst_48 : f32 to vector<16x1xf32>
    %138 = arith.divf %136, %137 : vector<16x1xf32>
    %139 = arith.mulf %133, %133 : vector<16x1xf32>
    %140 = arith.subf %138, %139 : vector<16x1xf32>
    %141 = vector.broadcast %133 : vector<16x1xf32> to vector<16x32xf32>
    %142 = arith.subf %129, %141 : vector<16x32xf32>
    %cst_49 = arith.constant 9.99999974E-6 : f32
    %143 = vector.broadcast %cst_49 : f32 to vector<16x1xf32>
    %144 = arith.addf %140, %143 : vector<16x1xf32>
    %145 = math.rsqrt %144 : vector<16x1xf32>
    %146 = vector.broadcast %145 : vector<16x1xf32> to vector<16x32xf32>
    %147 = arith.mulf %142, %146 : vector<16x32xf32>
    %148 = vector.broadcast %9 : vector<1x32xf32> to vector<16x32xf32>
    %149 = arith.mulf %147, %148 : vector<16x32xf32>
    %150 = vector.broadcast %10 : vector<1x32xf32> to vector<16x32xf32>
    %151 = arith.addf %149, %150 : vector<16x32xf32>
    %c1 = arith.constant 1 : index
    %c0_50 = arith.constant 0 : index
    %c0_51 = arith.constant 0 : index
    %152 = vector.load %arg5[%c1, %c0_50, %c0_51] : memref<2x8x96xf32, #tpu.memory_space<vmem>>, vector<1x8x96xf32>
    %153 = vector.shape_cast %152 : vector<1x8x96xf32> to vector<8x96xf32>
    %154 = vector.extract_strided_slice %153 {offsets = [0, 0], sizes = [1, 96], strides = [1, 1]} : vector<8x96xf32> to vector<1x96xf32>
    %155 = vector.extract_strided_slice %153 {offsets = [1, 0], sizes = [1, 32], strides = [1, 1]} : vector<8x96xf32> to vector<1x32xf32>
    %156 = vector.extract_strided_slice %153 {offsets = [2, 0], sizes = [1, 64], strides = [1, 1]} : vector<8x96xf32> to vector<1x64xf32>
    %157 = vector.extract_strided_slice %153 {offsets = [3, 0], sizes = [1, 32], strides = [1, 1]} : vector<8x96xf32> to vector<1x32xf32>
    %158 = vector.extract_strided_slice %153 {offsets = [4, 0], sizes = [1, 32], strides = [1, 1]} : vector<8x96xf32> to vector<1x32xf32>
    %159 = vector.extract_strided_slice %153 {offsets = [5, 0], sizes = [1, 32], strides = [1, 1]} : vector<8x96xf32> to vector<1x32xf32>
    %160 = vector.extract_strided_slice %153 {offsets = [6, 0], sizes = [1, 32], strides = [1, 1]} : vector<8x96xf32> to vector<1x32xf32>
    %161 = vector.extract_strided_slice %153 {offsets = [7, 0], sizes = [1, 32], strides = [1, 1]} : vector<8x96xf32> to vector<1x32xf32>
    %c1_52 = arith.constant 1 : index
    %c0_53 = arith.constant 0 : index
    %c0_54 = arith.constant 0 : index
    %162 = vector.load %arg1[%c1_52, %c0_53, %c0_54] : memref<2x32x96xf32, #tpu.memory_space<vmem>>, vector<1x32x96xf32>
    %163 = vector.shape_cast %162 : vector<1x32x96xf32> to vector<32x96xf32>
    %cst_55 = arith.constant dense<0.000000e+00> : vector<16x96xf32>
    %164 = tpu.matmul %151, %163, %cst_55 {dimension_numbers = #tpu.dot_dimension_numbers<[1], [0], [0], [1], [0, 0, 1, 1], [], []>} : vector<16x32xf32>, vector<32x96xf32>, vector<16x96xf32> -> vector<16x96xf32>
    %165 = vector.broadcast %154 : vector<1x96xf32> to vector<16x96xf32>
    %166 = arith.addf %164, %165 : vector<16x96xf32>
    %167 = vector.shape_cast %166 : vector<16x96xf32> to vector<2x8x96xf32>
    %c1_56 = arith.constant 1 : index
    %c0_57 = arith.constant 0 : index
    %c0_58 = arith.constant 0 : index
    %168 = vector.load %arg2[%c1_56, %c0_57, %c0_58] : memref<2x32x32xf32, #tpu.memory_space<vmem>>, vector<1x32x32xf32>
    %169 = vector.shape_cast %168 : vector<1x32x32xf32> to vector<32x32xf32>
    %cst_59 = arith.constant 0.000000e+00 : f32
    %170 = vector.broadcast %cst_59 : f32 to vector<16x32xf32>
    %171 = vector.extract_strided_slice %167 {offsets = [0, 0, 0], sizes = [2, 8, 8], strides = [1, 1, 1]} : vector<2x8x96xf32> to vector<2x8x8xf32>
    %172 = vector.extract_strided_slice %167 {offsets = [0, 0, 32], sizes = [2, 8, 8], strides = [1, 1, 1]} : vector<2x8x96xf32> to vector<2x8x8xf32>
    %173 = vector.extract_strided_slice %167 {offsets = [0, 0, 64], sizes = [2, 8, 8], strides = [1, 1, 1]} : vector<2x8x96xf32> to vector<2x8x8xf32>
    "tpu.trace_start"() <{level = 10 : i32, message = "bqd,bkd->bqk"}> : () -> ()
    %cst_60 = arith.constant dense<0.000000e+00> : vector<2x8x8xf32>
    %174 = tpu.matmul %171, %172, %cst_60 {dimension_numbers = #tpu.dot_dimension_numbers<[2], [2], [1], [1], [0, 0, 0, 1, 1, 1], [0], [0]>} : vector<2x8x8xf32>, vector<2x8x8xf32>, vector<2x8x8xf32> -> vector<2x8x8xf32>
    "tpu.trace_stop"() : () -> ()
    %cst_61 = arith.constant dense<0xFF800000> : vector<2x8xf32>
    %175 = vector.multi_reduction <maximumf>, %174, %cst_61 [2] : vector<2x8x8xf32> to vector<2x8xf32>
    %176 = vector.shape_cast %175 : vector<2x8xf32> to vector<2x8x1xf32>
    %177 = vector.broadcast %176 : vector<2x8x1xf32> to vector<2x8x8xf32>
    %178 = arith.subf %174, %177 : vector<2x8x8xf32>
    %179 = math.exp %178 : vector<2x8x8xf32>
    %cst_62 = arith.constant dense<0.000000e+00> : vector<2x8xf32>
    %180 = vector.multi_reduction <add>, %179, %cst_62 [2] : vector<2x8x8xf32> to vector<2x8xf32>
    %181 = vector.shape_cast %180 : vector<2x8xf32> to vector<2x8x1xf32>
    %182 = vector.broadcast %181 : vector<2x8x1xf32> to vector<2x8x8xf32>
    %183 = arith.divf %179, %182 : vector<2x8x8xf32>
    "tpu.trace_start"() <{level = 10 : i32, message = "bqk,bkd->bqd"}> : () -> ()
    %cst_63 = arith.constant dense<0.000000e+00> : vector<2x8x8xf32>
    %184 = tpu.matmul %183, %173, %cst_63 {dimension_numbers = #tpu.dot_dimension_numbers<[2], [1], [1], [2], [0, 0, 0, 1, 1, 2], [0], [0]>} : vector<2x8x8xf32>, vector<2x8x8xf32>, vector<2x8x8xf32> -> vector<2x8x8xf32>
    "tpu.trace_stop"() : () -> ()
    %185 = vector.shape_cast %184 : vector<2x8x8xf32> to vector<16x8xf32>
    %186 = vector.extract_strided_slice %169 {offsets = [0, 0], sizes = [8, 32], strides = [1, 1]} : vector<32x32xf32> to vector<8x32xf32>
    %cst_64 = arith.constant dense<0.000000e+00> : vector<16x32xf32>
    %187 = tpu.matmul %185, %186, %cst_64 {dimension_numbers = #tpu.dot_dimension_numbers<[1], [0], [0], [1], [0, 0, 1, 1], [], []>} : vector<16x8xf32>, vector<8x32xf32>, vector<16x32xf32> -> vector<16x32xf32>
    %188 = arith.addf %170, %187 : vector<16x32xf32>
    %189 = vector.extract_strided_slice %167 {offsets = [0, 0, 8], sizes = [2, 8, 8], strides = [1, 1, 1]} : vector<2x8x96xf32> to vector<2x8x8xf32>
    %190 = vector.extract_strided_slice %167 {offsets = [0, 0, 40], sizes = [2, 8, 8], strides = [1, 1, 1]} : vector<2x8x96xf32> to vector<2x8x8xf32>
    %191 = vector.extract_strided_slice %167 {offsets = [0, 0, 72], sizes = [2, 8, 8], strides = [1, 1, 1]} : vector<2x8x96xf32> to vector<2x8x8xf32>
    "tpu.trace_start"() <{level = 10 : i32, message = "bqd,bkd->bqk"}> : () -> ()
    %cst_65 = arith.constant dense<0.000000e+00> : vector<2x8x8xf32>
    %192 = tpu.matmul %189, %190, %cst_65 {dimension_numbers = #tpu.dot_dimension_numbers<[2], [2], [1], [1], [0, 0, 0, 1, 1, 1], [0], [0]>} : vector<2x8x8xf32>, vector<2x8x8xf32>, vector<2x8x8xf32> -> vector<2x8x8xf32>
    "tpu.trace_stop"() : () -> ()
    %cst_66 = arith.constant dense<0xFF800000> : vector<2x8xf32>
    %193 = vector.multi_reduction <maximumf>, %192, %cst_66 [2] : vector<2x8x8xf32> to vector<2x8xf32>
    %194 = vector.shape_cast %193 : vector<2x8xf32> to vector<2x8x1xf32>
    %195 = vector.broadcast %194 : vector<2x8x1xf32> to vector<2x8x8xf32>
    %196 = arith.subf %192, %195 : vector<2x8x8xf32>
    %197 = math.exp %196 : vector<2x8x8xf32>
    %cst_67 = arith.constant dense<0.000000e+00> : vector<2x8xf32>
    %198 = vector.multi_reduction <add>, %197, %cst_67 [2] : vector<2x8x8xf32> to vector<2x8xf32>
    %199 = vector.shape_cast %198 : vector<2x8xf32> to vector<2x8x1xf32>
    %200 = vector.broadcast %199 : vector<2x8x1xf32> to vector<2x8x8xf32>
    %201 = arith.divf %197, %200 : vector<2x8x8xf32>
    "tpu.trace_start"() <{level = 10 : i32, message = "bqk,bkd->bqd"}> : () -> ()
    %cst_68 = arith.constant dense<0.000000e+00> : vector<2x8x8xf32>
    %202 = tpu.matmul %201, %191, %cst_68 {dimension_numbers = #tpu.dot_dimension_numbers<[2], [1], [1], [2], [0, 0, 0, 1, 1, 2], [0], [0]>} : vector<2x8x8xf32>, vector<2x8x8xf32>, vector<2x8x8xf32> -> vector<2x8x8xf32>
    "tpu.trace_stop"() : () -> ()
    %203 = vector.shape_cast %202 : vector<2x8x8xf32> to vector<16x8xf32>
    %204 = vector.extract_strided_slice %169 {offsets = [8, 0], sizes = [8, 32], strides = [1, 1]} : vector<32x32xf32> to vector<8x32xf32>
    %cst_69 = arith.constant dense<0.000000e+00> : vector<16x32xf32>
    %205 = tpu.matmul %203, %204, %cst_69 {dimension_numbers = #tpu.dot_dimension_numbers<[1], [0], [0], [1], [0, 0, 1, 1], [], []>} : vector<16x8xf32>, vector<8x32xf32>, vector<16x32xf32> -> vector<16x32xf32>
    %206 = arith.addf %188, %205 : vector<16x32xf32>
    %207 = vector.extract_strided_slice %167 {offsets = [0, 0, 16], sizes = [2, 8, 8], strides = [1, 1, 1]} : vector<2x8x96xf32> to vector<2x8x8xf32>
    %208 = vector.extract_strided_slice %167 {offsets = [0, 0, 48], sizes = [2, 8, 8], strides = [1, 1, 1]} : vector<2x8x96xf32> to vector<2x8x8xf32>
    %209 = vector.extract_strided_slice %167 {offsets = [0, 0, 80], sizes = [2, 8, 8], strides = [1, 1, 1]} : vector<2x8x96xf32> to vector<2x8x8xf32>
    "tpu.trace_start"() <{level = 10 : i32, message = "bqd,bkd->bqk"}> : () -> ()
    %cst_70 = arith.constant dense<0.000000e+00> : vector<2x8x8xf32>
    %210 = tpu.matmul %207, %208, %cst_70 {dimension_numbers = #tpu.dot_dimension_numbers<[2], [2], [1], [1], [0, 0, 0, 1, 1, 1], [0], [0]>} : vector<2x8x8xf32>, vector<2x8x8xf32>, vector<2x8x8xf32> -> vector<2x8x8xf32>
    "tpu.trace_stop"() : () -> ()
    %cst_71 = arith.constant dense<0xFF800000> : vector<2x8xf32>
    %211 = vector.multi_reduction <maximumf>, %210, %cst_71 [2] : vector<2x8x8xf32> to vector<2x8xf32>
    %212 = vector.shape_cast %211 : vector<2x8xf32> to vector<2x8x1xf32>
    %213 = vector.broadcast %212 : vector<2x8x1xf32> to vector<2x8x8xf32>
    %214 = arith.subf %210, %213 : vector<2x8x8xf32>
    %215 = math.exp %214 : vector<2x8x8xf32>
    %cst_72 = arith.constant dense<0.000000e+00> : vector<2x8xf32>
    %216 = vector.multi_reduction <add>, %215, %cst_72 [2] : vector<2x8x8xf32> to vector<2x8xf32>
    %217 = vector.shape_cast %216 : vector<2x8xf32> to vector<2x8x1xf32>
    %218 = vector.broadcast %217 : vector<2x8x1xf32> to vector<2x8x8xf32>
    %219 = arith.divf %215, %218 : vector<2x8x8xf32>
    "tpu.trace_start"() <{level = 10 : i32, message = "bqk,bkd->bqd"}> : () -> ()
    %cst_73 = arith.constant dense<0.000000e+00> : vector<2x8x8xf32>
    %220 = tpu.matmul %219, %209, %cst_73 {dimension_numbers = #tpu.dot_dimension_numbers<[2], [1], [1], [2], [0, 0, 0, 1, 1, 2], [0], [0]>} : vector<2x8x8xf32>, vector<2x8x8xf32>, vector<2x8x8xf32> -> vector<2x8x8xf32>
    "tpu.trace_stop"() : () -> ()
    %221 = vector.shape_cast %220 : vector<2x8x8xf32> to vector<16x8xf32>
    %222 = vector.extract_strided_slice %169 {offsets = [16, 0], sizes = [8, 32], strides = [1, 1]} : vector<32x32xf32> to vector<8x32xf32>
    %cst_74 = arith.constant dense<0.000000e+00> : vector<16x32xf32>
    %223 = tpu.matmul %221, %222, %cst_74 {dimension_numbers = #tpu.dot_dimension_numbers<[1], [0], [0], [1], [0, 0, 1, 1], [], []>} : vector<16x8xf32>, vector<8x32xf32>, vector<16x32xf32> -> vector<16x32xf32>
    %224 = arith.addf %206, %223 : vector<16x32xf32>
    %225 = vector.extract_strided_slice %167 {offsets = [0, 0, 24], sizes = [2, 8, 8], strides = [1, 1, 1]} : vector<2x8x96xf32> to vector<2x8x8xf32>
    %226 = vector.extract_strided_slice %167 {offsets = [0, 0, 56], sizes = [2, 8, 8], strides = [1, 1, 1]} : vector<2x8x96xf32> to vector<2x8x8xf32>
    %227 = vector.extract_strided_slice %167 {offsets = [0, 0, 88], sizes = [2, 8, 8], strides = [1, 1, 1]} : vector<2x8x96xf32> to vector<2x8x8xf32>
    "tpu.trace_start"() <{level = 10 : i32, message = "bqd,bkd->bqk"}> : () -> ()
    %cst_75 = arith.constant dense<0.000000e+00> : vector<2x8x8xf32>
    %228 = tpu.matmul %225, %226, %cst_75 {dimension_numbers = #tpu.dot_dimension_numbers<[2], [2], [1], [1], [0, 0, 0, 1, 1, 1], [0], [0]>} : vector<2x8x8xf32>, vector<2x8x8xf32>, vector<2x8x8xf32> -> vector<2x8x8xf32>
    "tpu.trace_stop"() : () -> ()
    %cst_76 = arith.constant dense<0xFF800000> : vector<2x8xf32>
    %229 = vector.multi_reduction <maximumf>, %228, %cst_76 [2] : vector<2x8x8xf32> to vector<2x8xf32>
    %230 = vector.shape_cast %229 : vector<2x8xf32> to vector<2x8x1xf32>
    %231 = vector.broadcast %230 : vector<2x8x1xf32> to vector<2x8x8xf32>
    %232 = arith.subf %228, %231 : vector<2x8x8xf32>
    %233 = math.exp %232 : vector<2x8x8xf32>
    %cst_77 = arith.constant dense<0.000000e+00> : vector<2x8xf32>
    %234 = vector.multi_reduction <add>, %233, %cst_77 [2] : vector<2x8x8xf32> to vector<2x8xf32>
    %235 = vector.shape_cast %234 : vector<2x8xf32> to vector<2x8x1xf32>
    %236 = vector.broadcast %235 : vector<2x8x1xf32> to vector<2x8x8xf32>
    %237 = arith.divf %233, %236 : vector<2x8x8xf32>
    "tpu.trace_start"() <{level = 10 : i32, message = "bqk,bkd->bqd"}> : () -> ()
    %cst_78 = arith.constant dense<0.000000e+00> : vector<2x8x8xf32>
    %238 = tpu.matmul %237, %227, %cst_78 {dimension_numbers = #tpu.dot_dimension_numbers<[2], [1], [1], [2], [0, 0, 0, 1, 1, 2], [0], [0]>} : vector<2x8x8xf32>, vector<2x8x8xf32>, vector<2x8x8xf32> -> vector<2x8x8xf32>
    "tpu.trace_stop"() : () -> ()
    %239 = vector.shape_cast %238 : vector<2x8x8xf32> to vector<16x8xf32>
    %240 = vector.extract_strided_slice %169 {offsets = [24, 0], sizes = [8, 32], strides = [1, 1]} : vector<32x32xf32> to vector<8x32xf32>
    %cst_79 = arith.constant dense<0.000000e+00> : vector<16x32xf32>
    %241 = tpu.matmul %239, %240, %cst_79 {dimension_numbers = #tpu.dot_dimension_numbers<[1], [0], [0], [1], [0, 0, 1, 1], [], []>} : vector<16x8xf32>, vector<8x32xf32>, vector<16x32xf32> -> vector<16x32xf32>
    %242 = arith.addf %224, %241 : vector<16x32xf32>
    %243 = vector.broadcast %155 : vector<1x32xf32> to vector<16x32xf32>
    %244 = arith.addf %242, %243 : vector<16x32xf32>
    %245 = arith.addf %151, %244 : vector<16x32xf32>
    %cst_80 = arith.constant dense<0.000000e+00> : vector<16xf32>
    %246 = vector.multi_reduction <add>, %245, %cst_80 [1] : vector<16x32xf32> to vector<16xf32>
    %247 = vector.shape_cast %246 : vector<16xf32> to vector<16x1xf32>
    %cst_81 = arith.constant 3.200000e+01 : f32
    %248 = vector.broadcast %cst_81 : f32 to vector<16x1xf32>
    %249 = arith.divf %247, %248 : vector<16x1xf32>
    %250 = arith.mulf %245, %245 : vector<16x32xf32>
    %cst_82 = arith.constant dense<0.000000e+00> : vector<16xf32>
    %251 = vector.multi_reduction <add>, %250, %cst_82 [1] : vector<16x32xf32> to vector<16xf32>
    %252 = vector.shape_cast %251 : vector<16xf32> to vector<16x1xf32>
    %cst_83 = arith.constant 3.200000e+01 : f32
    %253 = vector.broadcast %cst_83 : f32 to vector<16x1xf32>
    %254 = arith.divf %252, %253 : vector<16x1xf32>
    %255 = arith.mulf %249, %249 : vector<16x1xf32>
    %256 = arith.subf %254, %255 : vector<16x1xf32>
    %257 = vector.broadcast %249 : vector<16x1xf32> to vector<16x32xf32>
    %258 = arith.subf %245, %257 : vector<16x32xf32>
    %cst_84 = arith.constant 9.99999974E-6 : f32
    %259 = vector.broadcast %cst_84 : f32 to vector<16x1xf32>
    %260 = arith.addf %256, %259 : vector<16x1xf32>
    %261 = math.rsqrt %260 : vector<16x1xf32>
    %262 = vector.broadcast %261 : vector<16x1xf32> to vector<16x32xf32>
    %263 = arith.mulf %258, %262 : vector<16x32xf32>
    %264 = vector.broadcast %158 : vector<1x32xf32> to vector<16x32xf32>
    %265 = arith.mulf %263, %264 : vector<16x32xf32>
    %266 = vector.broadcast %159 : vector<1x32xf32> to vector<16x32xf32>
    %267 = arith.addf %265, %266 : vector<16x32xf32>
    %c1_85 = arith.constant 1 : index
    %c0_86 = arith.constant 0 : index
    %c0_87 = arith.constant 0 : index
    %268 = vector.load %arg3[%c1_85, %c0_86, %c0_87] : memref<2x32x64xf32, #tpu.memory_space<vmem>>, vector<1x32x64xf32>
    %269 = vector.shape_cast %268 : vector<1x32x64xf32> to vector<32x64xf32>
    %cst_88 = arith.constant dense<0.000000e+00> : vector<16x64xf32>
    %270 = tpu.matmul %267, %269, %cst_88 {dimension_numbers = #tpu.dot_dimension_numbers<[1], [0], [0], [1], [0, 0, 1, 1], [], []>} : vector<16x32xf32>, vector<32x64xf32>, vector<16x64xf32> -> vector<16x64xf32>
    %271 = vector.broadcast %156 : vector<1x64xf32> to vector<16x64xf32>
    %272 = arith.addf %270, %271 : vector<16x64xf32>
    %cst_89 = arith.constant 0.000000e+00 : f32
    %273 = vector.broadcast %cst_89 : f32 to vector<16x64xf32>
    %274 = arith.maximumf %272, %273 : vector<16x64xf32>
    %c1_90 = arith.constant 1 : index
    %c0_91 = arith.constant 0 : index
    %c0_92 = arith.constant 0 : index
    %275 = vector.load %arg4[%c1_90, %c0_91, %c0_92] : memref<2x64x32xf32, #tpu.memory_space<vmem>>, vector<1x64x32xf32>
    %276 = vector.shape_cast %275 : vector<1x64x32xf32> to vector<64x32xf32>
    %cst_93 = arith.constant dense<0.000000e+00> : vector<16x32xf32>
    %277 = tpu.matmul %274, %276, %cst_93 {dimension_numbers = #tpu.dot_dimension_numbers<[1], [0], [0], [1], [0, 0, 1, 1], [], []>} : vector<16x64xf32>, vector<64x32xf32>, vector<16x32xf32> -> vector<16x32xf32>
    %278 = vector.broadcast %157 : vector<1x32xf32> to vector<16x32xf32>
    %279 = arith.addf %277, %278 : vector<16x32xf32>
    %280 = arith.addf %267, %279 : vector<16x32xf32>
    %cst_94 = arith.constant dense<0.000000e+00> : vector<16xf32>
    %281 = vector.multi_reduction <add>, %280, %cst_94 [1] : vector<16x32xf32> to vector<16xf32>
    %282 = vector.shape_cast %281 : vector<16xf32> to vector<16x1xf32>
    %cst_95 = arith.constant 3.200000e+01 : f32
    %283 = vector.broadcast %cst_95 : f32 to vector<16x1xf32>
    %284 = arith.divf %282, %283 : vector<16x1xf32>
    %285 = arith.mulf %280, %280 : vector<16x32xf32>
    %cst_96 = arith.constant dense<0.000000e+00> : vector<16xf32>
    %286 = vector.multi_reduction <add>, %285, %cst_96 [1] : vector<16x32xf32> to vector<16xf32>
    %287 = vector.shape_cast %286 : vector<16xf32> to vector<16x1xf32>
    %cst_97 = arith.constant 3.200000e+01 : f32
    %288 = vector.broadcast %cst_97 : f32 to vector<16x1xf32>
    %289 = arith.divf %287, %288 : vector<16x1xf32>
    %290 = arith.mulf %284, %284 : vector<16x1xf32>
    %291 = arith.subf %289, %290 : vector<16x1xf32>
    %292 = vector.broadcast %284 : vector<16x1xf32> to vector<16x32xf32>
    %293 = arith.subf %280, %292 : vector<16x32xf32>
    %cst_98 = arith.constant 9.99999974E-6 : f32
    %294 = vector.broadcast %cst_98 : f32 to vector<16x1xf32>
    %295 = arith.addf %291, %294 : vector<16x1xf32>
    %296 = math.rsqrt %295 : vector<16x1xf32>
    %297 = vector.broadcast %296 : vector<16x1xf32> to vector<16x32xf32>
    %298 = arith.mulf %293, %297 : vector<16x32xf32>
    %299 = vector.broadcast %160 : vector<1x32xf32> to vector<16x32xf32>
    %300 = arith.mulf %298, %299 : vector<16x32xf32>
    %301 = vector.broadcast %161 : vector<1x32xf32> to vector<16x32xf32>
    %302 = arith.addf %300, %301 : vector<16x32xf32>
    %c0_99 = arith.constant 0 : index
    %c0_100 = arith.constant 0 : index
    %303 = vector.load %arg6[%c0_99, %c0_100] : memref<16x32xf32, #tpu.memory_space<vmem>>, vector<16x32xf32>
    tpu.vector_store %arg6[%c0_99, %c0_100], %302 {strides = array<i32>} : memref<16x32xf32, #tpu.memory_space<vmem>>, vector<16x32xf32>,
    return
  }
}

</mosaic_0001>

<llo_original>
// kernel: transformer_decoder.1
$region0: #{transformer_decoder.1}
  #allocation0 [shape = 'u32[]', space=smem, size = 0x4, offset = 0x4, fixed_abs, tag = 'smem constant byte address 0x4 - core index']
  #allocation1 [shape = 'u32[144,128]{1,0:T(1,128)}', space=vmem, size = 0x12000, scoped, tag = 'internal scratch']
  %s0 = inlined_call_operand.hbm [shape: f32[16,32], index: 0, kind: input, shape index: {}]
  %s1 = inlined_call_operand.vmem [shape: f32[2,32,96], index: 1, kind: input, shape index: {}]
  %s2 = inlined_call_operand.vmem [shape: f32[2,32,32], index: 2, kind: input, shape index: {}]
  %s3 = inlined_call_operand.vmem [shape: f32[2,32,64], index: 3, kind: input, shape index: {}]
  %s4 = inlined_call_operand.vmem [shape: f32[2,64,32], index: 4, kind: input, shape index: {}]
  %s5 = inlined_call_operand.vmem [shape: f32[2,8,96], index: 5, kind: input, shape index: {}]
  %s6 = inlined_call_operand.hbm [shape: f32[16,32], index: 6, kind: output, shape index: {}]
  %s7 = sld [smem:[#allocation0]]
  $region38: #{transformer_decoder.1} parent=0
    _
  %s9 = ssub.s32 1, %s7
  %s10 = scalar_select 0, %s9, %s7
  $region1: #{transformer_decoder.1} parent=0
    #allocation2 [shape = 'u8[8192]{0}', space=vmem, size = 0x2000, scoped, tag = 'input window, operand 0, single buffered']
    #allocation3 [shape = 's32[1]{0}', space=sflag, size = 0x4, scoped, tag = 'scoped memory for transformer_decoder.1']
    #allocation4 [shape = 's32[1]{0}', space=sflag, size = 0x4, scoped, tag = 'scoped memory for transformer_decoder.1']
    #allocation5 [shape = 'u8[8192]{0}', space=vmem, size = 0x2000, scoped, tag = 'output window, operand 0, single buffered']
    %11 = vsyncpa [#allocation3], 0
    %12 = vsyncpa [#allocation4], 0
    // Predicated region
    $region2: #{transformer_decoder.1} parent=1 // pred_check
      _
    $region3: #{transformer_decoder.1} parent=1 // pred_check_branch
      %14 = sbr.rel (0) target = $region5
    $region4: #{transformer_decoder.1} parent=1 // pred_region
      %s16 = ssub.s32 256, 256
      %17 = vsyncadd [#allocation3], %s16
      %s18 = sshll.u32 [#allocation2], 4
      %s19 = int_to_ptr.vmem [resolvable:$true] %s18
      %24 = dma.hbm_to_vmem [thread:$0]  %s0, 256, %s19, [#allocation3], 128, 128, 8
    $region5: #{transformer_decoder.1} parent=1 // pred_fallthru
      _
    // Predicated region
    $region6: #{transformer_decoder.1} parent=1 // pred_check
      _
    $region7: #{transformer_decoder.1} parent=1 // pred_check_branch
      %26 = sbr.rel (0) target = $region9
    $region8: #{transformer_decoder.1} parent=1 // pred_region
      _
    $region9: #{transformer_decoder.1} parent=1 // pred_fallthru
      _
    // Predicated region
    $region10: #{transformer_decoder.1} parent=1 // pred_check
      _
    $region11: #{transformer_decoder.1} parent=1 // pred_check_branch
      %28 = sbr.rel (0) target = $region13
    $region12: #{transformer_decoder.1} parent=1 // pred_region
      _
    $region13: #{transformer_decoder.1} parent=1 // pred_fallthru
      _
    // Predicated region
    $region14: #{transformer_decoder.1} parent=1 // pred_check
      _
    $region15: #{transformer_decoder.1} parent=1 // pred_check_branch
      %30 = sbr.rel (0) target = $region17
    $region16: #{transformer_decoder.1} parent=1 // pred_region
      _
    $region17: #{transformer_decoder.1} parent=1 // pred_fallthru
      _
    // Predicated region
    $region18: #{transformer_decoder.1} parent=1 // pred_check
      _
    $region19: #{transformer_decoder.1} parent=1 // pred_check_branch
      %32 = sbr.rel (0) target = $region21
    $region20: #{transformer_decoder.1} parent=1 // pred_region
      _
    $region21: #{transformer_decoder.1} parent=1 // pred_fallthru
      _
    // Predicated region
    $region22: #{transformer_decoder.1} parent=1 // pred_check
      _
    $region23: #{transformer_decoder.1} parent=1 // pred_check_branch
      %34 = sbr.rel (0) target = $region25
    $region24: #{transformer_decoder.1} parent=1 // pred_region
      _
    $region25: #{transformer_decoder.1} parent=1 // pred_fallthru
      _
    // Predicated region
    $region26: #{transformer_decoder.1} parent=1 // pred_check
      _
    $region27: #{transformer_decoder.1} parent=1 // pred_check_branch
      %36 = sbr.rel (0) target = $region29
    $region28: #{transformer_decoder.1} parent=1 // pred_region
      %37 = dma.done [#allocation3], 256
    $region29: #{transformer_decoder.1} parent=1 // pred_fallthru
      _
    %v38 = vld [vmem:[#allocation2] sm:$0xff]
    %v39 = vld [vmem:[#allocation2 + $0x8] sm:$0xff]
    %v40 = vld [vmem:[%s5] sm:$0xff]
    %v41 = vld [vmem:[%s1] sm:$0xff]
    %v42 = vld [vmem:[%s1 + $0x8] sm:$0xff]
    %v43 = vld [vmem:[%s1 + $0x10] sm:$0xff]
    %v44 = vld [vmem:[%s1 + $0x18] sm:$0xff]
    %v45 = vlaneseq
    %v46 = vshrl.u32 %v45, 7
    %v47 = vsub.s32 0, %v46
    %v48 = vrot.slane %v40, %v47
    %vm49 = vcmask 261120
    %v51 = vsel %vm49, %v38, 0
    %v54 = vsel %vm49, %v39, 0
    %56 = vmatprep.subr.mxu0 0.0
    %57 = vmatpush1.msra.mxu0 %v41
    %58 = vmatprep.subr.mxu0 0.0
    %59 = vmatpush1.msra.mxu0 %v42
    %60 = vmatprep.subr.mxu0 0.0
    %61 = vmatpush1.msra.mxu0 %v43
    %62 = vmatprep.subr.mxu0 0.0
    %63 = vmatpush1.msra.mxu0 %v44
    %64 = vmatprep.subr.mxu0 0.0
    %65 = vmatpush1.msra.mxu0 0.0
    %66 = vmatprep.subr.mxu0 0.0
    %67 = vmatpush1.msra.mxu0 0.0
    %68 = vmatprep.subr.mxu0 0.0
    %69 = vmatpush1.msra.mxu0 0.0
    %70 = vmatprep.subr.mxu0 0.0
    %71 = vmatpush1.msra.mxu0 0.0
    %72 = vmatprep.subr.mxu0 0.0
    %73 = vmatpush1.msra.mxu0 0.0
    %74 = vmatprep.subr.mxu0 0.0
    %75 = vmatpush1.msra.mxu0 0.0
    %76 = vmatprep.subr.mxu0 0.0
    %77 = vmatpush1.msra.mxu0 0.0
    %78 = vmatprep.subr.mxu0 0.0
    %79 = vmatpush1.msra.mxu0 0.0
    %80 = vmatprep.subr.mxu0 0.0
    %81 = vmatpush1.msra.mxu0 0.0
    %82 = vmatprep.subr.mxu0 0.0
    %83 = vmatpush1.msra.mxu0 0.0
    %84 = vmatprep.subr.mxu0 0.0
    %85 = vmatpush1.msra.mxu0 0.0
    %86 = vmatprep.subr.mxu0 0.0
    %87 = vmatpush1.msra.mxu0 0.0
    %88 = vmatprep.subr.mxu0 0.0
    %89 = vmatpush1.msra.mxu0 0.0
    %90 = vmatprep.subr.mxu0 0.0
    %91 = vmatpush1.msra.mxu0 0.0
    %92 = vmatprep.subr.mxu0 0.0
    %93 = vmatpush1.msra.mxu0 0.0
    %94 = vmatprep.subr.mxu0 0.0
    %95 = vmatpush1.msra.mxu0 0.0
    %96 = vmatprep.subr.mxu0 0.0
    %97 = vmatpush1.msra.mxu0 0.0
    %98 = vmatprep.subr.mxu0 0.0
    %99 = vmatpush1.msra.mxu0 0.0
    %100 = vmatprep.subr.mxu0 0.0
    %101 = vmatpush1.msra.mxu0 0.0
    %102 = vmatprep.subr.mxu0 0.0
    %103 = vmatpush1.msra.mxu0 0.0
    %104 = vmatprep.subr.mxu0 0.0
    %105 = vmatpush1.msra.mxu0 0.0
    %106 = vmatprep.subr.mxu0 0.0
    %107 = vmatpush1.msra.mxu0 0.0
    %108 = vmatprep.subr.mxu0 0.0
    %109 = vmatpush1.msra.mxu0 0.0
    %110 = vmatprep.subr.mxu0 0.0
    %111 = vmatpush1.msra.mxu0 0.0
    %112 = vmatprep.subr.mxu0 0.0
    %113 = vmatpush1.msra.mxu0 0.0
    %114 = vmatprep.subr.mxu0 0.0
    %115 = vmatpush1.msra.mxu0 0.0
    %116 = vmatprep.subr.mxu0 0.0
    %117 = vmatpush1.msra.mxu0 0.0
    %118 = vmatprep.subr.mxu0 0.0
    %119 = vmatpush1.msra.mxu0 0.0
    %120 = vmatprep.mubr.f32.mxu0 0.0
    %121 = vmatmul.mubr.f32.gmra.mrb[0].mxu0 %v51
    %v122 = vpop.f32.mrb[0].mxu0
    %v123 = vadd.f32 %v48, %v122
    %v124 = vpop.f32.mrb[0].mxu0
    %125 = vmatprep.mubr.f32.mxu0 0.0
    %126 = vmatmul.mubr.f32.gmra.mrb[0].mxu0 %v54
    %v127 = vpop.f32.mrb[0].mxu0
    %v128 = vadd.f32 %v48, %v127
    %v129 = vpop.f32.mrb[0].mxu0
    %130 = vdwg.mxu0
    %v131 = vld [vmem:[%s2] sm:$0xff]
    %v132 = vld [vmem:[%s2 + $0x8] sm:$0xff]
    %v133 = vld [vmem:[%s2 + $0x10] sm:$0xff]
    %v134 = vld [vmem:[%s2 + $0x18] sm:$0xff]
    %136 = vrot.lane.b32.xlu0 %v123, 96
    %v137 = vpop.permute.xlu0 %136
    %vm138 = vcmask 64512
    %v139 = vsel %vm138, %v123, 0
    %v141 = vsel %vm138, %v137, 0
    %143 = vmatprep.subr.mxu0 0.0
    %144 = vmatpush1.xpose.msra.mxu0 %v141
    %145 = vmatprep.subr.mxu0 0.0
    %146 = vmatpush1.xpose.msra.mxu0 0.0
    %147 = vmatprep.subr.mxu0 0.0
    %148 = vmatpush1.xpose.msra.mxu0 0.0
    %149 = vmatprep.subr.mxu0 0.0
    %150 = vmatpush1.xpose.msra.mxu0 0.0
    %151 = vmatprep.subr.mxu0 0.0
    %152 = vmatpush1.xpose.msra.mxu0 0.0
    %153 = vmatprep.subr.mxu0 0.0
    %154 = vmatpush1.xpose.msra.mxu0 0.0
    %155 = vmatprep.subr.mxu0 0.0
    %156 = vmatpush1.xpose.msra.mxu0 0.0
    %157 = vmatprep.subr.mxu0 0.0
    %158 = vmatpush1.xpose.msra.mxu0 0.0
    %159 = vmatprep.subr.mxu0 0.0
    %160 = vmatpush1.xpose.msra.mxu0 0.0
    %161 = vmatprep.subr.mxu0 0.0
    %162 = vmatpush1.xpose.msra.mxu0 0.0
    %163 = vmatprep.subr.mxu0 0.0
    %164 = vmatpush1.xpose.msra.mxu0 0.0
    %165 = vmatprep.subr.mxu0 0.0
    %166 = vmatpush1.xpose.msra.mxu0 0.0
    %167 = vmatprep.subr.mxu0 0.0
    %168 = vmatpush1.xpose.msra.mxu0 0.0
    %169 = vmatprep.subr.mxu0 0.0
    %170 = vmatpush1.xpose.msra.mxu0 0.0
    %171 = vmatprep.subr.mxu0 0.0
    %172 = vmatpush1.xpose.msra.mxu0 0.0
    %173 = vmatprep.subr.mxu0 0.0
    %174 = vmatpush1.xpose.msra.mxu0 0.0
    %175 = vmatprep.subr.mxu0 0.0
    %176 = vmatpush1.xpose.msra.mxu0 0.0
    %177 = vmatprep.subr.mxu0 0.0
    %178 = vmatpush1.xpose.msra.mxu0 0.0
    %179 = vmatprep.subr.mxu0 0.0
    %180 = vmatpush1.xpose.msra.mxu0 0.0
    %181 = vmatprep.subr.mxu0 0.0
    %182 = vmatpush1.xpose.msra.mxu0 0.0
    %183 = vmatprep.subr.mxu0 0.0
    %184 = vmatpush1.xpose.msra.mxu0 0.0
    %185 = vmatprep.subr.mxu0 0.0
    %186 = vmatpush1.xpose.msra.mxu0 0.0
    %187 = vmatprep.subr.mxu0 0.0
    %188 = vmatpush1.xpose.msra.mxu0 0.0
    %189 = vmatprep.subr.mxu0 0.0
    %190 = vmatpush1.xpose.msra.mxu0 0.0
    %191 = vmatprep.subr.mxu0 0.0
    %192 = vmatpush1.xpose.msra.mxu0 0.0
    %193 = vmatprep.subr.mxu0 0.0
    %194 = vmatpush1.xpose.msra.mxu0 0.0
    %195 = vmatprep.subr.mxu0 0.0
    %196 = vmatpush1.xpose.msra.mxu0 0.0
    %197 = vmatprep.subr.mxu0 0.0
    %198 = vmatpush1.xpose.msra.mxu0 0.0
    %199 = vmatprep.subr.mxu0 0.0
    %200 = vmatpush1.xpose.msra.mxu0 0.0
    %201 = vmatprep.subr.mxu0 0.0
    %202 = vmatpush1.xpose.msra.mxu0 0.0
    %203 = vmatprep.subr.mxu0 0.0
    %204 = vmatpush1.xpose.msra.mxu0 0.0
    %205 = vmatprep.subr.mxu0 0.0
    %206 = vmatpush1.xpose.msra.mxu0 0.0
    %207 = vmatprep.mubr.f32.mxu0 0.0
    %208 = vmatmul.mubr.f32.gmra.mrb[0].mxu0 %v139
    %v209 = vpop.f32.mrb[0].mxu0
    %v210 = vadd.f32 0.0, %v209
    %v211 = vpop.f32.mrb[0].mxu0
    %212 = vdwg.mxu0
    %214 = vrot.lane.b32.xlu0 %v128, 96
    %v215 = vpop.permute.xlu0 %214
    %v216 = vsel %vm138, %v128, 0
    %v218 = vsel %vm138, %v215, 0
    %220 = vmatprep.subr.mxu0 0.0
    %221 = vmatpush1.xpose.msra.mxu0 %v218
    %222 = vmatprep.subr.mxu0 0.0
    %223 = vmatpush1.xpose.msra.mxu0 0.0
    %224 = vmatprep.subr.mxu0 0.0
    %225 = vmatpush1.xpose.msra.mxu0 0.0
    %226 = vmatprep.subr.mxu0 0.0
    %227 = vmatpush1.xpose.msra.mxu0 0.0
    %228 = vmatprep.subr.mxu0 0.0
    %229 = vmatpush1.xpose.msra.mxu0 0.0
    %230 = vmatprep.subr.mxu0 0.0
    %231 = vmatpush1.xpose.msra.mxu0 0.0
    %232 = vmatprep.subr.mxu0 0.0
    %233 = vmatpush1.xpose.msra.mxu0 0.0
    %234 = vmatprep.subr.mxu0 0.0
    %235 = vmatpush1.xpose.msra.mxu0 0.0
    %236 = vmatprep.subr.mxu0 0.0
    %237 = vmatpush1.xpose.msra.mxu0 0.0
    %238 = vmatprep.subr.mxu0 0.0
    %239 = vmatpush1.xpose.msra.mxu0 0.0
    %240 = vmatprep.subr.mxu0 0.0
    %241 = vmatpush1.xpose.msra.mxu0 0.0
    %242 = vmatprep.subr.mxu0 0.0
    %243 = vmatpush1.xpose.msra.mxu0 0.0
    %244 = vmatprep.subr.mxu0 0.0
    %245 = vmatpush1.xpose.msra.mxu0 0.0
    %246 = vmatprep.subr.mxu0 0.0
    %247 = vmatpush1.xpose.msra.mxu0 0.0
    %248 = vmatprep.subr.mxu0 0.0
    %249 = vmatpush1.xpose.msra.mxu0 0.0
    %250 = vmatprep.subr.mxu0 0.0
    %251 = vmatpush1.xpose.msra.mxu0 0.0
    %252 = vmatprep.subr.mxu0 0.0
    %253 = vmatpush1.xpose.msra.mxu0 0.0
    %254 = vmatprep.subr.mxu0 0.0
    %255 = vmatpush1.xpose.msra.mxu0 0.0
    %256 = vmatprep.subr.mxu0 0.0
    %257 = vmatpush1.xpose.msra.mxu0 0.0
    %258 = vmatprep.subr.mxu0 0.0
    %259 = vmatpush1.xpose.msra.mxu0 0.0
    %260 = vmatprep.subr.mxu0 0.0
    %261 = vmatpush1.xpose.msra.mxu0 0.0
    %262 = vmatprep.subr.mxu0 0.0
    %263 = vmatpush1.xpose.msra.mxu0 0.0
    %264 = vmatprep.subr.mxu0 0.0
    %265 = vmatpush1.xpose.msra.mxu0 0.0
    %266 = vmatprep.subr.mxu0 0.0
    %267 = vmatpush1.xpose.msra.mxu0 0.0
    %268 = vmatprep.subr.mxu0 0.0
    %269 = vmatpush1.xpose.msra.mxu0 0.0
    %270 = vmatprep.subr.mxu0 0.0
    %271 = vmatpush1.xpose.msra.mxu0 0.0
    %272 = vmatprep.subr.mxu0 0.0
    %273 = vmatpush1.xpose.msra.mxu0 0.0
    %274 = vmatprep.subr.mxu0 0.0
    %275 = vmatpush1.xpose.msra.mxu0 0.0
    %276 = vmatprep.subr.mxu0 0.0
    %277 = vmatpush1.xpose.msra.mxu0 0.0
    %278 = vmatprep.subr.mxu0 0.0
    %279 = vmatpush1.xpose.msra.mxu0 0.0
    %280 = vmatprep.subr.mxu0 0.0
    %281 = vmatpush1.xpose.msra.mxu0 0.0
    %282 = vmatprep.subr.mxu0 0.0
    %283 = vmatpush1.xpose.msra.mxu0 0.0
    %284 = vmatprep.mubr.f32.mxu0 0.0
    %285 = vmatmul.mubr.f32.gmra.mrb[0].mxu0 %v216
    %v286 = vpop.f32.mrb[0].mxu0
    %v287 = vadd.f32 0.0, %v286
    %v288 = vpop.f32.mrb[0].mxu0
    %289 = vdwg.mxu0
    %v290 = vsel %vm138, %v210, -inf
    %291 = vmax.xlane.f32.xlu0 %v290
    %v292 = vpop.xlane.xlu0 %291
    %v293 = vsel %vm138, %v287, -inf
    %294 = vmax.xlane.f32.xlu0 %v293
    %v295 = vpop.xlane.xlu0 %294
    %v296 = vsub.f32 %v210, %v292
    %v297 = vsub.f32 %v287, %v295
    %v298 = vmul.f32 %v296, 1.442695
    %v299 = vpow.pop %v298
    %v300 = vmul.f32 %v297, 1.442695
    %v301 = vpow.pop %v300
    %v302 = vsel %vm138, %v299, 0.0
    %303 = vadd.xlane.f32.xlu0 %v302
    %v304 = vpop.xlane.xlu0 %303
    %v305 = vsel %vm138, %v301, 0.0
    %306 = vadd.xlane.f32.xlu0 %v305
    %v307 = vpop.xlane.xlu0 %306
    %v308 = vrcp.pop %v304
    %v309 = vmul.f32 %v299, %v308
    %v310 = vrcp.pop %v307
    %v311 = vmul.f32 %v301, %v310
    %312 = vrot.lane.b32.xlu0 %v123, 64
    %v313 = vpop.permute.xlu0 %312
    %v316 = vsel %vm138, %v309, 0
    %318 = vmatprep.subr.mxu0 0.0
    %319 = vmatpush1.msra.mxu0 %v313
    %320 = vmatprep.subr.mxu0 0.0
    %321 = vmatpush1.msra.mxu0 0.0
    %322 = vmatprep.subr.mxu0 0.0
    %323 = vmatpush1.msra.mxu0 0.0
    %324 = vmatprep.subr.mxu0 0.0
    %325 = vmatpush1.msra.mxu0 0.0
    %326 = vmatprep.subr.mxu0 0.0
    %327 = vmatpush1.msra.mxu0 0.0
    %328 = vmatprep.subr.mxu0 0.0
    %329 = vmatpush1.msra.mxu0 0.0
    %330 = vmatprep.subr.mxu0 0.0
    %331 = vmatpush1.msra.mxu0 0.0
    %332 = vmatprep.subr.mxu0 0.0
    %333 = vmatpush1.msra.mxu0 0.0
    %334 = vmatprep.subr.mxu0 0.0
    %335 = vmatpush1.msra.mxu0 0.0
    %336 = vmatprep.subr.mxu0 0.0
    %337 = vmatpush1.msra.mxu0 0.0
    %338 = vmatprep.subr.mxu0 0.0
    %339 = vmatpush1.msra.mxu0 0.0
    %340 = vmatprep.subr.mxu0 0.0
    %341 = vmatpush1.msra.mxu0 0.0
    %342 = vmatprep.subr.mxu0 0.0
    %343 = vmatpush1.msra.mxu0 0.0
    %344 = vmatprep.subr.mxu0 0.0
    %345 = vmatpush1.msra.mxu0 0.0
    %346 = vmatprep.subr.mxu0 0.0
    %347 = vmatpush1.msra.mxu0 0.0
    %348 = vmatprep.subr.mxu0 0.0
    %349 = vmatpush1.msra.mxu0 0.0
    %350 = vmatprep.subr.mxu0 0.0
    %351 = vmatpush1.msra.mxu0 0.0
    %352 = vmatprep.subr.mxu0 0.0
    %353 = vmatpush1.msra.mxu0 0.0
    %354 = vmatprep.subr.mxu0 0.0
    %355 = vmatpush1.msra.mxu0 0.0
    %356 = vmatprep.subr.mxu0 0.0
    %357 = vmatpush1.msra.mxu0 0.0
    %358 = vmatprep.subr.mxu0 0.0
    %359 = vmatpush1.msra.mxu0 0.0
    %360 = vmatprep.subr.mxu0 0.0
    %361 = vmatpush1.msra.mxu0 0.0
    %362 = vmatprep.subr.mxu0 0.0
    %363 = vmatpush1.msra.mxu0 0.0
    %364 = vmatprep.subr.mxu0 0.0
    %365 = vmatpush1.msra.mxu0 0.0
    %366 = vmatprep.subr.mxu0 0.0
    %367 = vmatpush1.msra.mxu0 0.0
    %368 = vmatprep.subr.mxu0 0.0
    %369 = vmatpush1.msra.mxu0 0.0
    %370 = vmatprep.subr.mxu0 0.0
    %371 = vmatpush1.msra.mxu0 0.0
    %372 = vmatprep.subr.mxu0 0.0
    %373 = vmatpush1.msra.mxu0 0.0
    %374 = vmatprep.subr.mxu0 0.0
    %375 = vmatpush1.msra.mxu0 0.0
    %376 = vmatprep.subr.mxu0 0.0
    %377 = vmatpush1.msra.mxu0 0.0
    %378 = vmatprep.subr.mxu0 0.0
    %379 = vmatpush1.msra.mxu0 0.0
    %380 = vmatprep.subr.mxu0 0.0
    %381 = vmatpush1.msra.mxu0 0.0
    %382 = vmatprep.mubr.f32.mxu0 0.0
    %383 = vmatmul.mubr.f32.gmra.mrb[0].mxu0 %v316
    %v384 = vpop.f32.mrb[0].mxu0
    %v385 = vadd.f32 0.0, %v384
    %v386 = vpop.f32.mrb[0].mxu0
    %387 = vdwg.mxu0
    %388 = vrot.lane.b32.xlu0 %v128, 64
    %v389 = vpop.permute.xlu0 %388
    %v392 = vsel %vm138, %v311, 0
    %394 = vmatprep.subr.mxu0 0.0
    %395 = vmatpush1.msra.mxu0 %v389
    %396 = vmatprep.subr.mxu0 0.0
    %397 = vmatpush1.msra.mxu0 0.0
    %398 = vmatprep.subr.mxu0 0.0
    %399 = vmatpush1.msra.mxu0 0.0
    %400 = vmatprep.subr.mxu0 0.0
    %401 = vmatpush1.msra.mxu0 0.0
    %402 = vmatprep.subr.mxu0 0.0
    %403 = vmatpush1.msra.mxu0 0.0
    %404 = vmatprep.subr.mxu0 0.0
    %405 = vmatpush1.msra.mxu0 0.0
    %406 = vmatprep.subr.mxu0 0.0
    %407 = vmatpush1.msra.mxu0 0.0
    %408 = vmatprep.subr.mxu0 0.0
    %409 = vmatpush1.msra.mxu0 0.0
    %410 = vmatprep.subr.mxu0 0.0
    %411 = vmatpush1.msra.mxu0 0.0
    %412 = vmatprep.subr.mxu0 0.0
    %413 = vmatpush1.msra.mxu0 0.0
    %414 = vmatprep.subr.mxu0 0.0
    %415 = vmatpush1.msra.mxu0 0.0
    %416 = vmatprep.subr.mxu0 0.0
    %417 = vmatpush1.msra.mxu0 0.0
    %418 = vmatprep.subr.mxu0 0.0
    %419 = vmatpush1.msra.mxu0 0.0
    %420 = vmatprep.subr.mxu0 0.0
    %421 = vmatpush1.msra.mxu0 0.0
    %422 = vmatprep.subr.mxu0 0.0
    %423 = vmatpush1.msra.mxu0 0.0
    %424 = vmatprep.subr.mxu0 0.0
    %425 = vmatpush1.msra.mxu0 0.0
    %426 = vmatprep.subr.mxu0 0.0
    %427 = vmatpush1.msra.mxu0 0.0
    %428 = vmatprep.subr.mxu0 0.0
    %429 = vmatpush1.msra.mxu0 0.0
    %430 = vmatprep.subr.mxu0 0.0
    %431 = vmatpush1.msra.mxu0 0.0
    %432 = vmatprep.subr.mxu0 0.0
    %433 = vmatpush1.msra.mxu0 0.0
    %434 = vmatprep.subr.mxu0 0.0
    %435 = vmatpush1.msra.mxu0 0.0
    %436 = vmatprep.subr.mxu0 0.0
    %437 = vmatpush1.msra.mxu0 0.0
    %438 = vmatprep.subr.mxu0 0.0
    %439 = vmatpush1.msra.mxu0 0.0
    %440 = vmatprep.subr.mxu0 0.0
    %441 = vmatpush1.msra.mxu0 0.0
    %442 = vmatprep.subr.mxu0 0.0
    %443 = vmatpush1.msra.mxu0 0.0
    %444 = vmatprep.subr.mxu0 0.0
    %445 = vmatpush1.msra.mxu0 0.0
    %446 = vmatprep.subr.mxu0 0.0
    %447 = vmatpush1.msra.mxu0 0.0
    %448 = vmatprep.subr.mxu0 0.0
    %449 = vmatpush1.msra.mxu0 0.0
    %450 = vmatprep.subr.mxu0 0.0
    %451 = vmatpush1.msra.mxu0 0.0
    %452 = vmatprep.subr.mxu0 0.0
    %453 = vmatpush1.msra.mxu0 0.0
    %454 = vmatprep.subr.mxu0 0.0
    %455 = vmatpush1.msra.mxu0 0.0
    %456 = vmatprep.subr.mxu0 0.0
    %457 = vmatpush1.msra.mxu0 0.0
    %458 = vmatprep.mubr.f32.mxu0 0.0
    %459 = vmatmul.mubr.f32.gmra.mrb[0].mxu0 %v392
    %v460 = vpop.f32.mrb[0].mxu0
    %v461 = vadd.f32 0.0, %v460
    %v462 = vpop.f32.mrb[0].mxu0
    %463 = vdwg.mxu0
    %464 = vrot.lane.b32.xlu0 %v123, 120
    %v465 = vpop.permute.xlu0 %464
    %466 = vrot.lane.b32.xlu0 %v123, 88
    %v467 = vpop.permute.xlu0 %466
    %v468 = vsel %vm138, %v465, 0
    %v470 = vsel %vm138, %v467, 0
    %472 = vmatprep.subr.mxu0 0.0
    %473 = vmatpush1.xpose.msra.mxu0 %v470
    %474 = vmatprep.subr.mxu0 0.0
    %475 = vmatpush1.xpose.msra.mxu0 0.0
    %476 = vmatprep.subr.mxu0 0.0
    %477 = vmatpush1.xpose.msra.mxu0 0.0
    %478 = vmatprep.subr.mxu0 0.0
    %479 = vmatpush1.xpose.msra.mxu0 0.0
    %480 = vmatprep.subr.mxu0 0.0
    %481 = vmatpush1.xpose.msra.mxu0 0.0
    %482 = vmatprep.subr.mxu0 0.0
    %483 = vmatpush1.xpose.msra.mxu0 0.0
    %484 = vmatprep.subr.mxu0 0.0
    %485 = vmatpush1.xpose.msra.mxu0 0.0
    %486 = vmatprep.subr.mxu0 0.0
    %487 = vmatpush1.xpose.msra.mxu0 0.0
    %488 = vmatprep.subr.mxu0 0.0
    %489 = vmatpush1.xpose.msra.mxu0 0.0
    %490 = vmatprep.subr.mxu0 0.0
    %491 = vmatpush1.xpose.msra.mxu0 0.0
    %492 = vmatprep.subr.mxu0 0.0
    %493 = vmatpush1.xpose.msra.mxu0 0.0
    %494 = vmatprep.subr.mxu0 0.0
    %495 = vmatpush1.xpose.msra.mxu0 0.0
    %496 = vmatprep.subr.mxu0 0.0
    %497 = vmatpush1.xpose.msra.mxu0 0.0
    %498 = vmatprep.subr.mxu0 0.0
    %499 = vmatpush1.xpose.msra.mxu0 0.0
    %500 = vmatprep.subr.mxu0 0.0
    %501 = vmatpush1.xpose.msra.mxu0 0.0
    %502 = vmatprep.subr.mxu0 0.0
    %503 = vmatpush1.xpose.msra.mxu0 0.0
    %504 = vmatprep.subr.mxu0 0.0
    %505 = vmatpush1.xpose.msra.mxu0 0.0
    %506 = vmatprep.subr.mxu0 0.0
    %507 = vmatpush1.xpose.msra.mxu0 0.0
    %508 = vmatprep.subr.mxu0 0.0
    %509 = vmatpush1.xpose.msra.mxu0 0.0
    %510 = vmatprep.subr.mxu0 0.0
    %511 = vmatpush1.xpose.msra.mxu0 0.0
    %512 = vmatprep.subr.mxu0 0.0
    %513 = vmatpush1.xpose.msra.mxu0 0.0
    %514 = vmatprep.subr.mxu0 0.0
    %515 = vmatpush1.xpose.msra.mxu0 0.0
    %516 = vmatprep.subr.mxu0 0.0
    %517 = vmatpush1.xpose.msra.mxu0 0.0
    %518 = vmatprep.subr.mxu0 0.0
    %519 = vmatpush1.xpose.msra.mxu0 0.0
    %520 = vmatprep.subr.mxu0 0.0
    %521 = vmatpush1.xpose.msra.mxu0 0.0
    %522 = vmatprep.subr.mxu0 0.0
    %523 = vmatpush1.xpose.msra.mxu0 0.0
    %524 = vmatprep.subr.mxu0 0.0
    %525 = vmatpush1.xpose.msra.mxu0 0.0
    %526 = vmatprep.subr.mxu0 0.0
    %527 = vmatpush1.xpose.msra.mxu0 0.0
    %528 = vmatprep.subr.mxu0 0.0
    %529 = vmatpush1.xpose.msra.mxu0 0.0
    %530 = vmatprep.subr.mxu0 0.0
    %531 = vmatpush1.xpose.msra.mxu0 0.0
    %532 = vmatprep.subr.mxu0 0.0
    %533 = vmatpush1.xpose.msra.mxu0 0.0
    %534 = vmatprep.subr.mxu0 0.0
    %535 = vmatpush1.xpose.msra.mxu0 0.0
    %536 = vmatprep.mubr.f32.mxu0 0.0
    %537 = vmatmul.mubr.f32.gmra.mrb[0].mxu0 %v468
    %v538 = vpop.f32.mrb[0].mxu0
    %v539 = vadd.f32 0.0, %v538
    %v540 = vpop.f32.mrb[0].mxu0
    %541 = vdwg.mxu0
    %542 = vrot.lane.b32.xlu0 %v128, 120
    %v543 = vpop.permute.xlu0 %542
    %544 = vrot.lane.b32.xlu0 %v128, 88
    %v545 = vpop.permute.xlu0 %544
    %v546 = vsel %vm138, %v543, 0
    %v548 = vsel %vm138, %v545, 0
    %550 = vmatprep.subr.mxu0 0.0
    %551 = vmatpush1.xpose.msra.mxu0 %v548
    %552 = vmatprep.subr.mxu0 0.0
    %553 = vmatpush1.xpose.msra.mxu0 0.0
    %554 = vmatprep.subr.mxu0 0.0
    %555 = vmatpush1.xpose.msra.mxu0 0.0
    %556 = vmatprep.subr.mxu0 0.0
    %557 = vmatpush1.xpose.msra.mxu0 0.0
    %558 = vmatprep.subr.mxu0 0.0
    %559 = vmatpush1.xpose.msra.mxu0 0.0
    %560 = vmatprep.subr.mxu0 0.0
    %561 = vmatpush1.xpose.msra.mxu0 0.0
    %562 = vmatprep.subr.mxu0 0.0
    %563 = vmatpush1.xpose.msra.mxu0 0.0
    %564 = vmatprep.subr.mxu0 0.0
    %565 = vmatpush1.xpose.msra.mxu0 0.0
    %566 = vmatprep.subr.mxu0 0.0
    %567 = vmatpush1.xpose.msra.mxu0 0.0
    %568 = vmatprep.subr.mxu0 0.0
    %569 = vmatpush1.xpose.msra.mxu0 0.0
    %570 = vmatprep.subr.mxu0 0.0
    %571 = vmatpush1.xpose.msra.mxu0 0.0
    %572 = vmatprep.subr.mxu0 0.0
    %573 = vmatpush1.xpose.msra.mxu0 0.0
    %574 = vmatprep.subr.mxu0 0.0
    %575 = vmatpush1.xpose.msra.mxu0 0.0
    %576 = vmatprep.subr.mxu0 0.0
    %577 = vmatpush1.xpose.msra.mxu0 0.0
    %578 = vmatprep.subr.mxu0 0.0
    %579 = vmatpush1.xpose.msra.mxu0 0.0
    %580 = vmatprep.subr.mxu0 0.0
    %581 = vmatpush1.xpose.msra.mxu0 0.0
    %582 = vmatprep.subr.mxu0 0.0
    %583 = vmatpush1.xpose.msra.mxu0 0.0
    %584 = vmatprep.subr.mxu0 0.0
    %585 = vmatpush1.xpose.msra.mxu0 0.0
    %586 = vmatprep.subr.mxu0 0.0
    %587 = vmatpush1.xpose.msra.mxu0 0.0
    %588 = vmatprep.subr.mxu0 0.0
    %589 = vmatpush1.xpose.msra.mxu0 0.0
    %590 = vmatprep.subr.mxu0 0.0
    %591 = vmatpush1.xpose.msra.mxu0 0.0
    %592 = vmatprep.subr.mxu0 0.0
    %593 = vmatpush1.xpose.msra.mxu0 0.0
    %594 = vmatprep.subr.mxu0 0.0
    %595 = vmatpush1.xpose.msra.mxu0 0.0
    %596 = vmatprep.subr.mxu0 0.0
    %597 = vmatpush1.xpose.msra.mxu0 0.0
    %598 = vmatprep.subr.mxu0 0.0
    %599 = vmatpush1.xpose.msra.mxu0 0.0
    %600 = vmatprep.subr.mxu0 0.0
    %601 = vmatpush1.xpose.msra.mxu0 0.0
    %602 = vmatprep.subr.mxu0 0.0
    %603 = vmatpush1.xpose.msra.mxu0 0.0
    %604 = vmatprep.subr.mxu0 0.0
    %605 = vmatpush1.xpose.msra.mxu0 0.0
    %606 = vmatprep.subr.mxu0 0.0
    %607 = vmatpush1.xpose.msra.mxu0 0.0
    %608 = vmatprep.subr.mxu0 0.0
    %609 = vmatpush1.xpose.msra.mxu0 0.0
    %610 = vmatprep.subr.mxu0 0.0
    %611 = vmatpush1.xpose.msra.mxu0 0.0
    %612 = vmatprep.subr.mxu0 0.0
    %613 = vmatpush1.xpose.msra.mxu0 0.0
    %614 = vmatprep.mubr.f32.mxu0 0.0
    %615 = vmatmul.mubr.f32.gmra.mrb[0].mxu0 %v546
    %v616 = vpop.f32.mrb[0].mxu0
    %v617 = vadd.f32 0.0, %v616
    %v618 = vpop.f32.mrb[0].mxu0
    %619 = vdwg.mxu0
    %v620 = vsel %vm138, %v539, -inf
    %621 = vmax.xlane.f32.xlu0 %v620
    %v622 = vpop.xlane.xlu0 %621
    %v623 = vsel %vm138, %v617, -inf
    %624 = vmax.xlane.f32.xlu0 %v623
    %v625 = vpop.xlane.xlu0 %624
    %v626 = vsub.f32 %v539, %v622
    %v627 = vsub.f32 %v617, %v625
    %v628 = vmul.f32 %v626, 1.442695
    %v629 = vpow.pop %v628
    %v630 = vmul.f32 %v627, 1.442695
    %v631 = vpow.pop %v630
    %v632 = vsel %vm138, %v629, 0.0
    %633 = vadd.xlane.f32.xlu0 %v632
    %v634 = vpop.xlane.xlu0 %633
    %v635 = vsel %vm138, %v631, 0.0
    %636 = vadd.xlane.f32.xlu0 %v635
    %v637 = vpop.xlane.xlu0 %636
    %v638 = vrcp.pop %v634
    %v639 = vmul.f32 %v629, %v638
    %v640 = vrcp.pop %v637
    %v641 = vmul.f32 %v631, %v640
    %642 = vrot.lane.b32.xlu0 %v123, 56
    %v643 = vpop.permute.xlu0 %642
    %v646 = vsel %vm138, %v639, 0
    %648 = vmatprep.subr.mxu0 0.0
    %649 = vmatpush1.msra.mxu0 %v643
    %650 = vmatprep.subr.mxu0 0.0
    %651 = vmatpush1.msra.mxu0 0.0
    %652 = vmatprep.subr.mxu0 0.0
    %653 = vmatpush1.msra.mxu0 0.0
    %654 = vmatprep.subr.mxu0 0.0
    %655 = vmatpush1.msra.mxu0 0.0
    %656 = vmatprep.subr.mxu0 0.0
    %657 = vmatpush1.msra.mxu0 0.0
    %658 = vmatprep.subr.mxu0 0.0
    %659 = vmatpush1.msra.mxu0 0.0
    %660 = vmatprep.subr.mxu0 0.0
    %661 = vmatpush1.msra.mxu0 0.0
    %662 = vmatprep.subr.mxu0 0.0
    %663 = vmatpush1.msra.mxu0 0.0
    %664 = vmatprep.subr.mxu0 0.0
    %665 = vmatpush1.msra.mxu0 0.0
    %666 = vmatprep.subr.mxu0 0.0
    %667 = vmatpush1.msra.mxu0 0.0
    %668 = vmatprep.subr.mxu0 0.0
    %669 = vmatpush1.msra.mxu0 0.0
    %670 = vmatprep.subr.mxu0 0.0
    %671 = vmatpush1.msra.mxu0 0.0
    %672 = vmatprep.subr.mxu0 0.0
    %673 = vmatpush1.msra.mxu0 0.0
    %674 = vmatprep.subr.mxu0 0.0
    %675 = vmatpush1.msra.mxu0 0.0
    %676 = vmatprep.subr.mxu0 0.0
    %677 = vmatpush1.msra.mxu0 0.0
    %678 = vmatprep.subr.mxu0 0.0
    %679 = vmatpush1.msra.mxu0 0.0
    %680 = vmatprep.subr.mxu0 0.0
    %681 = vmatpush1.msra.mxu0 0.0
    %682 = vmatprep.subr.mxu0 0.0
    %683 = vmatpush1.msra.mxu0 0.0
    %684 = vmatprep.subr.mxu0 0.0
    %685 = vmatpush1.msra.mxu0 0.0
    %686 = vmatprep.subr.mxu0 0.0
    %687 = vmatpush1.msra.mxu0 0.0
    %688 = vmatprep.subr.mxu0 0.0
    %689 = vmatpush1.msra.mxu0 0.0
    %690 = vmatprep.subr.mxu0 0.0
    %691 = vmatpush1.msra.mxu0 0.0
    %692 = vmatprep.subr.mxu0 0.0
    %693 = vmatpush1.msra.mxu0 0.0
    %694 = vmatprep.subr.mxu0 0.0
    %695 = vmatpush1.msra.mxu0 0.0
    %696 = vmatprep.subr.mxu0 0.0
    %697 = vmatpush1.msra.mxu0 0.0
    %698 = vmatprep.subr.mxu0 0.0
    %699 = vmatpush1.msra.mxu0 0.0
    %700 = vmatprep.subr.mxu0 0.0
    %701 = vmatpush1.msra.mxu0 0.0
    %702 = vmatprep.subr.mxu0 0.0
    %703 = vmatpush1.msra.mxu0 0.0
    %704 = vmatprep.subr.mxu0 0.0
    %705 = vmatpush1.msra.mxu0 0.0
    %706 = vmatprep.subr.mxu0 0.0
    %707 = vmatpush1.msra.mxu0 0.0
    %708 = vmatprep.subr.mxu0 0.0
    %709 = vmatpush1.msra.mxu0 0.0
    %710 = vmatprep.subr.mxu0 0.0
    %711 = vmatpush1.msra.mxu0 0.0
    %712 = vmatprep.mubr.f32.mxu0 0.0
    %713 = vmatmul.mubr.f32.gmra.mrb[0].mxu0 %v646
    %v714 = vpop.f32.mrb[0].mxu0
    %v715 = vadd.f32 0.0, %v714
    %v716 = vpop.f32.mrb[0].mxu0
    %717 = vdwg.mxu0
    %718 = vrot.lane.b32.xlu0 %v128, 56
    %v719 = vpop.permute.xlu0 %718
    %v722 = vsel %vm138, %v641, 0
    %724 = vmatprep.subr.mxu0 0.0
    %725 = vmatpush1.msra.mxu0 %v719
    %726 = vmatprep.subr.mxu0 0.0
    %727 = vmatpush1.msra.mxu0 0.0
    %728 = vmatprep.subr.mxu0 0.0
    %729 = vmatpush1.msra.mxu0 0.0
    %730 = vmatprep.subr.mxu0 0.0
    %731 = vmatpush1.msra.mxu0 0.0
    %732 = vmatprep.subr.mxu0 0.0
    %733 = vmatpush1.msra.mxu0 0.0
    %734 = vmatprep.subr.mxu0 0.0
    %735 = vmatpush1.msra.mxu0 0.0
    %736 = vmatprep.subr.mxu0 0.0
    %737 = vmatpush1.msra.mxu0 0.0
    %738 = vmatprep.subr.mxu0 0.0
    %739 = vmatpush1.msra.mxu0 0.0
    %740 = vmatprep.subr.mxu0 0.0
    %741 = vmatpush1.msra.mxu0 0.0
    %742 = vmatprep.subr.mxu0 0.0
    %743 = vmatpush1.msra.mxu0 0.0
    %744 = vmatprep.subr.mxu0 0.0
    %745 = vmatpush1.msra.mxu0 0.0
    %746 = vmatprep.subr.mxu0 0.0
    %747 = vmatpush1.msra.mxu0 0.0
    %748 = vmatprep.subr.mxu0 0.0
    %749 = vmatpush1.msra.mxu0 0.0
    %750 = vmatprep.subr.mxu0 0.0
    %751 = vmatpush1.msra.mxu0 0.0
    %752 = vmatprep.subr.mxu0 0.0
    %753 = vmatpush1.msra.mxu0 0.0
    %754 = vmatprep.subr.mxu0 0.0
    %755 = vmatpush1.msra.mxu0 0.0
    %756 = vmatprep.subr.mxu0 0.0
    %757 = vmatpush1.msra.mxu0 0.0
    %758 = vmatprep.subr.mxu0 0.0
    %759 = vmatpush1.msra.mxu0 0.0
    %760 = vmatprep.subr.mxu0 0.0
    %761 = vmatpush1.msra.mxu0 0.0
    %762 = vmatprep.subr.mxu0 0.0
    %763 = vmatpush1.msra.mxu0 0.0
    %764 = vmatprep.subr.mxu0 0.0
    %765 = vmatpush1.msra.mxu0 0.0
    %766 = vmatprep.subr.mxu0 0.0
    %767 = vmatpush1.msra.mxu0 0.0
    %768 = vmatprep.subr.mxu0 0.0
    %769 = vmatpush1.msra.mxu0 0.0
    %770 = vmatprep.subr.mxu0 0.0
    %771 = vmatpush1.msra.mxu0 0.0
    %772 = vmatprep.subr.mxu0 0.0
    %773 = vmatpush1.msra.mxu0 0.0
    %774 = vmatprep.subr.mxu0 0.0
    %775 = vmatpush1.msra.mxu0 0.0
    %776 = vmatprep.subr.mxu0 0.0
    %777 = vmatpush1.msra.mxu0 0.0
    %778 = vmatprep.subr.mxu0 0.0
    %779 = vmatpush1.msra.mxu0 0.0
    %780 = vmatprep.subr.mxu0 0.0
    %781 = vmatpush1.msra.mxu0 0.0
    %782 = vmatprep.subr.mxu0 0.0
    %783 = vmatpush1.msra.mxu0 0.0
    %784 = vmatprep.subr.mxu0 0.0
    %785 = vmatpush1.msra.mxu0 0.0
    %786 = vmatprep.subr.mxu0 0.0
    %787 = vmatpush1.msra.mxu0 0.0
    %788 = vmatprep.mubr.f32.mxu0 0.0
    %789 = vmatmul.mubr.f32.gmra.mrb[0].mxu0 %v722
    %v790 = vpop.f32.mrb[0].mxu0
    %v791 = vadd.f32 0.0, %v790
    %v792 = vpop.f32.mrb[0].mxu0
    %793 = vdwg.mxu0
    %v795 = vsel %vm138, %v715, 0
    %v798 = vsel %vm138, %v791, 0
    %800 = vmatprep.subr.mxu0 0.0
    %801 = vmatpush1.msra.mxu0 %v132
    %802 = vmatprep.subr.mxu0 0.0
    %803 = vmatpush1.msra.mxu0 0.0
    %804 = vmatprep.subr.mxu0 0.0
    %805 = vmatpush1.msra.mxu0 0.0
    %806 = vmatprep.subr.mxu0 0.0
    %807 = vmatpush1.msra.mxu0 0.0
    %808 = vmatprep.subr.mxu0 0.0
    %809 = vmatpush1.msra.mxu0 0.0
    %810 = vmatprep.subr.mxu0 0.0
    %811 = vmatpush1.msra.mxu0 0.0
    %812 = vmatprep.subr.mxu0 0.0
    %813 = vmatpush1.msra.mxu0 0.0
    %814 = vmatprep.subr.mxu0 0.0
    %815 = vmatpush1.msra.mxu0 0.0
    %816 = vmatprep.subr.mxu0 0.0
    %817 = vmatpush1.msra.mxu0 0.0
    %818 = vmatprep.subr.mxu0 0.0
    %819 = vmatpush1.msra.mxu0 0.0
    %820 = vmatprep.subr.mxu0 0.0
    %821 = vmatpush1.msra.mxu0 0.0
    %822 = vmatprep.subr.mxu0 0.0
    %823 = vmatpush1.msra.mxu0 0.0
    %824 = vmatprep.subr.mxu0 0.0
    %825 = vmatpush1.msra.mxu0 0.0
    %826 = vmatprep.subr.mxu0 0.0
    %827 = vmatpush1.msra.mxu0 0.0
    %828 = vmatprep.subr.mxu0 0.0
    %829 = vmatpush1.msra.mxu0 0.0
    %830 = vmatprep.subr.mxu0 0.0
    %831 = vmatpush1.msra.mxu0 0.0
    %832 = vmatprep.subr.mxu0 0.0
    %833 = vmatpush1.msra.mxu0 0.0
    %834 = vmatprep.subr.mxu0 0.0
    %835 = vmatpush1.msra.mxu0 0.0
    %836 = vmatprep.subr.mxu0 0.0
    %837 = vmatpush1.msra.mxu0 0.0
    %838 = vmatprep.subr.mxu0 0.0
    %839 = vmatpush1.msra.mxu0 0.0
    %840 = vmatprep.subr.mxu0 0.0
    %841 = vmatpush1.msra.mxu0 0.0
    %842 = vmatprep.subr.mxu0 0.0
    %843 = vmatpush1.msra.mxu0 0.0
    %844 = vmatprep.subr.mxu0 0.0
    %845 = vmatpush1.msra.mxu0 0.0
    %846 = vmatprep.subr.mxu0 0.0
    %847 = vmatpush1.msra.mxu0 0.0
    %848 = vmatprep.subr.mxu0 0.0
    %849 = vmatpush1.msra.mxu0 0.0
    %850 = vmatprep.subr.mxu0 0.0
    %851 = vmatpush1.msra.mxu0 0.0
    %852 = vmatprep.subr.mxu0 0.0
    %853 = vmatpush1.msra.mxu0 0.0
    %854 = vmatprep.subr.mxu0 0.0
    %855 = vmatpush1.msra.mxu0 0.0
    %856 = vmatprep.subr.mxu0 0.0
    %857 = vmatpush1.msra.mxu0 0.0
    %858 = vmatprep.subr.mxu0 0.0
    %859 = vmatpush1.msra.mxu0 0.0
    %860 = vmatprep.subr.mxu0 0.0
    %861 = vmatpush1.msra.mxu0 0.0
    %862 = vmatprep.subr.mxu0 0.0
    %863 = vmatpush1.msra.mxu0 0.0
    %864 = vmatprep.mubr.f32.mxu0 0.0
    %865 = vmatmul.mubr.f32.gmra.mrb[0].mxu0 %v795
    %v866 = vpop.f32.mrb[0].mxu0
    %v867 = vadd.f32 0.0, %v866
    %v868 = vpop.f32.mrb[0].mxu0
    %869 = vmatprep.mubr.f32.mxu0 0.0
    %870 = vmatmul.mubr.f32.gmra.mrb[0].mxu0 %v798
    %v871 = vpop.f32.mrb[0].mxu0
    %v872 = vadd.f32 0.0, %v871
    %v873 = vpop.f32.mrb[0].mxu0
    %874 = vdwg.mxu0
    %v876 = vsel %vm138, %v385, 0
    %v879 = vsel %vm138, %v461, 0
    %881 = vmatprep.subr.mxu0 0.0
    %882 = vmatpush1.msra.mxu0 %v131
    %883 = vmatprep.subr.mxu0 0.0
    %884 = vmatpush1.msra.mxu0 0.0
    %885 = vmatprep.subr.mxu0 0.0
    %886 = vmatpush1.msra.mxu0 0.0
    %887 = vmatprep.subr.mxu0 0.0
    %888 = vmatpush1.msra.mxu0 0.0
    %889 = vmatprep.subr.mxu0 0.0
    %890 = vmatpush1.msra.mxu0 0.0
    %891 = vmatprep.subr.mxu0 0.0
    %892 = vmatpush1.msra.mxu0 0.0
    %893 = vmatprep.subr.mxu0 0.0
    %894 = vmatpush1.msra.mxu0 0.0
    %895 = vmatprep.subr.mxu0 0.0
    %896 = vmatpush1.msra.mxu0 0.0
    %897 = vmatprep.subr.mxu0 0.0
    %898 = vmatpush1.msra.mxu0 0.0
    %899 = vmatprep.subr.mxu0 0.0
    %900 = vmatpush1.msra.mxu0 0.0
    %901 = vmatprep.subr.mxu0 0.0
    %902 = vmatpush1.msra.mxu0 0.0
    %903 = vmatprep.subr.mxu0 0.0
    %904 = vmatpush1.msra.mxu0 0.0
    %905 = vmatprep.subr.mxu0 0.0
    %906 = vmatpush1.msra.mxu0 0.0
    %907 = vmatprep.subr.mxu0 0.0
    %908 = vmatpush1.msra.mxu0 0.0
    %909 = vmatprep.subr.mxu0 0.0
    %910 = vmatpush1.msra.mxu0 0.0
    %911 = vmatprep.subr.mxu0 0.0
    %912 = vmatpush1.msra.mxu0 0.0
    %913 = vmatprep.subr.mxu0 0.0
    %914 = vmatpush1.msra.mxu0 0.0
    %915 = vmatprep.subr.mxu0 0.0
    %916 = vmatpush1.msra.mxu0 0.0
    %917 = vmatprep.subr.mxu0 0.0
    %918 = vmatpush1.msra.mxu0 0.0
    %919 = vmatprep.subr.mxu0 0.0
    %920 = vmatpush1.msra.mxu0 0.0
    %921 = vmatprep.subr.mxu0 0.0
    %922 = vmatpush1.msra.mxu0 0.0
    %923 = vmatprep.subr.mxu0 0.0
    %924 = vmatpush1.msra.mxu0 0.0
    %925 = vmatprep.subr.mxu0 0.0
    %926 = vmatpush1.msra.mxu0 0.0
    %927 = vmatprep.subr.mxu0 0.0
    %928 = vmatpush1.msra.mxu0 0.0
    %929 = vmatprep.subr.mxu0 0.0
    %930 = vmatpush1.msra.mxu0 0.0
    %931 = vmatprep.subr.mxu0 0.0
    %932 = vmatpush1.msra.mxu0 0.0
    %933 = vmatprep.subr.mxu0 0.0
    %934 = vmatpush1.msra.mxu0 0.0
    %935 = vmatprep.subr.mxu0 0.0
    %936 = vmatpush1.msra.mxu0 0.0
    %937 = vmatprep.subr.mxu0 0.0
    %938 = vmatpush1.msra.mxu0 0.0
    %939 = vmatprep.subr.mxu0 0.0
    %940 = vmatpush1.msra.mxu0 0.0
    %941 = vmatprep.subr.mxu0 0.0
    %942 = vmatpush1.msra.mxu0 0.0
    %943 = vmatprep.subr.mxu0 0.0
    %944 = vmatpush1.msra.mxu0 0.0
    %945 = vmatprep.mubr.f32.mxu0 0.0
    %946 = vmatmul.mubr.f32.gmra.mrb[0].mxu0 %v876
    %v947 = vpop.f32.mrb[0].mxu0
    %v948 = vadd.f32 %v867, %v947
    %v949 = vpop.f32.mrb[0].mxu0
    %950 = vmatprep.mubr.f32.mxu0 0.0
    %951 = vmatmul.mubr.f32.gmra.mrb[0].mxu0 %v879
    %v952 = vpop.f32.mrb[0].mxu0
    %v953 = vadd.f32 %v872, %v952
    %v954 = vpop.f32.mrb[0].mxu0
    %955 = vdwg.mxu0
    %956 = vrot.lane.b32.xlu0 %v123, 112
    %v957 = vpop.permute.xlu0 %956
    %958 = vrot.lane.b32.xlu0 %v123, 80
    %v959 = vpop.permute.xlu0 %958
    %v960 = vsel %vm138, %v957, 0
    %v962 = vsel %vm138, %v959, 0
    %964 = vmatprep.subr.mxu0 0.0
    %965 = vmatpush1.xpose.msra.mxu0 %v962
    %966 = vmatprep.subr.mxu0 0.0
    %967 = vmatpush1.xpose.msra.mxu0 0.0
    %968 = vmatprep.subr.mxu0 0.0
    %969 = vmatpush1.xpose.msra.mxu0 0.0
    %970 = vmatprep.subr.mxu0 0.0
    %971 = vmatpush1.xpose.msra.mxu0 0.0
    %972 = vmatprep.subr.mxu0 0.0
    %973 = vmatpush1.xpose.msra.mxu0 0.0
    %974 = vmatprep.subr.mxu0 0.0
    %975 = vmatpush1.xpose.msra.mxu0 0.0
    %976 = vmatprep.subr.mxu0 0.0
    %977 = vmatpush1.xpose.msra.mxu0 0.0
    %978 = vmatprep.subr.mxu0 0.0
    %979 = vmatpush1.xpose.msra.mxu0 0.0
    %980 = vmatprep.subr.mxu0 0.0
    %981 = vmatpush1.xpose.msra.mxu0 0.0
    %982 = vmatprep.subr.mxu0 0.0
    %983 = vmatpush1.xpose.msra.mxu0 0.0
    %984 = vmatprep.subr.mxu0 0.0
    %985 = vmatpush1.xpose.msra.mxu0 0.0
    %986 = vmatprep.subr.mxu0 0.0
    %987 = vmatpush1.xpose.msra.mxu0 0.0
    %988 = vmatprep.subr.mxu0 0.0
    %989 = vmatpush1.xpose.msra.mxu0 0.0
    %990 = vmatprep.subr.mxu0 0.0
    %991 = vmatpush1.xpose.msra.mxu0 0.0
    %992 = vmatprep.subr.mxu0 0.0
    %993 = vmatpush1.xpose.msra.mxu0 0.0
    %994 = vmatprep.subr.mxu0 0.0
    %995 = vmatpush1.xpose.msra.mxu0 0.0
    %996 = vmatprep.subr.mxu0 0.0
    %997 = vmatpush1.xpose.msra.mxu0 0.0
    %998 = vmatprep.subr.mxu0 0.0
    %999 = vmatpush1.xpose.msra.mxu0 0.0
    %1000 = vmatprep.subr.mxu0 0.0
    %1001 = vmatpush1.xpose.msra.mxu0 0.0
    %1002 = vmatprep.subr.mxu0 0.0
    %1003 = vmatpush1.xpose.msra.mxu0 0.0
    %1004 = vmatprep.subr.mxu0 0.0
    %1005 = vmatpush1.xpose.msra.mxu0 0.0
    %1006 = vmatprep.subr.mxu0 0.0
    %1007 = vmatpush1.xpose.msra.mxu0 0.0
    %1008 = vmatprep.subr.mxu0 0.0
    %1009 = vmatpush1.xpose.msra.mxu0 0.0
    %1010 = vmatprep.subr.mxu0 0.0
    %1011 = vmatpush1.xpose.msra.mxu0 0.0
    %1012 = vmatprep.subr.mxu0 0.0
    %1013 = vmatpush1.xpose.msra.mxu0 0.0
    %1014 = vmatprep.subr.mxu0 0.0
    %1015 = vmatpush1.xpose.msra.mxu0 0.0
    %1016 = vmatprep.subr.mxu0 0.0
    %1017 = vmatpush1.xpose.msra.mxu0 0.0
    %1018 = vmatprep.subr.mxu0 0.0
    %1019 = vmatpush1.xpose.msra.mxu0 0.0
    %1020 = vmatprep.subr.mxu0 0.0
    %1021 = vmatpush1.xpose.msra.mxu0 0.0
    %1022 = vmatprep.subr.mxu0 0.0
    %1023 = vmatpush1.xpose.msra.mxu0 0.0
    %1024 = vmatprep.subr.mxu0 0.0
    %1025 = vmatpush1.xpose.msra.mxu0 0.0
    %1026 = vmatprep.subr.mxu0 0.0
    %1027 = vmatpush1.xpose.msra.mxu0 0.0
    %1028 = vmatprep.mubr.f32.mxu0 0.0
    %1029 = vmatmul.mubr.f32.gmra.mrb[0].mxu0 %v960
    %v1030 = vpop.f32.mrb[0].mxu0
    %v1031 = vadd.f32 0.0, %v1030
    %v1032 = vpop.f32.mrb[0].mxu0
    %1033 = vdwg.mxu0
    %1034 = vrot.lane.b32.xlu0 %v128, 112
    %v1035 = vpop.permute.xlu0 %1034
    %1036 = vrot.lane.b32.xlu0 %v128, 80
    %v1037 = vpop.permute.xlu0 %1036
    %v1038 = vsel %vm138, %v1035, 0
    %v1040 = vsel %vm138, %v1037, 0
    %1042 = vmatprep.subr.mxu0 0.0
    %1043 = vmatpush1.xpose.msra.mxu0 %v1040
    %1044 = vmatprep.subr.mxu0 0.0
    %1045 = vmatpush1.xpose.msra.mxu0 0.0
    %1046 = vmatprep.subr.mxu0 0.0
    %1047 = vmatpush1.xpose.msra.mxu0 0.0
    %1048 = vmatprep.subr.mxu0 0.0
    %1049 = vmatpush1.xpose.msra.mxu0 0.0
    %1050 = vmatprep.subr.mxu0 0.0
    %1051 = vmatpush1.xpose.msra.mxu0 0.0
    %1052 = vmatprep.subr.mxu0 0.0
    %1053 = vmatpush1.xpose.msra.mxu0 0.0
    %1054 = vmatprep.subr.mxu0 0.0
    %1055 = vmatpush1.xpose.msra.mxu0 0.0
    %1056 = vmatprep.subr.mxu0 0.0
    %1057 = vmatpush1.xpose.msra.mxu0 0.0
    %1058 = vmatprep.subr.mxu0 0.0
    %1059 = vmatpush1.xpose.msra.mxu0 0.0
    %1060 = vmatprep.subr.mxu0 0.0
    %1061 = vmatpush1.xpose.msra.mxu0 0.0
    %1062 = vmatprep.subr.mxu0 0.0
    %1063 = vmatpush1.xpose.msra.mxu0 0.0
    %1064 = vmatprep.subr.mxu0 0.0
    %1065 = vmatpush1.xpose.msra.mxu0 0.0
    %1066 = vmatprep.subr.mxu0 0.0
    %1067 = vmatpush1.xpose.msra.mxu0 0.0
    %1068 = vmatprep.subr.mxu0 0.0
    %1069 = vmatpush1.xpose.msra.mxu0 0.0
    %1070 = vmatprep.subr.mxu0 0.0
    %1071 = vmatpush1.xpose.msra.mxu0 0.0
    %1072 = vmatprep.subr.mxu0 0.0
    %1073 = vmatpush1.xpose.msra.mxu0 0.0
    %1074 = vmatprep.subr.mxu0 0.0
    %1075 = vmatpush1.xpose.msra.mxu0 0.0
    %1076 = vmatprep.subr.mxu0 0.0
    %1077 = vmatpush1.xpose.msra.mxu0 0.0
    %1078 = vmatprep.subr.mxu0 0.0
    %1079 = vmatpush1.xpose.msra.mxu0 0.0
    %1080 = vmatprep.subr.mxu0 0.0
    %1081 = vmatpush1.xpose.msra.mxu0 0.0
    %1082 = vmatprep.subr.mxu0 0.0
    %1083 = vmatpush1.xpose.msra.mxu0 0.0
    %1084 = vmatprep.subr.mxu0 0.0
    %1085 = vmatpush1.xpose.msra.mxu0 0.0
    %1086 = vmatprep.subr.mxu0 0.0
    %1087 = vmatpush1.xpose.msra.mxu0 0.0
    %1088 = vmatprep.subr.mxu0 0.0
    %1089 = vmatpush1.xpose.msra.mxu0 0.0
    %1090 = vmatprep.subr.mxu0 0.0
    %1091 = vmatpush1.xpose.msra.mxu0 0.0
    %1092 = vmatprep.subr.mxu0 0.0
    %1093 = vmatpush1.xpose.msra.mxu0 0.0
    %1094 = vmatprep.subr.mxu0 0.0
    %1095 = vmatpush1.xpose.msra.mxu0 0.0
    %1096 = vmatprep.subr.mxu0 0.0
    %1097 = vmatpush1.xpose.msra.mxu0 0.0
    %1098 = vmatprep.subr.mxu0 0.0
    %1099 = vmatpush1.xpose.msra.mxu0 0.0
    %1100 = vmatprep.subr.mxu0 0.0
    %1101 = vmatpush1.xpose.msra.mxu0 0.0
    %1102 = vmatprep.subr.mxu0 0.0
    %1103 = vmatpush1.xpose.msra.mxu0 0.0
    %1104 = vmatprep.subr.mxu0 0.0
    %1105 = vmatpush1.xpose.msra.mxu0 0.0
    %1106 = vmatprep.mubr.f32.mxu0 0.0
    %1107 = vmatmul.mubr.f32.gmra.mrb[0].mxu0 %v1038
    %v1108 = vpop.f32.mrb[0].mxu0
    %v1109 = vadd.f32 0.0, %v1108
    %v1110 = vpop.f32.mrb[0].mxu0
    %1111 = vdwg.mxu0
    %v1112 = vsel %vm138, %v1031, -inf
    %1113 = vmax.xlane.f32.xlu0 %v1112
    %v1114 = vpop.xlane.xlu0 %1113
    %v1115 = vsel %vm138, %v1109, -inf
    %1116 = vmax.xlane.f32.xlu0 %v1115
    %v1117 = vpop.xlane.xlu0 %1116
    %v1118 = vsub.f32 %v1031, %v1114
    %v1119 = vsub.f32 %v1109, %v1117
    %v1120 = vmul.f32 %v1118, 1.442695
    %v1121 = vpow.pop %v1120
    %v1122 = vmul.f32 %v1119, 1.442695
    %v1123 = vpow.pop %v1122
    %v1124 = vsel %vm138, %v1121, 0.0
    %1125 = vadd.xlane.f32.xlu0 %v1124
    %v1126 = vpop.xlane.xlu0 %1125
    %v1127 = vsel %vm138, %v1123, 0.0
    %1128 = vadd.xlane.f32.xlu0 %v1127
    %v1129 = vpop.xlane.xlu0 %1128
    %v1130 = vrcp.pop %v1126
    %v1131 = vmul.f32 %v1121, %v1130
    %v1132 = vrcp.pop %v1129
    %v1133 = vmul.f32 %v1123, %v1132
    %1134 = vrot.lane.b32.xlu0 %v123, 48
    %v1135 = vpop.permute.xlu0 %1134
    %v1138 = vsel %vm138, %v1131, 0
    %1140 = vmatprep.subr.mxu0 0.0
    %1141 = vmatpush1.msra.mxu0 %v1135
    %1142 = vmatprep.subr.mxu0 0.0
    %1143 = vmatpush1.msra.mxu0 0.0
    %1144 = vmatprep.subr.mxu0 0.0
    %1145 = vmatpush1.msra.mxu0 0.0
    %1146 = vmatprep.subr.mxu0 0.0
    %1147 = vmatpush1.msra.mxu0 0.0
    %1148 = vmatprep.subr.mxu0 0.0
    %1149 = vmatpush1.msra.mxu0 0.0
    %1150 = vmatprep.subr.mxu0 0.0
    %1151 = vmatpush1.msra.mxu0 0.0
    %1152 = vmatprep.subr.mxu0 0.0
    %1153 = vmatpush1.msra.mxu0 0.0
    %1154 = vmatprep.subr.mxu0 0.0
    %1155 = vmatpush1.msra.mxu0 0.0
    %1156 = vmatprep.subr.mxu0 0.0
    %1157 = vmatpush1.msra.mxu0 0.0
    %1158 = vmatprep.subr.mxu0 0.0
    %1159 = vmatpush1.msra.mxu0 0.0
    %1160 = vmatprep.subr.mxu0 0.0
    %1161 = vmatpush1.msra.mxu0 0.0
    %1162 = vmatprep.subr.mxu0 0.0
    %1163 = vmatpush1.msra.mxu0 0.0
    %1164 = vmatprep.subr.mxu0 0.0
    %1165 = vmatpush1.msra.mxu0 0.0
    %1166 = vmatprep.subr.mxu0 0.0
    %1167 = vmatpush1.msra.mxu0 0.0
    %1168 = vmatprep.subr.mxu0 0.0
    %1169 = vmatpush1.msra.mxu0 0.0
    %1170 = vmatprep.subr.mxu0 0.0
    %1171 = vmatpush1.msra.mxu0 0.0
    %1172 = vmatprep.subr.mxu0 0.0
    %1173 = vmatpush1.msra.mxu0 0.0
    %1174 = vmatprep.subr.mxu0 0.0
    %1175 = vmatpush1.msra.mxu0 0.0
    %1176 = vmatprep.subr.mxu0 0.0
    %1177 = vmatpush1.msra.mxu0 0.0
    %1178 = vmatprep.subr.mxu0 0.0
    %1179 = vmatpush1.msra.mxu0 0.0
    %1180 = vmatprep.subr.mxu0 0.0
    %1181 = vmatpush1.msra.mxu0 0.0
    %1182 = vmatprep.subr.mxu0 0.0
    %1183 = vmatpush1.msra.mxu0 0.0
    %1184 = vmatprep.subr.mxu0 0.0
    %1185 = vmatpush1.msra.mxu0 0.0
    %1186 = vmatprep.subr.mxu0 0.0
    %1187 = vmatpush1.msra.mxu0 0.0
    %1188 = vmatprep.subr.mxu0 0.0
    %1189 = vmatpush1.msra.mxu0 0.0
    %1190 = vmatprep.subr.mxu0 0.0
    %1191 = vmatpush1.msra.mxu0 0.0
    %1192 = vmatprep.subr.mxu0 0.0
    %1193 = vmatpush1.msra.mxu0 0.0
    %1194 = vmatprep.subr.mxu0 0.0
    %1195 = vmatpush1.msra.mxu0 0.0
    %1196 = vmatprep.subr.mxu0 0.0
    %1197 = vmatpush1.msra.mxu0 0.0
    %1198 = vmatprep.subr.mxu0 0.0
    %1199 = vmatpush1.msra.mxu0 0.0
    %1200 = vmatprep.subr.mxu0 0.0
    %1201 = vmatpush1.msra.mxu0 0.0
    %1202 = vmatprep.subr.mxu0 0.0
    %1203 = vmatpush1.msra.mxu0 0.0
    %1204 = vmatprep.mubr.f32.mxu0 0.0
    %1205 = vmatmul.mubr.f32.gmra.mrb[0].mxu0 %v1138
    %v1206 = vpop.f32.mrb[0].mxu0
    %v1207 = vadd.f32 0.0, %v1206
    %v1208 = vpop.f32.mrb[0].mxu0
    %1209 = vdwg.mxu0
    %1210 = vrot.lane.b32.xlu0 %v128, 48
    %v1211 = vpop.permute.xlu0 %1210
    %v1214 = vsel %vm138, %v1133, 0
    %1216 = vmatprep.subr.mxu0 0.0
    %1217 = vmatpush1.msra.mxu0 %v1211
    %1218 = vmatprep.subr.mxu0 0.0
    %1219 = vmatpush1.msra.mxu0 0.0
    %1220 = vmatprep.subr.mxu0 0.0
    %1221 = vmatpush1.msra.mxu0 0.0
    %1222 = vmatprep.subr.mxu0 0.0
    %1223 = vmatpush1.msra.mxu0 0.0
    %1224 = vmatprep.subr.mxu0 0.0
    %1225 = vmatpush1.msra.mxu0 0.0
    %1226 = vmatprep.subr.mxu0 0.0
    %1227 = vmatpush1.msra.mxu0 0.0
    %1228 = vmatprep.subr.mxu0 0.0
    %1229 = vmatpush1.msra.mxu0 0.0
    %1230 = vmatprep.subr.mxu0 0.0
    %1231 = vmatpush1.msra.mxu0 0.0
    %1232 = vmatprep.subr.mxu0 0.0
    %1233 = vmatpush1.msra.mxu0 0.0
    %1234 = vmatprep.subr.mxu0 0.0
    %1235 = vmatpush1.msra.mxu0 0.0
    %1236 = vmatprep.subr.mxu0 0.0
    %1237 = vmatpush1.msra.mxu0 0.0
    %1238 = vmatprep.subr.mxu0 0.0
    %1239 = vmatpush1.msra.mxu0 0.0
    %1240 = vmatprep.subr.mxu0 0.0
    %1241 = vmatpush1.msra.mxu0 0.0
    %1242 = vmatprep.subr.mxu0 0.0
    %1243 = vmatpush1.msra.mxu0 0.0
    %1244 = vmatprep.subr.mxu0 0.0
    %1245 = vmatpush1.msra.mxu0 0.0
    %1246 = vmatprep.subr.mxu0 0.0
    %1247 = vmatpush1.msra.mxu0 0.0
    %1248 = vmatprep.subr.mxu0 0.0
    %1249 = vmatpush1.msra.mxu0 0.0
    %1250 = vmatprep.subr.mxu0 0.0
    %1251 = vmatpush1.msra.mxu0 0.0
    %1252 = vmatprep.subr.mxu0 0.0
    %1253 = vmatpush1.msra.mxu0 0.0
    %1254 = vmatprep.subr.mxu0 0.0
    %1255 = vmatpush1.msra.mxu0 0.0
    %1256 = vmatprep.subr.mxu0 0.0
    %1257 = vmatpush1.msra.mxu0 0.0
    %1258 = vmatprep.subr.mxu0 0.0
    %1259 = vmatpush1.msra.mxu0 0.0
    %1260 = vmatprep.subr.mxu0 0.0
    %1261 = vmatpush1.msra.mxu0 0.0
    %1262 = vmatprep.subr.mxu0 0.0
    %1263 = vmatpush1.msra.mxu0 0.0
    %1264 = vmatprep.subr.mxu0 0.0
    %1265 = vmatpush1.msra.mxu0 0.0
    %1266 = vmatprep.subr.mxu0 0.0
    %1267 = vmatpush1.msra.mxu0 0.0
    %1268 = vmatprep.subr.mxu0 0.0
    %1269 = vmatpush1.msra.mxu0 0.0
    %1270 = vmatprep.subr.mxu0 0.0
    %1271 = vmatpush1.msra.mxu0 0.0
    %1272 = vmatprep.subr.mxu0 0.0
    %1273 = vmatpush1.msra.mxu0 0.0
    %1274 = vmatprep.subr.mxu0 0.0
    %1275 = vmatpush1.msra.mxu0 0.0
    %1276 = vmatprep.subr.mxu0 0.0
    %1277 = vmatpush1.msra.mxu0 0.0
    %1278 = vmatprep.subr.mxu0 0.0
    %1279 = vmatpush1.msra.mxu0 0.0
    %1280 = vmatprep.mubr.f32.mxu0 0.0
    %1281 = vmatmul.mubr.f32.gmra.mrb[0].mxu0 %v1214
    %v1282 = vpop.f32.mrb[0].mxu0
    %v1283 = vadd.f32 0.0, %v1282
    %v1284 = vpop.f32.mrb[0].mxu0
    %1285 = vdwg.mxu0
    %v1287 = vsel %vm138, %v1207, 0
    %v1290 = vsel %vm138, %v1283, 0
    %1292 = vmatprep.subr.mxu0 0.0
    %1293 = vmatpush1.msra.mxu0 %v133
    %1294 = vmatprep.subr.mxu0 0.0
    %1295 = vmatpush1.msra.mxu0 0.0
    %1296 = vmatprep.subr.mxu0 0.0
    %1297 = vmatpush1.msra.mxu0 0.0
    %1298 = vmatprep.subr.mxu0 0.0
    %1299 = vmatpush1.msra.mxu0 0.0
    %1300 = vmatprep.subr.mxu0 0.0
    %1301 = vmatpush1.msra.mxu0 0.0
    %1302 = vmatprep.subr.mxu0 0.0
    %1303 = vmatpush1.msra.mxu0 0.0
    %1304 = vmatprep.subr.mxu0 0.0
    %1305 = vmatpush1.msra.mxu0 0.0
    %1306 = vmatprep.subr.mxu0 0.0
    %1307 = vmatpush1.msra.mxu0 0.0
    %1308 = vmatprep.subr.mxu0 0.0
    %1309 = vmatpush1.msra.mxu0 0.0
    %1310 = vmatprep.subr.mxu0 0.0
    %1311 = vmatpush1.msra.mxu0 0.0
    %1312 = vmatprep.subr.mxu0 0.0
    %1313 = vmatpush1.msra.mxu0 0.0
    %1314 = vmatprep.subr.mxu0 0.0
    %1315 = vmatpush1.msra.mxu0 0.0
    %1316 = vmatprep.subr.mxu0 0.0
    %1317 = vmatpush1.msra.mxu0 0.0
    %1318 = vmatprep.subr.mxu0 0.0
    %1319 = vmatpush1.msra.mxu0 0.0
    %1320 = vmatprep.subr.mxu0 0.0
    %1321 = vmatpush1.msra.mxu0 0.0
    %1322 = vmatprep.subr.mxu0 0.0
    %1323 = vmatpush1.msra.mxu0 0.0
    %1324 = vmatprep.subr.mxu0 0.0
    %1325 = vmatpush1.msra.mxu0 0.0
    %1326 = vmatprep.subr.mxu0 0.0
    %1327 = vmatpush1.msra.mxu0 0.0
    %1328 = vmatprep.subr.mxu0 0.0
    %1329 = vmatpush1.msra.mxu0 0.0
    %1330 = vmatprep.subr.mxu0 0.0
    %1331 = vmatpush1.msra.mxu0 0.0
    %1332 = vmatprep.subr.mxu0 0.0
    %1333 = vmatpush1.msra.mxu0 0.0
    %1334 = vmatprep.subr.mxu0 0.0
    %1335 = vmatpush1.msra.mxu0 0.0
    %1336 = vmatprep.subr.mxu0 0.0
    %1337 = vmatpush1.msra.mxu0 0.0
    %1338 = vmatprep.subr.mxu0 0.0
    %1339 = vmatpush1.msra.mxu0 0.0
    %1340 = vmatprep.subr.mxu0 0.0
    %1341 = vmatpush1.msra.mxu0 0.0
    %1342 = vmatprep.subr.mxu0 0.0
    %1343 = vmatpush1.msra.mxu0 0.0
    %1344 = vmatprep.subr.mxu0 0.0
    %1345 = vmatpush1.msra.mxu0 0.0
    %1346 = vmatprep.subr.mxu0 0.0
    %1347 = vmatpush1.msra.mxu0 0.0
    %1348 = vmatprep.subr.mxu0 0.0
    %1349 = vmatpush1.msra.mxu0 0.0
    %1350 = vmatprep.subr.mxu0 0.0
    %1351 = vmatpush1.msra.mxu0 0.0
    %1352 = vmatprep.subr.mxu0 0.0
    %1353 = vmatpush1.msra.mxu0 0.0
    %1354 = vmatprep.subr.mxu0 0.0
    %1355 = vmatpush1.msra.mxu0 0.0
    %1356 = vmatprep.mubr.f32.mxu0 0.0
    %1357 = vmatmul.mubr.f32.gmra.mrb[0].mxu0 %v1287
    %v1358 = vpop.f32.mrb[0].mxu0
    %v1359 = vadd.f32 0.0, %v1358
    %v1360 = vpop.f32.mrb[0].mxu0
    %1361 = vmatprep.mubr.f32.mxu0 0.0
    %1362 = vmatmul.mubr.f32.gmra.mrb[0].mxu0 %v1290
    %v1363 = vpop.f32.mrb[0].mxu0
    %v1364 = vadd.f32 0.0, %v1363
    %v1365 = vpop.f32.mrb[0].mxu0
    %1366 = vdwg.mxu0
    %v1367 = vadd.f32 %v948, %v1359
    %v1368 = vadd.f32 %v953, %v1364
    %1369 = vrot.lane.b32.xlu0 %v123, 104
    %v1370 = vpop.permute.xlu0 %1369
    %1371 = vrot.lane.b32.xlu0 %v123, 72
    %v1372 = vpop.permute.xlu0 %1371
    %v1373 = vsel %vm138, %v1370, 0
    %v1375 = vsel %vm138, %v1372, 0
    %1377 = vmatprep.subr.mxu0 0.0
    %1378 = vmatpush1.xpose.msra.mxu0 %v1375
    %1379 = vmatprep.subr.mxu0 0.0
    %1380 = vmatpush1.xpose.msra.mxu0 0.0
    %1381 = vmatprep.subr.mxu0 0.0
    %1382 = vmatpush1.xpose.msra.mxu0 0.0
    %1383 = vmatprep.subr.mxu0 0.0
    %1384 = vmatpush1.xpose.msra.mxu0 0.0
    %1385 = vmatprep.subr.mxu0 0.0
    %1386 = vmatpush1.xpose.msra.mxu0 0.0
    %1387 = vmatprep.subr.mxu0 0.0
    %1388 = vmatpush1.xpose.msra.mxu0 0.0
    %1389 = vmatprep.subr.mxu0 0.0
    %1390 = vmatpush1.xpose.msra.mxu0 0.0
    %1391 = vmatprep.subr.mxu0 0.0
    %1392 = vmatpush1.xpose.msra.mxu0 0.0
    %1393 = vmatprep.subr.mxu0 0.0
    %1394 = vmatpush1.xpose.msra.mxu0 0.0
    %1395 = vmatprep.subr.mxu0 0.0
    %1396 = vmatpush1.xpose.msra.mxu0 0.0
    %1397 = vmatprep.subr.mxu0 0.0
    %1398 = vmatpush1.xpose.msra.mxu0 0.0
    %1399 = vmatprep.subr.mxu0 0.0
    %1400 = vmatpush1.xpose.msra.mxu0 0.0
    %1401 = vmatprep.subr.mxu0 0.0
    %1402 = vmatpush1.xpose.msra.mxu0 0.0
    %1403 = vmatprep.subr.mxu0 0.0
    %1404 = vmatpush1.xpose.msra.mxu0 0.0
    %1405 = vmatprep.subr.mxu0 0.0
    %1406 = vmatpush1.xpose.msra.mxu0 0.0
    %1407 = vmatprep.subr.mxu0 0.0
    %1408 = vmatpush1.xpose.msra.mxu0 0.0
    %1409 = vmatprep.subr.mxu0 0.0
    %1410 = vmatpush1.xpose.msra.mxu0 0.0
    %1411 = vmatprep.subr.mxu0 0.0
    %1412 = vmatpush1.xpose.msra.mxu0 0.0
    %1413 = vmatprep.subr.mxu0 0.0
    %1414 = vmatpush1.xpose.msra.mxu0 0.0
    %1415 = vmatprep.subr.mxu0 0.0
    %1416 = vmatpush1.xpose.msra.mxu0 0.0
    %1417 = vmatprep.subr.mxu0 0.0
    %1418 = vmatpush1.xpose.msra.mxu0 0.0
    %1419 = vmatprep.subr.mxu0 0.0
    %1420 = vmatpush1.xpose.msra.mxu0 0.0
    %1421 = vmatprep.subr.mxu0 0.0
    %1422 = vmatpush1.xpose.msra.mxu0 0.0
    %1423 = vmatprep.subr.mxu0 0.0
    %1424 = vmatpush1.xpose.msra.mxu0 0.0
    %1425 = vmatprep.subr.mxu0 0.0
    %1426 = vmatpush1.xpose.msra.mxu0 0.0
    %1427 = vmatprep.subr.mxu0 0.0
    %1428 = vmatpush1.xpose.msra.mxu0 0.0
    %1429 = vmatprep.subr.mxu0 0.0
    %1430 = vmatpush1.xpose.msra.mxu0 0.0
    %1431 = vmatprep.subr.mxu0 0.0
    %1432 = vmatpush1.xpose.msra.mxu0 0.0
    %1433 = vmatprep.subr.mxu0 0.0
    %1434 = vmatpush1.xpose.msra.mxu0 0.0
    %1435 = vmatprep.subr.mxu0 0.0
    %1436 = vmatpush1.xpose.msra.mxu0 0.0
    %1437 = vmatprep.subr.mxu0 0.0
    %1438 = vmatpush1.xpose.msra.mxu0 0.0
    %1439 = vmatprep.subr.mxu0 0.0
    %1440 = vmatpush1.xpose.msra.mxu0 0.0
    %1441 = vmatprep.mubr.f32.mxu0 0.0
    %1442 = vmatmul.mubr.f32.gmra.mrb[0].mxu0 %v1373
    %v1443 = vpop.f32.mrb[0].mxu0
    %v1444 = vadd.f32 0.0, %v1443
    %v1445 = vpop.f32.mrb[0].mxu0
    %1446 = vdwg.mxu0
    %1447 = vrot.lane.b32.xlu0 %v128, 104
    %v1448 = vpop.permute.xlu0 %1447
    %1449 = vrot.lane.b32.xlu0 %v128, 72
    %v1450 = vpop.permute.xlu0 %1449
    %v1451 = vsel %vm138, %v1448, 0
    %v1453 = vsel %vm138, %v1450, 0
    %1455 = vmatprep.subr.mxu0 0.0
    %1456 = vmatpush1.xpose.msra.mxu0 %v1453
    %1457 = vmatprep.subr.mxu0 0.0
    %1458 = vmatpush1.xpose.msra.mxu0 0.0
    %1459 = vmatprep.subr.mxu0 0.0
    %1460 = vmatpush1.xpose.msra.mxu0 0.0
    %1461 = vmatprep.subr.mxu0 0.0
    %1462 = vmatpush1.xpose.msra.mxu0 0.0
    %1463 = vmatprep.subr.mxu0 0.0
    %1464 = vmatpush1.xpose.msra.mxu0 0.0
    %1465 = vmatprep.subr.mxu0 0.0
    %1466 = vmatpush1.xpose.msra.mxu0 0.0
    %1467 = vmatprep.subr.mxu0 0.0
    %1468 = vmatpush1.xpose.msra.mxu0 0.0
    %1469 = vmatprep.subr.mxu0 0.0
    %1470 = vmatpush1.xpose.msra.mxu0 0.0
    %1471 = vmatprep.subr.mxu0 0.0
    %1472 = vmatpush1.xpose.msra.mxu0 0.0
    %1473 = vmatprep.subr.mxu0 0.0
    %1474 = vmatpush1.xpose.msra.mxu0 0.0
    %1475 = vmatprep.subr.mxu0 0.0
    %1476 = vmatpush1.xpose.msra.mxu0 0.0
    %1477 = vmatprep.subr.mxu0 0.0
    %1478 = vmatpush1.xpose.msra.mxu0 0.0
    %1479 = vmatprep.subr.mxu0 0.0
    %1480 = vmatpush1.xpose.msra.mxu0 0.0
    %1481 = vmatprep.subr.mxu0 0.0
    %1482 = vmatpush1.xpose.msra.mxu0 0.0
    %1483 = vmatprep.subr.mxu0 0.0
    %1484 = vmatpush1.xpose.msra.mxu0 0.0
    %1485 = vmatprep.subr.mxu0 0.0
    %1486 = vmatpush1.xpose.msra.mxu0 0.0
    %1487 = vmatprep.subr.mxu0 0.0
    %1488 = vmatpush1.xpose.msra.mxu0 0.0
    %1489 = vmatprep.subr.mxu0 0.0
    %1490 = vmatpush1.xpose.msra.mxu0 0.0
    %1491 = vmatprep.subr.mxu0 0.0
    %1492 = vmatpush1.xpose.msra.mxu0 0.0
    %1493 = vmatprep.subr.mxu0 0.0
    %1494 = vmatpush1.xpose.msra.mxu0 0.0
    %1495 = vmatprep.subr.mxu0 0.0
    %1496 = vmatpush1.xpose.msra.mxu0 0.0
    %1497 = vmatprep.subr.mxu0 0.0
    %1498 = vmatpush1.xpose.msra.mxu0 0.0
    %1499 = vmatprep.subr.mxu0 0.0
    %1500 = vmatpush1.xpose.msra.mxu0 0.0
    %1501 = vmatprep.subr.mxu0 0.0
    %1502 = vmatpush1.xpose.msra.mxu0 0.0
    %1503 = vmatprep.subr.mxu0 0.0
    %1504 = vmatpush1.xpose.msra.mxu0 0.0
    %1505 = vmatprep.subr.mxu0 0.0
    %1506 = vmatpush1.xpose.msra.mxu0 0.0
    %1507 = vmatprep.subr.mxu0 0.0
    %1508 = vmatpush1.xpose.msra.mxu0 0.0
    %1509 = vmatprep.subr.mxu0 0.0
    %1510 = vmatpush1.xpose.msra.mxu0 0.0
    %1511 = vmatprep.subr.mxu0 0.0
    %1512 = vmatpush1.xpose.msra.mxu0 0.0
    %1513 = vmatprep.subr.mxu0 0.0
    %1514 = vmatpush1.xpose.msra.mxu0 0.0
    %1515 = vmatprep.subr.mxu0 0.0
    %1516 = vmatpush1.xpose.msra.mxu0 0.0
    %1517 = vmatprep.subr.mxu0 0.0
    %1518 = vmatpush1.xpose.msra.mxu0 0.0
    %1519 = vmatprep.mubr.f32.mxu0 0.0
    %1520 = vmatmul.mubr.f32.gmra.mrb[0].mxu0 %v1451
    %v1521 = vpop.f32.mrb[0].mxu0
    %v1522 = vadd.f32 0.0, %v1521
    %v1523 = vpop.f32.mrb[0].mxu0
    %1524 = vdwg.mxu0
    %v1525 = vsel %vm138, %v1444, -inf
    %1526 = vmax.xlane.f32.xlu0 %v1525
    %v1527 = vpop.xlane.xlu0 %1526
    %v1528 = vsel %vm138, %v1522, -inf
    %1529 = vmax.xlane.f32.xlu0 %v1528
    %v1530 = vpop.xlane.xlu0 %1529
    %v1531 = vsub.f32 %v1444, %v1527
    %v1532 = vsub.f32 %v1522, %v1530
    %v1533 = vmul.f32 %v1531, 1.442695
    %v1534 = vpow.pop %v1533
    %v1535 = vmul.f32 %v1532, 1.442695
    %v1536 = vpow.pop %v1535
    %v1537 = vsel %vm138, %v1534, 0.0
    %1538 = vadd.xlane.f32.xlu0 %v1537
    %v1539 = vpop.xlane.xlu0 %1538
    %v1540 = vsel %vm138, %v1536, 0.0
    %1541 = vadd.xlane.f32.xlu0 %v1540
    %v1542 = vpop.xlane.xlu0 %1541
    %v1543 = vrcp.pop %v1539
    %v1544 = vmul.f32 %v1534, %v1543
    %v1545 = vrcp.pop %v1542
    %v1546 = vmul.f32 %v1536, %v1545
    %1547 = vrot.lane.b32.xlu0 %v123, 40
    %v1548 = vpop.permute.xlu0 %1547
    %v1551 = vsel %vm138, %v1544, 0
    %1553 = vmatprep.subr.mxu0 0.0
    %1554 = vmatpush1.msra.mxu0 %v1548
    %1555 = vmatprep.subr.mxu0 0.0
    %1556 = vmatpush1.msra.mxu0 0.0
    %1557 = vmatprep.subr.mxu0 0.0
    %1558 = vmatpush1.msra.mxu0 0.0
    %1559 = vmatprep.subr.mxu0 0.0
    %1560 = vmatpush1.msra.mxu0 0.0
    %1561 = vmatprep.subr.mxu0 0.0
    %1562 = vmatpush1.msra.mxu0 0.0
    %1563 = vmatprep.subr.mxu0 0.0
    %1564 = vmatpush1.msra.mxu0 0.0
    %1565 = vmatprep.subr.mxu0 0.0
    %1566 = vmatpush1.msra.mxu0 0.0
    %1567 = vmatprep.subr.mxu0 0.0
    %1568 = vmatpush1.msra.mxu0 0.0
    %1569 = vmatprep.subr.mxu0 0.0
    %1570 = vmatpush1.msra.mxu0 0.0
    %1571 = vmatprep.subr.mxu0 0.0
    %1572 = vmatpush1.msra.mxu0 0.0
    %1573 = vmatprep.subr.mxu0 0.0
    %1574 = vmatpush1.msra.mxu0 0.0
    %1575 = vmatprep.subr.mxu0 0.0
    %1576 = vmatpush1.msra.mxu0 0.0
    %1577 = vmatprep.subr.mxu0 0.0
    %1578 = vmatpush1.msra.mxu0 0.0
    %1579 = vmatprep.subr.mxu0 0.0
    %1580 = vmatpush1.msra.mxu0 0.0
    %1581 = vmatprep.subr.mxu0 0.0
    %1582 = vmatpush1.msra.mxu0 0.0
    %1583 = vmatprep.subr.mxu0 0.0
    %1584 = vmatpush1.msra.mxu0 0.0
    %1585 = vmatprep.subr.mxu0 0.0
    %1586 = vmatpush1.msra.mxu0 0.0
    %1587 = vmatprep.subr.mxu0 0.0
    %1588 = vmatpush1.msra.mxu0 0.0
    %1589 = vmatprep.subr.mxu0 0.0
    %1590 = vmatpush1.msra.mxu0 0.0
    %1591 = vmatprep.subr.mxu0 0.0
    %1592 = vmatpush1.msra.mxu0 0.0
    %1593 = vmatprep.subr.mxu0 0.0
    %1594 = vmatpush1.msra.mxu0 0.0
    %1595 = vmatprep.subr.mxu0 0.0
    %1596 = vmatpush1.msra.mxu0 0.0
    %1597 = vmatprep.subr.mxu0 0.0
    %1598 = vmatpush1.msra.mxu0 0.0
    %1599 = vmatprep.subr.mxu0 0.0
    %1600 = vmatpush1.msra.mxu0 0.0
    %1601 = vmatprep.subr.mxu0 0.0
    %1602 = vmatpush1.msra.mxu0 0.0
    %1603 = vmatprep.subr.mxu0 0.0
    %1604 = vmatpush1.msra.mxu0 0.0
    %1605 = vmatprep.subr.mxu0 0.0
    %1606 = vmatpush1.msra.mxu0 0.0
    %1607 = vmatprep.subr.mxu0 0.0
    %1608 = vmatpush1.msra.mxu0 0.0
    %1609 = vmatprep.subr.mxu0 0.0
    %1610 = vmatpush1.msra.mxu0 0.0
    %1611 = vmatprep.subr.mxu0 0.0
    %1612 = vmatpush1.msra.mxu0 0.0
    %1613 = vmatprep.subr.mxu0 0.0
    %1614 = vmatpush1.msra.mxu0 0.0
    %1615 = vmatprep.subr.mxu0 0.0
    %1616 = vmatpush1.msra.mxu0 0.0
    %1617 = vmatprep.mubr.f32.mxu0 0.0
    %1618 = vmatmul.mubr.f32.gmra.mrb[0].mxu0 %v1551
    %v1619 = vpop.f32.mrb[0].mxu0
    %v1620 = vadd.f32 0.0, %v1619
    %v1621 = vpop.f32.mrb[0].mxu0
    %1622 = vdwg.mxu0
    %1623 = vrot.lane.b32.xlu0 %v128, 40
    %v1624 = vpop.permute.xlu0 %1623
    %v1627 = vsel %vm138, %v1546, 0
    %1629 = vmatprep.subr.mxu0 0.0
    %1630 = vmatpush1.msra.mxu0 %v1624
    %1631 = vmatprep.subr.mxu0 0.0
    %1632 = vmatpush1.msra.mxu0 0.0
    %1633 = vmatprep.subr.mxu0 0.0
    %1634 = vmatpush1.msra.mxu0 0.0
    %1635 = vmatprep.subr.mxu0 0.0
    %1636 = vmatpush1.msra.mxu0 0.0
    %1637 = vmatprep.subr.mxu0 0.0
    %1638 = vmatpush1.msra.mxu0 0.0
    %1639 = vmatprep.subr.mxu0 0.0
    %1640 = vmatpush1.msra.mxu0 0.0
    %1641 = vmatprep.subr.mxu0 0.0
    %1642 = vmatpush1.msra.mxu0 0.0
    %1643 = vmatprep.subr.mxu0 0.0
    %1644 = vmatpush1.msra.mxu0 0.0
    %1645 = vmatprep.subr.mxu0 0.0
    %1646 = vmatpush1.msra.mxu0 0.0
    %1647 = vmatprep.subr.mxu0 0.0
    %1648 = vmatpush1.msra.mxu0 0.0
    %1649 = vmatprep.subr.mxu0 0.0
    %1650 = vmatpush1.msra.mxu0 0.0
    %1651 = vmatprep.subr.mxu0 0.0
    %1652 = vmatpush1.msra.mxu0 0.0
    %1653 = vmatprep.subr.mxu0 0.0
    %1654 = vmatpush1.msra.mxu0 0.0
    %1655 = vmatprep.subr.mxu0 0.0
    %1656 = vmatpush1.msra.mxu0 0.0
    %1657 = vmatprep.subr.mxu0 0.0
    %1658 = vmatpush1.msra.mxu0 0.0
    %1659 = vmatprep.subr.mxu0 0.0
    %1660 = vmatpush1.msra.mxu0 0.0
    %1661 = vmatprep.subr.mxu0 0.0
    %1662 = vmatpush1.msra.mxu0 0.0
    %1663 = vmatprep.subr.mxu0 0.0
    %1664 = vmatpush1.msra.mxu0 0.0
    %1665 = vmatprep.subr.mxu0 0.0
    %1666 = vmatpush1.msra.mxu0 0.0
    %1667 = vmatprep.subr.mxu0 0.0
    %1668 = vmatpush1.msra.mxu0 0.0
    %1669 = vmatprep.subr.mxu0 0.0
    %1670 = vmatpush1.msra.mxu0 0.0
    %1671 = vmatprep.subr.mxu0 0.0
    %1672 = vmatpush1.msra.mxu0 0.0
    %1673 = vmatprep.subr.mxu0 0.0
    %1674 = vmatpush1.msra.mxu0 0.0
    %1675 = vmatprep.subr.mxu0 0.0
    %1676 = vmatpush1.msra.mxu0 0.0
    %1677 = vmatprep.subr.mxu0 0.0
    %1678 = vmatpush1.msra.mxu0 0.0
    %1679 = vmatprep.subr.mxu0 0.0
    %1680 = vmatpush1.msra.mxu0 0.0
    %1681 = vmatprep.subr.mxu0 0.0
    %1682 = vmatpush1.msra.mxu0 0.0
    %1683 = vmatprep.subr.mxu0 0.0
    %1684 = vmatpush1.msra.mxu0 0.0
    %1685 = vmatprep.subr.mxu0 0.0
    %1686 = vmatpush1.msra.mxu0 0.0
    %1687 = vmatprep.subr.mxu0 0.0
    %1688 = vmatpush1.msra.mxu0 0.0
    %1689 = vmatprep.subr.mxu0 0.0
    %1690 = vmatpush1.msra.mxu0 0.0
    %1691 = vmatprep.subr.mxu0 0.0
    %1692 = vmatpush1.msra.mxu0 0.0
    %1693 = vmatprep.mubr.f32.mxu0 0.0
    %1694 = vmatmul.mubr.f32.gmra.mrb[0].mxu0 %v1627
    %v1695 = vpop.f32.mrb[0].mxu0
    %v1696 = vadd.f32 0.0, %v1695
    %v1697 = vpop.f32.mrb[0].mxu0
    %1698 = vdwg.mxu0
    %v1700 = vsel %vm138, %v1620, 0
    %v1703 = vsel %vm138, %v1696, 0
    %1705 = vmatprep.subr.mxu0 0.0
    %1706 = vmatpush1.msra.mxu0 %v134
    %1707 = vmatprep.subr.mxu0 0.0
    %1708 = vmatpush1.msra.mxu0 0.0
    %1709 = vmatprep.subr.mxu0 0.0
    %1710 = vmatpush1.msra.mxu0 0.0
    %1711 = vmatprep.subr.mxu0 0.0
    %1712 = vmatpush1.msra.mxu0 0.0
    %1713 = vmatprep.subr.mxu0 0.0
    %1714 = vmatpush1.msra.mxu0 0.0
    %1715 = vmatprep.subr.mxu0 0.0
    %1716 = vmatpush1.msra.mxu0 0.0
    %1717 = vmatprep.subr.mxu0 0.0
    %1718 = vmatpush1.msra.mxu0 0.0
    %1719 = vmatprep.subr.mxu0 0.0
    %1720 = vmatpush1.msra.mxu0 0.0
    %1721 = vmatprep.subr.mxu0 0.0
    %1722 = vmatpush1.msra.mxu0 0.0
    %1723 = vmatprep.subr.mxu0 0.0
    %1724 = vmatpush1.msra.mxu0 0.0
    %1725 = vmatprep.subr.mxu0 0.0
    %1726 = vmatpush1.msra.mxu0 0.0
    %1727 = vmatprep.subr.mxu0 0.0
    %1728 = vmatpush1.msra.mxu0 0.0
    %1729 = vmatprep.subr.mxu0 0.0
    %1730 = vmatpush1.msra.mxu0 0.0
    %1731 = vmatprep.subr.mxu0 0.0
    %1732 = vmatpush1.msra.mxu0 0.0
    %1733 = vmatprep.subr.mxu0 0.0
    %1734 = vmatpush1.msra.mxu0 0.0
    %1735 = vmatprep.subr.mxu0 0.0
    %1736 = vmatpush1.msra.mxu0 0.0
    %1737 = vmatprep.subr.mxu0 0.0
    %1738 = vmatpush1.msra.mxu0 0.0
    %1739 = vmatprep.subr.mxu0 0.0
    %1740 = vmatpush1.msra.mxu0 0.0
    %1741 = vmatprep.subr.mxu0 0.0
    %1742 = vmatpush1.msra.mxu0 0.0
    %1743 = vmatprep.subr.mxu0 0.0
    %1744 = vmatpush1.msra.mxu0 0.0
    %1745 = vmatprep.subr.mxu0 0.0
    %1746 = vmatpush1.msra.mxu0 0.0
    %1747 = vmatprep.subr.mxu0 0.0
    %1748 = vmatpush1.msra.mxu0 0.0
    %1749 = vmatprep.subr.mxu0 0.0
    %1750 = vmatpush1.msra.mxu0 0.0
    %1751 = vmatprep.subr.mxu0 0.0
    %1752 = vmatpush1.msra.mxu0 0.0
    %1753 = vmatprep.subr.mxu0 0.0
    %1754 = vmatpush1.msra.mxu0 0.0
    %1755 = vmatprep.subr.mxu0 0.0
    %1756 = vmatpush1.msra.mxu0 0.0
    %1757 = vmatprep.subr.mxu0 0.0
    %1758 = vmatpush1.msra.mxu0 0.0
    %1759 = vmatprep.subr.mxu0 0.0
    %1760 = vmatpush1.msra.mxu0 0.0
    %1761 = vmatprep.subr.mxu0 0.0
    %1762 = vmatpush1.msra.mxu0 0.0
    %1763 = vmatprep.subr.mxu0 0.0
    %1764 = vmatpush1.msra.mxu0 0.0
    %1765 = vmatprep.subr.mxu0 0.0
    %1766 = vmatpush1.msra.mxu0 0.0
    %1767 = vmatprep.subr.mxu0 0.0
    %1768 = vmatpush1.msra.mxu0 0.0
    %1769 = vmatprep.mubr.f32.mxu0 0.0
    %1770 = vmatmul.mubr.f32.gmra.mrb[0].mxu0 %v1700
    %v1771 = vpop.f32.mrb[0].mxu0
    %v1772 = vadd.f32 0.0, %v1771
    %v1773 = vpop.f32.mrb[0].mxu0
    %1774 = vmatprep.mubr.f32.mxu0 0.0
    %1775 = vmatmul.mubr.f32.gmra.mrb[0].mxu0 %v1703
    %v1776 = vpop.f32.mrb[0].mxu0
    %v1777 = vadd.f32 0.0, %v1776
    %v1778 = vpop.f32.mrb[0].mxu0
    %1779 = vdwg.mxu0
    %v1780 = vadd.f32 %v1367, %v1772
    %v1781 = vadd.f32 %v1368, %v1777
    %v1782 = vlaneseq
    %v1783 = vshrl.u32 %v1782, 7
    %v1784 = vsub.s32 1, %v1783
    %v1785 = vrot.slane %v40, %v1784
    %v1786 = vadd.f32 %v1780, %v1785
    %v1787 = vadd.f32 %v1781, %v1785
    %v1788 = vadd.f32 %v38, %v1786
    %v1789 = vadd.f32 %v39, %v1787
    %v1790 = vsel %vm49, %v1788, 0.0
    %1791 = vadd.xlane.f32.xlu0 %v1790
    %v1792 = vpop.xlane.xlu0 %1791
    %v1793 = vsel %vm49, %v1789, 0.0
    %1794 = vadd.xlane.f32.xlu0 %v1793
    %v1795 = vpop.xlane.xlu0 %1794
    %v1796 = vrcp.pop 32.0
    %v1797 = vmul.f32 %v1792, %v1796
    %v1798 = vmul.f32 %v1795, %v1796
    %v1799 = vmul.f32 %v1788, %v1788
    %v1800 = vmul.f32 %v1789, %v1789
    %v1801 = vsel %vm49, %v1799, 0.0
    %1802 = vadd.xlane.f32.xlu0 %v1801
    %v1803 = vpop.xlane.xlu0 %1802
    %v1804 = vsel %vm49, %v1800, 0.0
    %1805 = vadd.xlane.f32.xlu0 %v1804
    %v1806 = vpop.xlane.xlu0 %1805
    %v1807 = vmul.f32 %v1803, %v1796
    %v1808 = vmul.f32 %v1806, %v1796
    %v1809 = vmul.f32 %v1797, %v1797
    %v1810 = vmul.f32 %v1798, %v1798
    %v1811 = vsub.f32 %v1807, %v1809
    %v1812 = vsub.f32 %v1808, %v1810
    %v1813 = vsub.f32 %v1788, %v1797
    %v1814 = vsub.f32 %v1789, %v1798
    %v1815 = vadd.f32 %v1811, 1e-05
    %v1816 = vadd.f32 %v1812, 1e-05
    %v1817 = vrsqrt.pop %v1815
    %v1818 = vrsqrt.pop %v1816
    %v1819 = vmul.f32 %v1813, %v1817
    %v1820 = vmul.f32 %v1814, %v1818
    %v1821 = vlaneseq
    %v1822 = vshrl.u32 %v1821, 7
    %v1823 = vsub.s32 4, %v1822
    %v1824 = vrot.slane %v40, %v1823
    %v1825 = vmul.f32 %v1819, %v1824
    %v1826 = vmul.f32 %v1820, %v1824
    %v1827 = vlaneseq
    %v1828 = vshrl.u32 %v1827, 7
    %v1829 = vsub.s32 5, %v1828
    %v1830 = vrot.slane %v40, %v1829
    %v1831 = vadd.f32 %v1825, %v1830
    %v1832 = vadd.f32 %v1826, %v1830
    %v1833 = vld [vmem:[%s3] sm:$0xff]
    %v1834 = vld [vmem:[%s3 + $0x8] sm:$0xff]
    %v1835 = vld [vmem:[%s3 + $0x10] sm:$0xff]
    %v1836 = vld [vmem:[%s3 + $0x18] sm:$0xff]
    %v1837 = vlaneseq
    %v1838 = vshrl.u32 %v1837, 7
    %v1839 = vsub.s32 2, %v1838
    %v1840 = vrot.slane %v40, %v1839
    %v1842 = vsel %vm49, %v1831, 0
    %v1845 = vsel %vm49, %v1832, 0
    %1847 = vmatprep.subr.mxu0 0.0
    %1848 = vmatpush1.msra.mxu0 %v1833
    %1849 = vmatprep.subr.mxu0 0.0
    %1850 = vmatpush1.msra.mxu0 %v1834
    %1851 = vmatprep.subr.mxu0 0.0
    %1852 = vmatpush1.msra.mxu0 %v1835
    %1853 = vmatprep.subr.mxu0 0.0
    %1854 = vmatpush1.msra.mxu0 %v1836
    %1855 = vmatprep.subr.mxu0 0.0
    %1856 = vmatpush1.msra.mxu0 0.0
    %1857 = vmatprep.subr.mxu0 0.0
    %1858 = vmatpush1.msra.mxu0 0.0
    %1859 = vmatprep.subr.mxu0 0.0
    %1860 = vmatpush1.msra.mxu0 0.0
    %1861 = vmatprep.subr.mxu0 0.0
    %1862 = vmatpush1.msra.mxu0 0.0
    %1863 = vmatprep.subr.mxu0 0.0
    %1864 = vmatpush1.msra.mxu0 0.0
    %1865 = vmatprep.subr.mxu0 0.0
    %1866 = vmatpush1.msra.mxu0 0.0
    %1867 = vmatprep.subr.mxu0 0.0
    %1868 = vmatpush1.msra.mxu0 0.0
    %1869 = vmatprep.subr.mxu0 0.0
    %1870 = vmatpush1.msra.mxu0 0.0
    %1871 = vmatprep.subr.mxu0 0.0
    %1872 = vmatpush1.msra.mxu0 0.0
    %1873 = vmatprep.subr.mxu0 0.0
    %1874 = vmatpush1.msra.mxu0 0.0
    %1875 = vmatprep.subr.mxu0 0.0
    %1876 = vmatpush1.msra.mxu0 0.0
    %1877 = vmatprep.subr.mxu0 0.0
    %1878 = vmatpush1.msra.mxu0 0.0
    %1879 = vmatprep.subr.mxu0 0.0
    %1880 = vmatpush1.msra.mxu0 0.0
    %1881 = vmatprep.subr.mxu0 0.0
    %1882 = vmatpush1.msra.mxu0 0.0
    %1883 = vmatprep.subr.mxu0 0.0
    %1884 = vmatpush1.msra.mxu0 0.0
    %1885 = vmatprep.subr.mxu0 0.0
    %1886 = vmatpush1.msra.mxu0 0.0
    %1887 = vmatprep.subr.mxu0 0.0
    %1888 = vmatpush1.msra.mxu0 0.0
    %1889 = vmatprep.subr.mxu0 0.0
    %1890 = vmatpush1.msra.mxu0 0.0
    %1891 = vmatprep.subr.mxu0 0.0
    %1892 = vmatpush1.msra.mxu0 0.0
    %1893 = vmatprep.subr.mxu0 0.0
    %1894 = vmatpush1.msra.mxu0 0.0
    %1895 = vmatprep.subr.mxu0 0.0
    %1896 = vmatpush1.msra.mxu0 0.0
    %1897 = vmatprep.subr.mxu0 0.0
    %1898 = vmatpush1.msra.mxu0 0.0
    %1899 = vmatprep.subr.mxu0 0.0
    %1900 = vmatpush1.msra.mxu0 0.0
    %1901 = vmatprep.subr.mxu0 0.0
    %1902 = vmatpush1.msra.mxu0 0.0
    %1903 = vmatprep.subr.mxu0 0.0
    %1904 = vmatpush1.msra.mxu0 0.0
    %1905 = vmatprep.subr.mxu0 0.0
    %1906 = vmatpush1.msra.mxu0 0.0
    %1907 = vmatprep.subr.mxu0 0.0
    %1908 = vmatpush1.msra.mxu0 0.0
    %1909 = vmatprep.subr.mxu0 0.0
    %1910 = vmatpush1.msra.mxu0 0.0
    %1911 = vmatprep.mubr.f32.mxu0 0.0
    %1912 = vmatmul.mubr.f32.gmra.mrb[0].mxu0 %v1842
    %v1913 = vpop.f32.mrb[0].mxu0
    %v1914 = vadd.f32 %v1840, %v1913
    %v1915 = vpop.f32.mrb[0].mxu0
    %1916 = vmatprep.mubr.f32.mxu0 0.0
    %1917 = vmatmul.mubr.f32.gmra.mrb[0].mxu0 %v1845
    %v1918 = vpop.f32.mrb[0].mxu0
    %v1919 = vadd.f32 %v1840, %v1918
    %v1920 = vpop.f32.mrb[0].mxu0
    %1921 = vdwg.mxu0
    %v1922 = vmax.f32 %v1914, 0.0
    %v1923 = vmax.f32 %v1919, 0.0
    %v1924 = vld [vmem:[%s4] sm:$0xff]
    %v1925 = vld [vmem:[%s4 + $0x8] sm:$0xff]
    %v1926 = vld [vmem:[%s4 + $0x10] sm:$0xff]
    %v1927 = vld [vmem:[%s4 + $0x18] sm:$0xff]
    %v1928 = vld [vmem:[%s4 + $0x20] sm:$0xff]
    %v1929 = vld [vmem:[%s4 + $0x28] sm:$0xff]
    %v1930 = vld [vmem:[%s4 + $0x30] sm:$0xff]
    %v1931 = vld [vmem:[%s4 + $0x38] sm:$0xff]
    %v1932 = vlaneseq
    %v1933 = vshrl.u32 %v1932, 7
    %v1934 = vsub.s32 3, %v1933
    %v1935 = vrot.slane %v40, %v1934
    %vm1936 = vcmask 523264
    %v1938 = vsel %vm1936, %v1922, 0
    %v1941 = vsel %vm1936, %v1923, 0
    %1943 = vmatprep.subr.mxu0 0.0
    %1944 = vmatpush1.msra.mxu0 %v1924
    %1945 = vmatprep.subr.mxu0 0.0
    %1946 = vmatpush1.msra.mxu0 %v1925
    %1947 = vmatprep.subr.mxu0 0.0
    %1948 = vmatpush1.msra.mxu0 %v1926
    %1949 = vmatprep.subr.mxu0 0.0
    %1950 = vmatpush1.msra.mxu0 %v1927
    %1951 = vmatprep.subr.mxu0 0.0
    %1952 = vmatpush1.msra.mxu0 %v1928
    %1953 = vmatprep.subr.mxu0 0.0
    %1954 = vmatpush1.msra.mxu0 %v1929
    %1955 = vmatprep.subr.mxu0 0.0
    %1956 = vmatpush1.msra.mxu0 %v1930
    %1957 = vmatprep.subr.mxu0 0.0
    %1958 = vmatpush1.msra.mxu0 %v1931
    %1959 = vmatprep.subr.mxu0 0.0
    %1960 = vmatpush1.msra.mxu0 0.0
    %1961 = vmatprep.subr.mxu0 0.0
    %1962 = vmatpush1.msra.mxu0 0.0
    %1963 = vmatprep.subr.mxu0 0.0
    %1964 = vmatpush1.msra.mxu0 0.0
    %1965 = vmatprep.subr.mxu0 0.0
    %1966 = vmatpush1.msra.mxu0 0.0
    %1967 = vmatprep.subr.mxu0 0.0
    %1968 = vmatpush1.msra.mxu0 0.0
    %1969 = vmatprep.subr.mxu0 0.0
    %1970 = vmatpush1.msra.mxu0 0.0
    %1971 = vmatprep.subr.mxu0 0.0
    %1972 = vmatpush1.msra.mxu0 0.0
    %1973 = vmatprep.subr.mxu0 0.0
    %1974 = vmatpush1.msra.mxu0 0.0
    %1975 = vmatprep.subr.mxu0 0.0
    %1976 = vmatpush1.msra.mxu0 0.0
    %1977 = vmatprep.subr.mxu0 0.0
    %1978 = vmatpush1.msra.mxu0 0.0
    %1979 = vmatprep.subr.mxu0 0.0
    %1980 = vmatpush1.msra.mxu0 0.0
    %1981 = vmatprep.subr.mxu0 0.0
    %1982 = vmatpush1.msra.mxu0 0.0
    %1983 = vmatprep.subr.mxu0 0.0
    %1984 = vmatpush1.msra.mxu0 0.0
    %1985 = vmatprep.subr.mxu0 0.0
    %1986 = vmatpush1.msra.mxu0 0.0
    %1987 = vmatprep.subr.mxu0 0.0
    %1988 = vmatpush1.msra.mxu0 0.0
    %1989 = vmatprep.subr.mxu0 0.0
    %1990 = vmatpush1.msra.mxu0 0.0
    %1991 = vmatprep.subr.mxu0 0.0
    %1992 = vmatpush1.msra.mxu0 0.0
    %1993 = vmatprep.subr.mxu0 0.0
    %1994 = vmatpush1.msra.mxu0 0.0
    %1995 = vmatprep.subr.mxu0 0.0
    %1996 = vmatpush1.msra.mxu0 0.0
    %1997 = vmatprep.subr.mxu0 0.0
    %1998 = vmatpush1.msra.mxu0 0.0
    %1999 = vmatprep.subr.mxu0 0.0
    %2000 = vmatpush1.msra.mxu0 0.0
    %2001 = vmatprep.subr.mxu0 0.0
    %2002 = vmatpush1.msra.mxu0 0.0
    %2003 = vmatprep.subr.mxu0 0.0
    %2004 = vmatpush1.msra.mxu0 0.0
    %2005 = vmatprep.subr.mxu0 0.0
    %2006 = vmatpush1.msra.mxu0 0.0
    %2007 = vmatprep.mubr.f32.mxu0 0.0
    %2008 = vmatmul.mubr.f32.gmra.mrb[0].mxu0 %v1938
    %v2009 = vpop.f32.mrb[0].mxu0
    %v2010 = vadd.f32 %v1935, %v2009
    %v2011 = vpop.f32.mrb[0].mxu0
    %2012 = vmatprep.mubr.f32.mxu0 0.0
    %2013 = vmatmul.mubr.f32.gmra.mrb[0].mxu0 %v1941
    %v2014 = vpop.f32.mrb[0].mxu0
    %v2015 = vadd.f32 %v1935, %v2014
    %v2016 = vpop.f32.mrb[0].mxu0
    %2017 = vdwg.mxu0
    %v2018 = vadd.f32 %v1831, %v2010
    %v2019 = vadd.f32 %v1832, %v2015
    %v2020 = vsel %vm49, %v2018, 0.0
    %2021 = vadd.xlane.f32.xlu0 %v2020
    %v2022 = vpop.xlane.xlu0 %2021
    %v2023 = vsel %vm49, %v2019, 0.0
    %2024 = vadd.xlane.f32.xlu0 %v2023
    %v2025 = vpop.xlane.xlu0 %2024
    %v2026 = vmul.f32 %v2022, %v1796
    %v2027 = vmul.f32 %v2025, %v1796
    %v2028 = vmul.f32 %v2018, %v2018
    %v2029 = vmul.f32 %v2019, %v2019
    %v2030 = vsel %vm49, %v2028, 0.0
    %2031 = vadd.xlane.f32.xlu0 %v2030
    %v2032 = vpop.xlane.xlu0 %2031
    %v2033 = vsel %vm49, %v2029, 0.0
    %2034 = vadd.xlane.f32.xlu0 %v2033
    %v2035 = vpop.xlane.xlu0 %2034
    %v2036 = vmul.f32 %v2032, %v1796
    %v2037 = vmul.f32 %v2035, %v1796
    %v2038 = vmul.f32 %v2026, %v2026
    %v2039 = vmul.f32 %v2027, %v2027
    %v2040 = vsub.f32 %v2036, %v2038
    %v2041 = vsub.f32 %v2037, %v2039
    %v2042 = vsub.f32 %v2018, %v2026
    %v2043 = vsub.f32 %v2019, %v2027
    %v2044 = vadd.f32 %v2040, 1e-05
    %v2045 = vadd.f32 %v2041, 1e-05
    %v2046 = vrsqrt.pop %v2044
    %v2047 = vrsqrt.pop %v2045
    %v2048 = vmul.f32 %v2042, %v2046
    %v2049 = vmul.f32 %v2043, %v2047
    %v2050 = vlaneseq
    %v2051 = vshrl.u32 %v2050, 7
    %v2052 = vsub.s32 6, %v2051
    %v2053 = vrot.slane %v40, %v2052
    %v2054 = vmul.f32 %v2048, %v2053
    %v2055 = vmul.f32 %v2049, %v2053
    %v2056 = vlaneseq
    %v2057 = vshrl.u32 %v2056, 7
    %v2058 = vsub.s32 7, %v2057
    %v2059 = vrot.slane %v40, %v2058
    %v2060 = vadd.f32 %v2054, %v2059
    %v2061 = vadd.f32 %v2055, %v2059
    %s2062 = scalar_lea.vmem %s5, 8
    %v2063 = vld [vmem:[%s2062] sm:$0xff]
    %s2064 = scalar_lea.vmem %s1, 32
    %v2065 = vld [vmem:[%s2064] sm:$0xff]
    %v2066 = vld [vmem:[%s2064 + $0x8] sm:$0xff]
    %v2067 = vld [vmem:[%s2064 + $0x10] sm:$0xff]
    %v2068 = vld [vmem:[%s2064 + $0x18] sm:$0xff]
    %v2069 = vlaneseq
    %v2070 = vshrl.u32 %v2069, 7
    %v2071 = vsub.s32 0, %v2070
    %v2072 = vrot.slane %v2063, %v2071
    %v2074 = vsel %vm49, %v2060, 0
    %v2077 = vsel %vm49, %v2061, 0
    %2079 = vmatprep.subr.mxu0 0.0
    %2080 = vmatpush1.msra.mxu0 %v2065
    %2081 = vmatprep.subr.mxu0 0.0
    %2082 = vmatpush1.msra.mxu0 %v2066
    %2083 = vmatprep.subr.mxu0 0.0
    %2084 = vmatpush1.msra.mxu0 %v2067
    %2085 = vmatprep.subr.mxu0 0.0
    %2086 = vmatpush1.msra.mxu0 %v2068
    %2087 = vmatprep.subr.mxu0 0.0
    %2088 = vmatpush1.msra.mxu0 0.0
    %2089 = vmatprep.subr.mxu0 0.0
    %2090 = vmatpush1.msra.mxu0 0.0
    %2091 = vmatprep.subr.mxu0 0.0
    %2092 = vmatpush1.msra.mxu0 0.0
    %2093 = vmatprep.subr.mxu0 0.0
    %2094 = vmatpush1.msra.mxu0 0.0
    %2095 = vmatprep.subr.mxu0 0.0
    %2096 = vmatpush1.msra.mxu0 0.0
    %2097 = vmatprep.subr.mxu0 0.0
    %2098 = vmatpush1.msra.mxu0 0.0
    %2099 = vmatprep.subr.mxu0 0.0
    %2100 = vmatpush1.msra.mxu0 0.0
    %2101 = vmatprep.subr.mxu0 0.0
    %2102 = vmatpush1.msra.mxu0 0.0
    %2103 = vmatprep.subr.mxu0 0.0
    %2104 = vmatpush1.msra.mxu0 0.0
    %2105 = vmatprep.subr.mxu0 0.0
    %2106 = vmatpush1.msra.mxu0 0.0
    %2107 = vmatprep.subr.mxu0 0.0
    %2108 = vmatpush1.msra.mxu0 0.0
    %2109 = vmatprep.subr.mxu0 0.0
    %2110 = vmatpush1.msra.mxu0 0.0
    %2111 = vmatprep.subr.mxu0 0.0
    %2112 = vmatpush1.msra.mxu0 0.0
    %2113 = vmatprep.subr.mxu0 0.0
    %2114 = vmatpush1.msra.mxu0 0.0
    %2115 = vmatprep.subr.mxu0 0.0
    %2116 = vmatpush1.msra.mxu0 0.0
    %2117 = vmatprep.subr.mxu0 0.0
    %2118 = vmatpush1.msra.mxu0 0.0
    %2119 = vmatprep.subr.mxu0 0.0
    %2120 = vmatpush1.msra.mxu0 0.0
    %2121 = vmatprep.subr.mxu0 0.0
    %2122 = vmatpush1.msra.mxu0 0.0
    %2123 = vmatprep.subr.mxu0 0.0
    %2124 = vmatpush1.msra.mxu0 0.0
    %2125 = vmatprep.subr.mxu0 0.0
    %2126 = vmatpush1.msra.mxu0 0.0
    %2127 = vmatprep.subr.mxu0 0.0
    %2128 = vmatpush1.msra.mxu0 0.0
    %2129 = vmatprep.subr.mxu0 0.0
    %2130 = vmatpush1.msra.mxu0 0.0
    %2131 = vmatprep.subr.mxu0 0.0
    %2132 = vmatpush1.msra.mxu0 0.0
    %2133 = vmatprep.subr.mxu0 0.0
    %2134 = vmatpush1.msra.mxu0 0.0
    %2135 = vmatprep.subr.mxu0 0.0
    %2136 = vmatpush1.msra.mxu0 0.0
    %2137 = vmatprep.subr.mxu0 0.0
    %2138 = vmatpush1.msra.mxu0 0.0
    %2139 = vmatprep.subr.mxu0 0.0
    %2140 = vmatpush1.msra.mxu0 0.0
    %2141 = vmatprep.subr.mxu0 0.0
    %2142 = vmatpush1.msra.mxu0 0.0
    %2143 = vmatprep.mubr.f32.mxu0 0.0
    %2144 = vmatmul.mubr.f32.gmra.mrb[0].mxu0 %v2074
    %v2145 = vpop.f32.mrb[0].mxu0
    %v2146 = vadd.f32 %v2072, %v2145
    %v2147 = vpop.f32.mrb[0].mxu0
    %2148 = vmatprep.mubr.f32.mxu0 0.0
    %2149 = vmatmul.mubr.f32.gmra.mrb[0].mxu0 %v2077
    %v2150 = vpop.f32.mrb[0].mxu0
    %v2151 = vadd.f32 %v2072, %v2150
    %v2152 = vpop.f32.mrb[0].mxu0
    %2153 = vdwg.mxu0
    %s2154 = scalar_lea.vmem %s2, 32
    %v2155 = vld [vmem:[%s2154] sm:$0xff]
    %v2156 = vld [vmem:[%s2154 + $0x8] sm:$0xff]
    %v2157 = vld [vmem:[%s2154 + $0x10] sm:$0xff]
    %v2158 = vld [vmem:[%s2154 + $0x18] sm:$0xff]
    %2160 = vrot.lane.b32.xlu0 %v2146, 96
    %v2161 = vpop.permute.xlu0 %2160
    %v2162 = vsel %vm138, %v2146, 0
    %v2164 = vsel %vm138, %v2161, 0
    %2166 = vmatprep.subr.mxu0 0.0
    %2167 = vmatpush1.xpose.msra.mxu0 %v2164
    %2168 = vmatprep.subr.mxu0 0.0
    %2169 = vmatpush1.xpose.msra.mxu0 0.0
    %2170 = vmatprep.subr.mxu0 0.0
    %2171 = vmatpush1.xpose.msra.mxu0 0.0
    %2172 = vmatprep.subr.mxu0 0.0
    %2173 = vmatpush1.xpose.msra.mxu0 0.0
    %2174 = vmatprep.subr.mxu0 0.0
    %2175 = vmatpush1.xpose.msra.mxu0 0.0
    %2176 = vmatprep.subr.mxu0 0.0
    %2177 = vmatpush1.xpose.msra.mxu0 0.0
    %2178 = vmatprep.subr.mxu0 0.0
    %2179 = vmatpush1.xpose.msra.mxu0 0.0
    %2180 = vmatprep.subr.mxu0 0.0
    %2181 = vmatpush1.xpose.msra.mxu0 0.0
    %2182 = vmatprep.subr.mxu0 0.0
    %2183 = vmatpush1.xpose.msra.mxu0 0.0
    %2184 = vmatprep.subr.mxu0 0.0
    %2185 = vmatpush1.xpose.msra.mxu0 0.0
    %2186 = vmatprep.subr.mxu0 0.0
    %2187 = vmatpush1.xpose.msra.mxu0 0.0
    %2188 = vmatprep.subr.mxu0 0.0
    %2189 = vmatpush1.xpose.msra.mxu0 0.0
    %2190 = vmatprep.subr.mxu0 0.0
    %2191 = vmatpush1.xpose.msra.mxu0 0.0
    %2192 = vmatprep.subr.mxu0 0.0
    %2193 = vmatpush1.xpose.msra.mxu0 0.0
    %2194 = vmatprep.subr.mxu0 0.0
    %2195 = vmatpush1.xpose.msra.mxu0 0.0
    %2196 = vmatprep.subr.mxu0 0.0
    %2197 = vmatpush1.xpose.msra.mxu0 0.0
    %2198 = vmatprep.subr.mxu0 0.0
    %2199 = vmatpush1.xpose.msra.mxu0 0.0
    %2200 = vmatprep.subr.mxu0 0.0
    %2201 = vmatpush1.xpose.msra.mxu0 0.0
    %2202 = vmatprep.subr.mxu0 0.0
    %2203 = vmatpush1.xpose.msra.mxu0 0.0
    %2204 = vmatprep.subr.mxu0 0.0
    %2205 = vmatpush1.xpose.msra.mxu0 0.0
    %2206 = vmatprep.subr.mxu0 0.0
    %2207 = vmatpush1.xpose.msra.mxu0 0.0
    %2208 = vmatprep.subr.mxu0 0.0
    %2209 = vmatpush1.xpose.msra.mxu0 0.0
    %2210 = vmatprep.subr.mxu0 0.0
    %2211 = vmatpush1.xpose.msra.mxu0 0.0
    %2212 = vmatprep.subr.mxu0 0.0
    %2213 = vmatpush1.xpose.msra.mxu0 0.0
    %2214 = vmatprep.subr.mxu0 0.0
    %2215 = vmatpush1.xpose.msra.mxu0 0.0
    %2216 = vmatprep.subr.mxu0 0.0
    %2217 = vmatpush1.xpose.msra.mxu0 0.0
    %2218 = vmatprep.subr.mxu0 0.0
    %2219 = vmatpush1.xpose.msra.mxu0 0.0
    %2220 = vmatprep.subr.mxu0 0.0
    %2221 = vmatpush1.xpose.msra.mxu0 0.0
    %2222 = vmatprep.subr.mxu0 0.0
    %2223 = vmatpush1.xpose.msra.mxu0 0.0
    %2224 = vmatprep.subr.mxu0 0.0
    %2225 = vmatpush1.xpose.msra.mxu0 0.0
    %2226 = vmatprep.subr.mxu0 0.0
    %2227 = vmatpush1.xpose.msra.mxu0 0.0
    %2228 = vmatprep.subr.mxu0 0.0
    %2229 = vmatpush1.xpose.msra.mxu0 0.0
    %2230 = vmatprep.mubr.f32.mxu0 0.0
    %2231 = vmatmul.mubr.f32.gmra.mrb[0].mxu0 %v2162
    %v2232 = vpop.f32.mrb[0].mxu0
    %v2233 = vadd.f32 0.0, %v2232
    %v2234 = vpop.f32.mrb[0].mxu0
    %2235 = vdwg.mxu0
    %2237 = vrot.lane.b32.xlu0 %v2151, 96
    %v2238 = vpop.permute.xlu0 %2237
    %v2239 = vsel %vm138, %v2151, 0
    %v2241 = vsel %vm138, %v2238, 0
    %2243 = vmatprep.subr.mxu0 0.0
    %2244 = vmatpush1.xpose.msra.mxu0 %v2241
    %2245 = vmatprep.subr.mxu0 0.0
    %2246 = vmatpush1.xpose.msra.mxu0 0.0
    %2247 = vmatprep.subr.mxu0 0.0
    %2248 = vmatpush1.xpose.msra.mxu0 0.0
    %2249 = vmatprep.subr.mxu0 0.0
    %2250 = vmatpush1.xpose.msra.mxu0 0.0
    %2251 = vmatprep.subr.mxu0 0.0
    %2252 = vmatpush1.xpose.msra.mxu0 0.0
    %2253 = vmatprep.subr.mxu0 0.0
    %2254 = vmatpush1.xpose.msra.mxu0 0.0
    %2255 = vmatprep.subr.mxu0 0.0
    %2256 = vmatpush1.xpose.msra.mxu0 0.0
    %2257 = vmatprep.subr.mxu0 0.0
    %2258 = vmatpush1.xpose.msra.mxu0 0.0
    %2259 = vmatprep.subr.mxu0 0.0
    %2260 = vmatpush1.xpose.msra.mxu0 0.0
    %2261 = vmatprep.subr.mxu0 0.0
    %2262 = vmatpush1.xpose.msra.mxu0 0.0
    %2263 = vmatprep.subr.mxu0 0.0
    %2264 = vmatpush1.xpose.msra.mxu0 0.0
    %2265 = vmatprep.subr.mxu0 0.0
    %2266 = vmatpush1.xpose.msra.mxu0 0.0
    %2267 = vmatprep.subr.mxu0 0.0
    %2268 = vmatpush1.xpose.msra.mxu0 0.0
    %2269 = vmatprep.subr.mxu0 0.0
    %2270 = vmatpush1.xpose.msra.mxu0 0.0
    %2271 = vmatprep.subr.mxu0 0.0
    %2272 = vmatpush1.xpose.msra.mxu0 0.0
    %2273 = vmatprep.subr.mxu0 0.0
    %2274 = vmatpush1.xpose.msra.mxu0 0.0
    %2275 = vmatprep.subr.mxu0 0.0
    %2276 = vmatpush1.xpose.msra.mxu0 0.0
    %2277 = vmatprep.subr.mxu0 0.0
    %2278 = vmatpush1.xpose.msra.mxu0 0.0
    %2279 = vmatprep.subr.mxu0 0.0
    %2280 = vmatpush1.xpose.msra.mxu0 0.0
    %2281 = vmatprep.subr.mxu0 0.0
    %2282 = vmatpush1.xpose.msra.mxu0 0.0
    %2283 = vmatprep.subr.mxu0 0.0
    %2284 = vmatpush1.xpose.msra.mxu0 0.0
    %2285 = vmatprep.subr.mxu0 0.0
    %2286 = vmatpush1.xpose.msra.mxu0 0.0
    %2287 = vmatprep.subr.mxu0 0.0
    %2288 = vmatpush1.xpose.msra.mxu0 0.0
    %2289 = vmatprep.subr.mxu0 0.0
    %2290 = vmatpush1.xpose.msra.mxu0 0.0
    %2291 = vmatprep.subr.mxu0 0.0
    %2292 = vmatpush1.xpose.msra.mxu0 0.0
    %2293 = vmatprep.subr.mxu0 0.0
    %2294 = vmatpush1.xpose.msra.mxu0 0.0
    %2295 = vmatprep.subr.mxu0 0.0
    %2296 = vmatpush1.xpose.msra.mxu0 0.0
    %2297 = vmatprep.subr.mxu0 0.0
    %2298 = vmatpush1.xpose.msra.mxu0 0.0
    %2299 = vmatprep.subr.mxu0 0.0
    %2300 = vmatpush1.xpose.msra.mxu0 0.0
    %2301 = vmatprep.subr.mxu0 0.0
    %2302 = vmatpush1.xpose.msra.mxu0 0.0
    %2303 = vmatprep.subr.mxu0 0.0
    %2304 = vmatpush1.xpose.msra.mxu0 0.0
    %2305 = vmatprep.subr.mxu0 0.0
    %2306 = vmatpush1.xpose.msra.mxu0 0.0
    %2307 = vmatprep.mubr.f32.mxu0 0.0
    %2308 = vmatmul.mubr.f32.gmra.mrb[0].mxu0 %v2239
    %v2309 = vpop.f32.mrb[0].mxu0
    %v2310 = vadd.f32 0.0, %v2309
    %v2311 = vpop.f32.mrb[0].mxu0
    %2312 = vdwg.mxu0
    %v2313 = vsel %vm138, %v2233, -inf
    %2314 = vmax.xlane.f32.xlu0 %v2313
    %v2315 = vpop.xlane.xlu0 %2314
    %v2316 = vsel %vm138, %v2310, -inf
    %2317 = vmax.xlane.f32.xlu0 %v2316
    %v2318 = vpop.xlane.xlu0 %2317
    %v2319 = vsub.f32 %v2233, %v2315
    %v2320 = vsub.f32 %v2310, %v2318
    %v2321 = vmul.f32 %v2319, 1.442695
    %v2322 = vpow.pop %v2321
    %v2323 = vmul.f32 %v2320, 1.442695
    %v2324 = vpow.pop %v2323
    %v2325 = vsel %vm138, %v2322, 0.0
    %2326 = vadd.xlane.f32.xlu0 %v2325
    %v2327 = vpop.xlane.xlu0 %2326
    %v2328 = vsel %vm138, %v2324, 0.0
    %2329 = vadd.xlane.f32.xlu0 %v2328
    %v2330 = vpop.xlane.xlu0 %2329
    %v2331 = vrcp.pop %v2327
    %v2332 = vmul.f32 %v2322, %v2331
    %v2333 = vrcp.pop %v2330
    %v2334 = vmul.f32 %v2324, %v2333
    %2335 = vrot.lane.b32.xlu0 %v2146, 64
    %v2336 = vpop.permute.xlu0 %2335
    %v2339 = vsel %vm138, %v2332, 0
    %2341 = vmatprep.subr.mxu0 0.0
    %2342 = vmatpush1.msra.mxu0 %v2336
    %2343 = vmatprep.subr.mxu0 0.0
    %2344 = vmatpush1.msra.mxu0 0.0
    %2345 = vmatprep.subr.mxu0 0.0
    %2346 = vmatpush1.msra.mxu0 0.0
    %2347 = vmatprep.subr.mxu0 0.0
    %2348 = vmatpush1.msra.mxu0 0.0
    %2349 = vmatprep.subr.mxu0 0.0
    %2350 = vmatpush1.msra.mxu0 0.0
    %2351 = vmatprep.subr.mxu0 0.0
    %2352 = vmatpush1.msra.mxu0 0.0
    %2353 = vmatprep.subr.mxu0 0.0
    %2354 = vmatpush1.msra.mxu0 0.0
    %2355 = vmatprep.subr.mxu0 0.0
    %2356 = vmatpush1.msra.mxu0 0.0
    %2357 = vmatprep.subr.mxu0 0.0
    %2358 = vmatpush1.msra.mxu0 0.0
    %2359 = vmatprep.subr.mxu0 0.0
    %2360 = vmatpush1.msra.mxu0 0.0
    %2361 = vmatprep.subr.mxu0 0.0
    %2362 = vmatpush1.msra.mxu0 0.0
    %2363 = vmatprep.subr.mxu0 0.0
    %2364 = vmatpush1.msra.mxu0 0.0
    %2365 = vmatprep.subr.mxu0 0.0
    %2366 = vmatpush1.msra.mxu0 0.0
    %2367 = vmatprep.subr.mxu0 0.0
    %2368 = vmatpush1.msra.mxu0 0.0
    %2369 = vmatprep.subr.mxu0 0.0
    %2370 = vmatpush1.msra.mxu0 0.0
    %2371 = vmatprep.subr.mxu0 0.0
    %2372 = vmatpush1.msra.mxu0 0.0
    %2373 = vmatprep.subr.mxu0 0.0
    %2374 = vmatpush1.msra.mxu0 0.0
    %2375 = vmatprep.subr.mxu0 0.0
    %2376 = vmatpush1.msra.mxu0 0.0
    %2377 = vmatprep.subr.mxu0 0.0
    %2378 = vmatpush1.msra.mxu0 0.0
    %2379 = vmatprep.subr.mxu0 0.0
    %2380 = vmatpush1.msra.mxu0 0.0
    %2381 = vmatprep.subr.mxu0 0.0
    %2382 = vmatpush1.msra.mxu0 0.0
    %2383 = vmatprep.subr.mxu0 0.0
    %2384 = vmatpush1.msra.mxu0 0.0
    %2385 = vmatprep.subr.mxu0 0.0
    %2386 = vmatpush1.msra.mxu0 0.0
    %2387 = vmatprep.subr.mxu0 0.0
    %2388 = vmatpush1.msra.mxu0 0.0
    %2389 = vmatprep.subr.mxu0 0.0
    %2390 = vmatpush1.msra.mxu0 0.0
    %2391 = vmatprep.subr.mxu0 0.0
    %2392 = vmatpush1.msra.mxu0 0.0
    %2393 = vmatprep.subr.mxu0 0.0
    %2394 = vmatpush1.msra.mxu0 0.0
    %2395 = vmatprep.subr.mxu0 0.0
    %2396 = vmatpush1.msra.mxu0 0.0
    %2397 = vmatprep.subr.mxu0 0.0
    %2398 = vmatpush1.msra.mxu0 0.0
    %2399 = vmatprep.subr.mxu0 0.0
    %2400 = vmatpush1.msra.mxu0 0.0
    %2401 = vmatprep.subr.mxu0 0.0
    %2402 = vmatpush1.msra.mxu0 0.0
    %2403 = vmatprep.subr.mxu0 0.0
    %2404 = vmatpush1.msra.mxu0 0.0
    %2405 = vmatprep.mubr.f32.mxu0 0.0
    %2406 = vmatmul.mubr.f32.gmra.mrb[0].mxu0 %v2339
    %v2407 = vpop.f32.mrb[0].mxu0
    %v2408 = vadd.f32 0.0, %v2407
    %v2409 = vpop.f32.mrb[0].mxu0
    %2410 = vdwg.mxu0
    %2411 = vrot.lane.b32.xlu0 %v2151, 64
    %v2412 = vpop.permute.xlu0 %2411
    %v2415 = vsel %vm138, %v2334, 0
    %2417 = vmatprep.subr.mxu0 0.0
    %2418 = vmatpush1.msra.mxu0 %v2412
    %2419 = vmatprep.subr.mxu0 0.0
    %2420 = vmatpush1.msra.mxu0 0.0
    %2421 = vmatprep.subr.mxu0 0.0
    %2422 = vmatpush1.msra.mxu0 0.0
    %2423 = vmatprep.subr.mxu0 0.0
    %2424 = vmatpush1.msra.mxu0 0.0
    %2425 = vmatprep.subr.mxu0 0.0
    %2426 = vmatpush1.msra.mxu0 0.0
    %2427 = vmatprep.subr.mxu0 0.0
    %2428 = vmatpush1.msra.mxu0 0.0
    %2429 = vmatprep.subr.mxu0 0.0
    %2430 = vmatpush1.msra.mxu0 0.0
    %2431 = vmatprep.subr.mxu0 0.0
    %2432 = vmatpush1.msra.mxu0 0.0
    %2433 = vmatprep.subr.mxu0 0.0
    %2434 = vmatpush1.msra.mxu0 0.0
    %2435 = vmatprep.subr.mxu0 0.0
    %2436 = vmatpush1.msra.mxu0 0.0
    %2437 = vmatprep.subr.mxu0 0.0
    %2438 = vmatpush1.msra.mxu0 0.0
    %2439 = vmatprep.subr.mxu0 0.0
    %2440 = vmatpush1.msra.mxu0 0.0
    %2441 = vmatprep.subr.mxu0 0.0
    %2442 = vmatpush1.msra.mxu0 0.0
    %2443 = vmatprep.subr.mxu0 0.0
    %2444 = vmatpush1.msra.mxu0 0.0
    %2445 = vmatprep.subr.mxu0 0.0
    %2446 = vmatpush1.msra.mxu0 0.0
    %2447 = vmatprep.subr.mxu0 0.0
    %2448 = vmatpush1.msra.mxu0 0.0
    %2449 = vmatprep.subr.mxu0 0.0
    %2450 = vmatpush1.msra.mxu0 0.0
    %2451 = vmatprep.subr.mxu0 0.0
    %2452 = vmatpush1.msra.mxu0 0.0
    %2453 = vmatprep.subr.mxu0 0.0
    %2454 = vmatpush1.msra.mxu0 0.0
    %2455 = vmatprep.subr.mxu0 0.0
    %2456 = vmatpush1.msra.mxu0 0.0
    %2457 = vmatprep.subr.mxu0 0.0
    %2458 = vmatpush1.msra.mxu0 0.0
    %2459 = vmatprep.subr.mxu0 0.0
    %2460 = vmatpush1.msra.mxu0 0.0
    %2461 = vmatprep.subr.mxu0 0.0
    %2462 = vmatpush1.msra.mxu0 0.0
    %2463 = vmatprep.subr.mxu0 0.0
    %2464 = vmatpush1.msra.mxu0 0.0
    %2465 = vmatprep.subr.mxu0 0.0
    %2466 = vmatpush1.msra.mxu0 0.0
    %2467 = vmatprep.subr.mxu0 0.0
    %2468 = vmatpush1.msra.mxu0 0.0
    %2469 = vmatprep.subr.mxu0 0.0
    %2470 = vmatpush1.msra.mxu0 0.0
    %2471 = vmatprep.subr.mxu0 0.0
    %2472 = vmatpush1.msra.mxu0 0.0
    %2473 = vmatprep.subr.mxu0 0.0
    %2474 = vmatpush1.msra.mxu0 0.0
    %2475 = vmatprep.subr.mxu0 0.0
    %2476 = vmatpush1.msra.mxu0 0.0
    %2477 = vmatprep.subr.mxu0 0.0
    %2478 = vmatpush1.msra.mxu0 0.0
    %2479 = vmatprep.subr.mxu0 0.0
    %2480 = vmatpush1.msra.mxu0 0.0
    %2481 = vmatprep.mubr.f32.mxu0 0.0
    %2482 = vmatmul.mubr.f32.gmra.mrb[0].mxu0 %v2415
    %v2483 = vpop.f32.mrb[0].mxu0
    %v2484 = vadd.f32 0.0, %v2483
    %v2485 = vpop.f32.mrb[0].mxu0
    %2486 = vdwg.mxu0
    %2487 = vrot.lane.b32.xlu0 %v2146, 120
    %v2488 = vpop.permute.xlu0 %2487
    %2489 = vrot.lane.b32.xlu0 %v2146, 88
    %v2490 = vpop.permute.xlu0 %2489
    %v2491 = vsel %vm138, %v2488, 0
    %v2493 = vsel %vm138, %v2490, 0
    %2495 = vmatprep.subr.mxu0 0.0
    %2496 = vmatpush1.xpose.msra.mxu0 %v2493
    %2497 = vmatprep.subr.mxu0 0.0
    %2498 = vmatpush1.xpose.msra.mxu0 0.0
    %2499 = vmatprep.subr.mxu0 0.0
    %2500 = vmatpush1.xpose.msra.mxu0 0.0
    %2501 = vmatprep.subr.mxu0 0.0
    %2502 = vmatpush1.xpose.msra.mxu0 0.0
    %2503 = vmatprep.subr.mxu0 0.0
    %2504 = vmatpush1.xpose.msra.mxu0 0.0
    %2505 = vmatprep.subr.mxu0 0.0
    %2506 = vmatpush1.xpose.msra.mxu0 0.0
    %2507 = vmatprep.subr.mxu0 0.0
    %2508 = vmatpush1.xpose.msra.mxu0 0.0
    %2509 = vmatprep.subr.mxu0 0.0
    %2510 = vmatpush1.xpose.msra.mxu0 0.0
    %2511 = vmatprep.subr.mxu0 0.0
    %2512 = vmatpush1.xpose.msra.mxu0 0.0
    %2513 = vmatprep.subr.mxu0 0.0
    %2514 = vmatpush1.xpose.msra.mxu0 0.0
    %2515 = vmatprep.subr.mxu0 0.0
    %2516 = vmatpush1.xpose.msra.mxu0 0.0
    %2517 = vmatprep.subr.mxu0 0.0
    %2518 = vmatpush1.xpose.msra.mxu0 0.0
    %2519 = vmatprep.subr.mxu0 0.0
    %2520 = vmatpush1.xpose.msra.mxu0 0.0
    %2521 = vmatprep.subr.mxu0 0.0
    %2522 = vmatpush1.xpose.msra.mxu0 0.0
    %2523 = vmatprep.subr.mxu0 0.0
    %2524 = vmatpush1.xpose.msra.mxu0 0.0
    %2525 = vmatprep.subr.mxu0 0.0
    %2526 = vmatpush1.xpose.msra.mxu0 0.0
    %2527 = vmatprep.subr.mxu0 0.0
    %2528 = vmatpush1.xpose.msra.mxu0 0.0
    %2529 = vmatprep.subr.mxu0 0.0
    %2530 = vmatpush1.xpose.msra.mxu0 0.0
    %2531 = vmatprep.subr.mxu0 0.0
    %2532 = vmatpush1.xpose.msra.mxu0 0.0
    %2533 = vmatprep.subr.mxu0 0.0
    %2534 = vmatpush1.xpose.msra.mxu0 0.0
    %2535 = vmatprep.subr.mxu0 0.0
    %2536 = vmatpush1.xpose.msra.mxu0 0.0
    %2537 = vmatprep.subr.mxu0 0.0
    %2538 = vmatpush1.xpose.msra.mxu0 0.0
    %2539 = vmatprep.subr.mxu0 0.0
    %2540 = vmatpush1.xpose.msra.mxu0 0.0
    %2541 = vmatprep.subr.mxu0 0.0
    %2542 = vmatpush1.xpose.msra.mxu0 0.0
    %2543 = vmatprep.subr.mxu0 0.0
    %2544 = vmatpush1.xpose.msra.mxu0 0.0
    %2545 = vmatprep.subr.mxu0 0.0
    %2546 = vmatpush1.xpose.msra.mxu0 0.0
    %2547 = vmatprep.subr.mxu0 0.0
    %2548 = vmatpush1.xpose.msra.mxu0 0.0
    %2549 = vmatprep.subr.mxu0 0.0
    %2550 = vmatpush1.xpose.msra.mxu0 0.0
    %2551 = vmatprep.subr.mxu0 0.0
    %2552 = vmatpush1.xpose.msra.mxu0 0.0
    %2553 = vmatprep.subr.mxu0 0.0
    %2554 = vmatpush1.xpose.msra.mxu0 0.0
    %2555 = vmatprep.subr.mxu0 0.0
    %2556 = vmatpush1.xpose.msra.mxu0 0.0
    %2557 = vmatprep.subr.mxu0 0.0
    %2558 = vmatpush1.xpose.msra.mxu0 0.0
    %2559 = vmatprep.mubr.f32.mxu0 0.0
    %2560 = vmatmul.mubr.f32.gmra.mrb[0].mxu0 %v2491
    %v2561 = vpop.f32.mrb[0].mxu0
    %v2562 = vadd.f32 0.0, %v2561
    %v2563 = vpop.f32.mrb[0].mxu0
    %2564 = vdwg.mxu0
    %2565 = vrot.lane.b32.xlu0 %v2151, 120
    %v2566 = vpop.permute.xlu0 %2565
    %2567 = vrot.lane.b32.xlu0 %v2151, 88
    %v2568 = vpop.permute.xlu0 %2567
    %v2569 = vsel %vm138, %v2566, 0
    %v2571 = vsel %vm138, %v2568, 0
    %2573 = vmatprep.subr.mxu0 0.0
    %2574 = vmatpush1.xpose.msra.mxu0 %v2571
    %2575 = vmatprep.subr.mxu0 0.0
    %2576 = vmatpush1.xpose.msra.mxu0 0.0
    %2577 = vmatprep.subr.mxu0 0.0
    %2578 = vmatpush1.xpose.msra.mxu0 0.0
    %2579 = vmatprep.subr.mxu0 0.0
    %2580 = vmatpush1.xpose.msra.mxu0 0.0
    %2581 = vmatprep.subr.mxu0 0.0
    %2582 = vmatpush1.xpose.msra.mxu0 0.0
    %2583 = vmatprep.subr.mxu0 0.0
    %2584 = vmatpush1.xpose.msra.mxu0 0.0
    %2585 = vmatprep.subr.mxu0 0.0
    %2586 = vmatpush1.xpose.msra.mxu0 0.0
    %2587 = vmatprep.subr.mxu0 0.0
    %2588 = vmatpush1.xpose.msra.mxu0 0.0
    %2589 = vmatprep.subr.mxu0 0.0
    %2590 = vmatpush1.xpose.msra.mxu0 0.0
    %2591 = vmatprep.subr.mxu0 0.0
    %2592 = vmatpush1.xpose.msra.mxu0 0.0
    %2593 = vmatprep.subr.mxu0 0.0
    %2594 = vmatpush1.xpose.msra.mxu0 0.0
    %2595 = vmatprep.subr.mxu0 0.0
    %2596 = vmatpush1.xpose.msra.mxu0 0.0
    %2597 = vmatprep.subr.mxu0 0.0
    %2598 = vmatpush1.xpose.msra.mxu0 0.0
    %2599 = vmatprep.subr.mxu0 0.0
    %2600 = vmatpush1.xpose.msra.mxu0 0.0
    %2601 = vmatprep.subr.mxu0 0.0
    %2602 = vmatpush1.xpose.msra.mxu0 0.0
    %2603 = vmatprep.subr.mxu0 0.0
    %2604 = vmatpush1.xpose.msra.mxu0 0.0
    %2605 = vmatprep.subr.mxu0 0.0
    %2606 = vmatpush1.xpose.msra.mxu0 0.0
    %2607 = vmatprep.subr.mxu0 0.0
    %2608 = vmatpush1.xpose.msra.mxu0 0.0
    %2609 = vmatprep.subr.mxu0 0.0
    %2610 = vmatpush1.xpose.msra.mxu0 0.0
    %2611 = vmatprep.subr.mxu0 0.0
    %2612 = vmatpush1.xpose.msra.mxu0 0.0
    %2613 = vmatprep.subr.mxu0 0.0
    %2614 = vmatpush1.xpose.msra.mxu0 0.0
    %2615 = vmatprep.subr.mxu0 0.0
    %2616 = vmatpush1.xpose.msra.mxu0 0.0
    %2617 = vmatprep.subr.mxu0 0.0
    %2618 = vmatpush1.xpose.msra.mxu0 0.0
    %2619 = vmatprep.subr.mxu0 0.0
    %2620 = vmatpush1.xpose.msra.mxu0 0.0
    %2621 = vmatprep.subr.mxu0 0.0
    %2622 = vmatpush1.xpose.msra.mxu0 0.0
    %2623 = vmatprep.subr.mxu0 0.0
    %2624 = vmatpush1.xpose.msra.mxu0 0.0
    %2625 = vmatprep.subr.mxu0 0.0
    %2626 = vmatpush1.xpose.msra.mxu0 0.0
    %2627 = vmatprep.subr.mxu0 0.0
    %2628 = vmatpush1.xpose.msra.mxu0 0.0
    %2629 = vmatprep.subr.mxu0 0.0
    %2630 = vmatpush1.xpose.msra.mxu0 0.0
    %2631 = vmatprep.subr.mxu0 0.0
    %2632 = vmatpush1.xpose.msra.mxu0 0.0
    %2633 = vmatprep.subr.mxu0 0.0
    %2634 = vmatpush1.xpose.msra.mxu0 0.0
    %2635 = vmatprep.subr.mxu0 0.0
    %2636 = vmatpush1.xpose.msra.mxu0 0.0
    %2637 = vmatprep.mubr.f32.mxu0 0.0
    %2638 = vmatmul.mubr.f32.gmra.mrb[0].mxu0 %v2569
    %v2639 = vpop.f32.mrb[0].mxu0
    %v2640 = vadd.f32 0.0, %v2639
    %v2641 = vpop.f32.mrb[0].mxu0
    %2642 = vdwg.mxu0
    %v2643 = vsel %vm138, %v2562, -inf
    %2644 = vmax.xlane.f32.xlu0 %v2643
    %v2645 = vpop.xlane.xlu0 %2644
    %v2646 = vsel %vm138, %v2640, -inf
    %2647 = vmax.xlane.f32.xlu0 %v2646
    %v2648 = vpop.xlane.xlu0 %2647
    %v2649 = vsub.f32 %v2562, %v2645
    %v2650 = vsub.f32 %v2640, %v2648
    %v2651 = vmul.f32 %v2649, 1.442695
    %v2652 = vpow.pop %v2651
    %v2653 = vmul.f32 %v2650, 1.442695
    %v2654 = vpow.pop %v2653
    %v2655 = vsel %vm138, %v2652, 0.0
    %2656 = vadd.xlane.f32.xlu0 %v2655
    %v2657 = vpop.xlane.xlu0 %2656
    %v2658 = vsel %vm138, %v2654, 0.0
    %2659 = vadd.xlane.f32.xlu0 %v2658
    %v2660 = vpop.xlane.xlu0 %2659
    %v2661 = vrcp.pop %v2657
    %v2662 = vmul.f32 %v2652, %v2661
    %v2663 = vrcp.pop %v2660
    %v2664 = vmul.f32 %v2654, %v2663
    %2665 = vrot.lane.b32.xlu0 %v2146, 56
    %v2666 = vpop.permute.xlu0 %2665
    %v2669 = vsel %vm138, %v2662, 0
    %2671 = vmatprep.subr.mxu0 0.0
    %2672 = vmatpush1.msra.mxu0 %v2666
    %2673 = vmatprep.subr.mxu0 0.0
    %2674 = vmatpush1.msra.mxu0 0.0
    %2675 = vmatprep.subr.mxu0 0.0
    %2676 = vmatpush1.msra.mxu0 0.0
    %2677 = vmatprep.subr.mxu0 0.0
    %2678 = vmatpush1.msra.mxu0 0.0
    %2679 = vmatprep.subr.mxu0 0.0
    %2680 = vmatpush1.msra.mxu0 0.0
    %2681 = vmatprep.subr.mxu0 0.0
    %2682 = vmatpush1.msra.mxu0 0.0
    %2683 = vmatprep.subr.mxu0 0.0
    %2684 = vmatpush1.msra.mxu0 0.0
    %2685 = vmatprep.subr.mxu0 0.0
    %2686 = vmatpush1.msra.mxu0 0.0
    %2687 = vmatprep.subr.mxu0 0.0
    %2688 = vmatpush1.msra.mxu0 0.0
    %2689 = vmatprep.subr.mxu0 0.0
    %2690 = vmatpush1.msra.mxu0 0.0
    %2691 = vmatprep.subr.mxu0 0.0
    %2692 = vmatpush1.msra.mxu0 0.0
    %2693 = vmatprep.subr.mxu0 0.0
    %2694 = vmatpush1.msra.mxu0 0.0
    %2695 = vmatprep.subr.mxu0 0.0
    %2696 = vmatpush1.msra.mxu0 0.0
    %2697 = vmatprep.subr.mxu0 0.0
    %2698 = vmatpush1.msra.mxu0 0.0
    %2699 = vmatprep.subr.mxu0 0.0
    %2700 = vmatpush1.msra.mxu0 0.0
    %2701 = vmatprep.subr.mxu0 0.0
    %2702 = vmatpush1.msra.mxu0 0.0
    %2703 = vmatprep.subr.mxu0 0.0
    %2704 = vmatpush1.msra.mxu0 0.0
    %2705 = vmatprep.subr.mxu0 0.0
    %2706 = vmatpush1.msra.mxu0 0.0
    %2707 = vmatprep.subr.mxu0 0.0
    %2708 = vmatpush1.msra.mxu0 0.0
    %2709 = vmatprep.subr.mxu0 0.0
    %2710 = vmatpush1.msra.mxu0 0.0
    %2711 = vmatprep.subr.mxu0 0.0
    %2712 = vmatpush1.msra.mxu0 0.0
    %2713 = vmatprep.subr.mxu0 0.0
    %2714 = vmatpush1.msra.mxu0 0.0
    %2715 = vmatprep.subr.mxu0 0.0
    %2716 = vmatpush1.msra.mxu0 0.0
    %2717 = vmatprep.subr.mxu0 0.0
    %2718 = vmatpush1.msra.mxu0 0.0
    %2719 = vmatprep.subr.mxu0 0.0
    %2720 = vmatpush1.msra.mxu0 0.0
    %2721 = vmatprep.subr.mxu0 0.0
    %2722 = vmatpush1.msra.mxu0 0.0
    %2723 = vmatprep.subr.mxu0 0.0
    %2724 = vmatpush1.msra.mxu0 0.0
    %2725 = vmatprep.subr.mxu0 0.0
    %2726 = vmatpush1.msra.mxu0 0.0
    %2727 = vmatprep.subr.mxu0 0.0
    %2728 = vmatpush1.msra.mxu0 0.0
    %2729 = vmatprep.subr.mxu0 0.0
    %2730 = vmatpush1.msra.mxu0 0.0
    %2731 = vmatprep.subr.mxu0 0.0
    %2732 = vmatpush1.msra.mxu0 0.0
    %2733 = vmatprep.subr.mxu0 0.0
    %2734 = vmatpush1.msra.mxu0 0.0
    %2735 = vmatprep.mubr.f32.mxu0 0.0
    %2736 = vmatmul.mubr.f32.gmra.mrb[0].mxu0 %v2669
    %v2737 = vpop.f32.mrb[0].mxu0
    %v2738 = vadd.f32 0.0, %v2737
    %v2739 = vpop.f32.mrb[0].mxu0
    %2740 = vdwg.mxu0
    %2741 = vrot.lane.b32.xlu0 %v2151, 56
    %v2742 = vpop.permute.xlu0 %2741
    %v2745 = vsel %vm138, %v2664, 0
    %2747 = vmatprep.subr.mxu0 0.0
    %2748 = vmatpush1.msra.mxu0 %v2742
    %2749 = vmatprep.subr.mxu0 0.0
    %2750 = vmatpush1.msra.mxu0 0.0
    %2751 = vmatprep.subr.mxu0 0.0
    %2752 = vmatpush1.msra.mxu0 0.0
    %2753 = vmatprep.subr.mxu0 0.0
    %2754 = vmatpush1.msra.mxu0 0.0
    %2755 = vmatprep.subr.mxu0 0.0
    %2756 = vmatpush1.msra.mxu0 0.0
    %2757 = vmatprep.subr.mxu0 0.0
    %2758 = vmatpush1.msra.mxu0 0.0
    %2759 = vmatprep.subr.mxu0 0.0
    %2760 = vmatpush1.msra.mxu0 0.0
    %2761 = vmatprep.subr.mxu0 0.0
    %2762 = vmatpush1.msra.mxu0 0.0
    %2763 = vmatprep.subr.mxu0 0.0
    %2764 = vmatpush1.msra.mxu0 0.0
    %2765 = vmatprep.subr.mxu0 0.0
    %2766 = vmatpush1.msra.mxu0 0.0
    %2767 = vmatprep.subr.mxu0 0.0
    %2768 = vmatpush1.msra.mxu0 0.0
    %2769 = vmatprep.subr.mxu0 0.0
    %2770 = vmatpush1.msra.mxu0 0.0
    %2771 = vmatprep.subr.mxu0 0.0
    %2772 = vmatpush1.msra.mxu0 0.0
    %2773 = vmatprep.subr.mxu0 0.0
    %2774 = vmatpush1.msra.mxu0 0.0
    %2775 = vmatprep.subr.mxu0 0.0
    %2776 = vmatpush1.msra.mxu0 0.0
    %2777 = vmatprep.subr.mxu0 0.0
    %2778 = vmatpush1.msra.mxu0 0.0
    %2779 = vmatprep.subr.mxu0 0.0
    %2780 = vmatpush1.msra.mxu0 0.0
    %2781 = vmatprep.subr.mxu0 0.0
    %2782 = vmatpush1.msra.mxu0 0.0
    %2783 = vmatprep.subr.mxu0 0.0
    %2784 = vmatpush1.msra.mxu0 0.0
    %2785 = vmatprep.subr.mxu0 0.0
    %2786 = vmatpush1.msra.mxu0 0.0
    %2787 = vmatprep.subr.mxu0 0.0
    %2788 = vmatpush1.msra.mxu0 0.0
    %2789 = vmatprep.subr.mxu0 0.0
    %2790 = vmatpush1.msra.mxu0 0.0
    %2791 = vmatprep.subr.mxu0 0.0
    %2792 = vmatpush1.msra.mxu0 0.0
    %2793 = vmatprep.subr.mxu0 0.0
    %2794 = vmatpush1.msra.mxu0 0.0
    %2795 = vmatprep.subr.mxu0 0.0
    %2796 = vmatpush1.msra.mxu0 0.0
    %2797 = vmatprep.subr.mxu0 0.0
    %2798 = vmatpush1.msra.mxu0 0.0
    %2799 = vmatprep.subr.mxu0 0.0
    %2800 = vmatpush1.msra.mxu0 0.0
    %2801 = vmatprep.subr.mxu0 0.0
    %2802 = vmatpush1.msra.mxu0 0.0
    %2803 = vmatprep.subr.mxu0 0.0
    %2804 = vmatpush1.msra.mxu0 0.0
    %2805 = vmatprep.subr.mxu0 0.0
    %2806 = vmatpush1.msra.mxu0 0.0
    %2807 = vmatprep.subr.mxu0 0.0
    %2808 = vmatpush1.msra.mxu0 0.0
    %2809 = vmatprep.subr.mxu0 0.0
    %2810 = vmatpush1.msra.mxu0 0.0
    %2811 = vmatprep.mubr.f32.mxu0 0.0
    %2812 = vmatmul.mubr.f32.gmra.mrb[0].mxu0 %v2745
    %v2813 = vpop.f32.mrb[0].mxu0
    %v2814 = vadd.f32 0.0, %v2813
    %v2815 = vpop.f32.mrb[0].mxu0
    %2816 = vdwg.mxu0
    %v2818 = vsel %vm138, %v2738, 0
    %v2821 = vsel %vm138, %v2814, 0
    %2823 = vmatprep.subr.mxu0 0.0
    %2824 = vmatpush1.msra.mxu0 %v2156
    %2825 = vmatprep.subr.mxu0 0.0
    %2826 = vmatpush1.msra.mxu0 0.0
    %2827 = vmatprep.subr.mxu0 0.0
    %2828 = vmatpush1.msra.mxu0 0.0
    %2829 = vmatprep.subr.mxu0 0.0
    %2830 = vmatpush1.msra.mxu0 0.0
    %2831 = vmatprep.subr.mxu0 0.0
    %2832 = vmatpush1.msra.mxu0 0.0
    %2833 = vmatprep.subr.mxu0 0.0
    %2834 = vmatpush1.msra.mxu0 0.0
    %2835 = vmatprep.subr.mxu0 0.0
    %2836 = vmatpush1.msra.mxu0 0.0
    %2837 = vmatprep.subr.mxu0 0.0
    %2838 = vmatpush1.msra.mxu0 0.0
    %2839 = vmatprep.subr.mxu0 0.0
    %2840 = vmatpush1.msra.mxu0 0.0
    %2841 = vmatprep.subr.mxu0 0.0
    %2842 = vmatpush1.msra.mxu0 0.0
    %2843 = vmatprep.subr.mxu0 0.0
    %2844 = vmatpush1.msra.mxu0 0.0
    %2845 = vmatprep.subr.mxu0 0.0
    %2846 = vmatpush1.msra.mxu0 0.0
    %2847 = vmatprep.subr.mxu0 0.0
    %2848 = vmatpush1.msra.mxu0 0.0
    %2849 = vmatprep.subr.mxu0 0.0
    %2850 = vmatpush1.msra.mxu0 0.0
    %2851 = vmatprep.subr.mxu0 0.0
    %2852 = vmatpush1.msra.mxu0 0.0
    %2853 = vmatprep.subr.mxu0 0.0
    %2854 = vmatpush1.msra.mxu0 0.0
    %2855 = vmatprep.subr.mxu0 0.0
    %2856 = vmatpush1.msra.mxu0 0.0
    %2857 = vmatprep.subr.mxu0 0.0
    %2858 = vmatpush1.msra.mxu0 0.0
    %2859 = vmatprep.subr.mxu0 0.0
    %2860 = vmatpush1.msra.mxu0 0.0
    %2861 = vmatprep.subr.mxu0 0.0
    %2862 = vmatpush1.msra.mxu0 0.0
    %2863 = vmatprep.subr.mxu0 0.0
    %2864 = vmatpush1.msra.mxu0 0.0
    %2865 = vmatprep.subr.mxu0 0.0
    %2866 = vmatpush1.msra.mxu0 0.0
    %2867 = vmatprep.subr.mxu0 0.0
    %2868 = vmatpush1.msra.mxu0 0.0
    %2869 = vmatprep.subr.mxu0 0.0
    %2870 = vmatpush1.msra.mxu0 0.0
    %2871 = vmatprep.subr.mxu0 0.0
    %2872 = vmatpush1.msra.mxu0 0.0
    %2873 = vmatprep.subr.mxu0 0.0
    %2874 = vmatpush1.msra.mxu0 0.0
    %2875 = vmatprep.subr.mxu0 0.0
    %2876 = vmatpush1.msra.mxu0 0.0
    %2877 = vmatprep.subr.mxu0 0.0
    %2878 = vmatpush1.msra.mxu0 0.0
    %2879 = vmatprep.subr.mxu0 0.0
    %2880 = vmatpush1.msra.mxu0 0.0
    %2881 = vmatprep.subr.mxu0 0.0
    %2882 = vmatpush1.msra.mxu0 0.0
    %2883 = vmatprep.subr.mxu0 0.0
    %2884 = vmatpush1.msra.mxu0 0.0
    %2885 = vmatprep.subr.mxu0 0.0
    %2886 = vmatpush1.msra.mxu0 0.0
    %2887 = vmatprep.mubr.f32.mxu0 0.0
    %2888 = vmatmul.mubr.f32.gmra.mrb[0].mxu0 %v2818
    %v2889 = vpop.f32.mrb[0].mxu0
    %v2890 = vadd.f32 0.0, %v2889
    %v2891 = vpop.f32.mrb[0].mxu0
    %2892 = vmatprep.mubr.f32.mxu0 0.0
    %2893 = vmatmul.mubr.f32.gmra.mrb[0].mxu0 %v2821
    %v2894 = vpop.f32.mrb[0].mxu0
    %v2895 = vadd.f32 0.0, %v2894
    %v2896 = vpop.f32.mrb[0].mxu0
    %2897 = vdwg.mxu0
    %v2899 = vsel %vm138, %v2408, 0
    %v2902 = vsel %vm138, %v2484, 0
    %2904 = vmatprep.subr.mxu0 0.0
    %2905 = vmatpush1.msra.mxu0 %v2155
    %2906 = vmatprep.subr.mxu0 0.0
    %2907 = vmatpush1.msra.mxu0 0.0
    %2908 = vmatprep.subr.mxu0 0.0
    %2909 = vmatpush1.msra.mxu0 0.0
    %2910 = vmatprep.subr.mxu0 0.0
    %2911 = vmatpush1.msra.mxu0 0.0
    %2912 = vmatprep.subr.mxu0 0.0
    %2913 = vmatpush1.msra.mxu0 0.0
    %2914 = vmatprep.subr.mxu0 0.0
    %2915 = vmatpush1.msra.mxu0 0.0
    %2916 = vmatprep.subr.mxu0 0.0
    %2917 = vmatpush1.msra.mxu0 0.0
    %2918 = vmatprep.subr.mxu0 0.0
    %2919 = vmatpush1.msra.mxu0 0.0
    %2920 = vmatprep.subr.mxu0 0.0
    %2921 = vmatpush1.msra.mxu0 0.0
    %2922 = vmatprep.subr.mxu0 0.0
    %2923 = vmatpush1.msra.mxu0 0.0
    %2924 = vmatprep.subr.mxu0 0.0
    %2925 = vmatpush1.msra.mxu0 0.0
    %2926 = vmatprep.subr.mxu0 0.0
    %2927 = vmatpush1.msra.mxu0 0.0
    %2928 = vmatprep.subr.mxu0 0.0
    %2929 = vmatpush1.msra.mxu0 0.0
    %2930 = vmatprep.subr.mxu0 0.0
    %2931 = vmatpush1.msra.mxu0 0.0
    %2932 = vmatprep.subr.mxu0 0.0
    %2933 = vmatpush1.msra.mxu0 0.0
    %2934 = vmatprep.subr.mxu0 0.0
    %2935 = vmatpush1.msra.mxu0 0.0
    %2936 = vmatprep.subr.mxu0 0.0
    %2937 = vmatpush1.msra.mxu0 0.0
    %2938 = vmatprep.subr.mxu0 0.0
    %2939 = vmatpush1.msra.mxu0 0.0
    %2940 = vmatprep.subr.mxu0 0.0
    %2941 = vmatpush1.msra.mxu0 0.0
    %2942 = vmatprep.subr.mxu0 0.0
    %2943 = vmatpush1.msra.mxu0 0.0
    %2944 = vmatprep.subr.mxu0 0.0
    %2945 = vmatpush1.msra.mxu0 0.0
    %2946 = vmatprep.subr.mxu0 0.0
    %2947 = vmatpush1.msra.mxu0 0.0
    %2948 = vmatprep.subr.mxu0 0.0
    %2949 = vmatpush1.msra.mxu0 0.0
    %2950 = vmatprep.subr.mxu0 0.0
    %2951 = vmatpush1.msra.mxu0 0.0
    %2952 = vmatprep.subr.mxu0 0.0
    %2953 = vmatpush1.msra.mxu0 0.0
    %2954 = vmatprep.subr.mxu0 0.0
    %2955 = vmatpush1.msra.mxu0 0.0
    %2956 = vmatprep.subr.mxu0 0.0
    %2957 = vmatpush1.msra.mxu0 0.0
    %2958 = vmatprep.subr.mxu0 0.0
    %2959 = vmatpush1.msra.mxu0 0.0
    %2960 = vmatprep.subr.mxu0 0.0
    %2961 = vmatpush1.msra.mxu0 0.0
    %2962 = vmatprep.subr.mxu0 0.0
    %2963 = vmatpush1.msra.mxu0 0.0
    %2964 = vmatprep.subr.mxu0 0.0
    %2965 = vmatpush1.msra.mxu0 0.0
    %2966 = vmatprep.subr.mxu0 0.0
    %2967 = vmatpush1.msra.mxu0 0.0
    %2968 = vmatprep.mubr.f32.mxu0 0.0
    %2969 = vmatmul.mubr.f32.gmra.mrb[0].mxu0 %v2899
    %v2970 = vpop.f32.mrb[0].mxu0
    %v2971 = vadd.f32 %v2890, %v2970
    %v2972 = vpop.f32.mrb[0].mxu0
    %2973 = vmatprep.mubr.f32.mxu0 0.0
    %2974 = vmatmul.mubr.f32.gmra.mrb[0].mxu0 %v2902
    %v2975 = vpop.f32.mrb[0].mxu0
    %v2976 = vadd.f32 %v2895, %v2975
    %v2977 = vpop.f32.mrb[0].mxu0
    %2978 = vdwg.mxu0
    %2979 = vrot.lane.b32.xlu0 %v2146, 112
    %v2980 = vpop.permute.xlu0 %2979
    %2981 = vrot.lane.b32.xlu0 %v2146, 80
    %v2982 = vpop.permute.xlu0 %2981
    %v2983 = vsel %vm138, %v2980, 0
    %v2985 = vsel %vm138, %v2982, 0
    %2987 = vmatprep.subr.mxu0 0.0
    %2988 = vmatpush1.xpose.msra.mxu0 %v2985
    %2989 = vmatprep.subr.mxu0 0.0
    %2990 = vmatpush1.xpose.msra.mxu0 0.0
    %2991 = vmatprep.subr.mxu0 0.0
    %2992 = vmatpush1.xpose.msra.mxu0 0.0
    %2993 = vmatprep.subr.mxu0 0.0
    %2994 = vmatpush1.xpose.msra.mxu0 0.0
    %2995 = vmatprep.subr.mxu0 0.0
    %2996 = vmatpush1.xpose.msra.mxu0 0.0
    %2997 = vmatprep.subr.mxu0 0.0
    %2998 = vmatpush1.xpose.msra.mxu0 0.0
    %2999 = vmatprep.subr.mxu0 0.0
    %3000 = vmatpush1.xpose.msra.mxu0 0.0
    %3001 = vmatprep.subr.mxu0 0.0
    %3002 = vmatpush1.xpose.msra.mxu0 0.0
    %3003 = vmatprep.subr.mxu0 0.0
    %3004 = vmatpush1.xpose.msra.mxu0 0.0
    %3005 = vmatprep.subr.mxu0 0.0
    %3006 = vmatpush1.xpose.msra.mxu0 0.0
    %3007 = vmatprep.subr.mxu0 0.0
    %3008 = vmatpush1.xpose.msra.mxu0 0.0
    %3009 = vmatprep.subr.mxu0 0.0
    %3010 = vmatpush1.xpose.msra.mxu0 0.0
    %3011 = vmatprep.subr.mxu0 0.0
    %3012 = vmatpush1.xpose.msra.mxu0 0.0
    %3013 = vmatprep.subr.mxu0 0.0
    %3014 = vmatpush1.xpose.msra.mxu0 0.0
    %3015 = vmatprep.subr.mxu0 0.0
    %3016 = vmatpush1.xpose.msra.mxu0 0.0
    %3017 = vmatprep.subr.mxu0 0.0
    %3018 = vmatpush1.xpose.msra.mxu0 0.0
    %3019 = vmatprep.subr.mxu0 0.0
    %3020 = vmatpush1.xpose.msra.mxu0 0.0
    %3021 = vmatprep.subr.mxu0 0.0
    %3022 = vmatpush1.xpose.msra.mxu0 0.0
    %3023 = vmatprep.subr.mxu0 0.0
    %3024 = vmatpush1.xpose.msra.mxu0 0.0
    %3025 = vmatprep.subr.mxu0 0.0
    %3026 = vmatpush1.xpose.msra.mxu0 0.0
    %3027 = vmatprep.subr.mxu0 0.0
    %3028 = vmatpush1.xpose.msra.mxu0 0.0
    %3029 = vmatprep.subr.mxu0 0.0
    %3030 = vmatpush1.xpose.msra.mxu0 0.0
    %3031 = vmatprep.subr.mxu0 0.0
    %3032 = vmatpush1.xpose.msra.mxu0 0.0
    %3033 = vmatprep.subr.mxu0 0.0
    %3034 = vmatpush1.xpose.msra.mxu0 0.0
    %3035 = vmatprep.subr.mxu0 0.0
    %3036 = vmatpush1.xpose.msra.mxu0 0.0
    %3037 = vmatprep.subr.mxu0 0.0
    %3038 = vmatpush1.xpose.msra.mxu0 0.0
    %3039 = vmatprep.subr.mxu0 0.0
    %3040 = vmatpush1.xpose.msra.mxu0 0.0
    %3041 = vmatprep.subr.mxu0 0.0
    %3042 = vmatpush1.xpose.msra.mxu0 0.0
    %3043 = vmatprep.subr.mxu0 0.0
    %3044 = vmatpush1.xpose.msra.mxu0 0.0
    %3045 = vmatprep.subr.mxu0 0.0
    %3046 = vmatpush1.xpose.msra.mxu0 0.0
    %3047 = vmatprep.subr.mxu0 0.0
    %3048 = vmatpush1.xpose.msra.mxu0 0.0
    %3049 = vmatprep.subr.mxu0 0.0
    %3050 = vmatpush1.xpose.msra.mxu0 0.0
    %3051 = vmatprep.mubr.f32.mxu0 0.0
    %3052 = vmatmul.mubr.f32.gmra.mrb[0].mxu0 %v2983
    %v3053 = vpop.f32.mrb[0].mxu0
    %v3054 = vadd.f32 0.0, %v3053
    %v3055 = vpop.f32.mrb[0].mxu0
    %3056 = vdwg.mxu0
    %3057 = vrot.lane.b32.xlu0 %v2151, 112
    %v3058 = vpop.permute.xlu0 %3057
    %3059 = vrot.lane.b32.xlu0 %v2151, 80
    %v3060 = vpop.permute.xlu0 %3059
    %v3061 = vsel %vm138, %v3058, 0
    %v3063 = vsel %vm138, %v3060, 0
    %3065 = vmatprep.subr.mxu0 0.0
    %3066 = vmatpush1.xpose.msra.mxu0 %v3063
    %3067 = vmatprep.subr.mxu0 0.0
    %3068 = vmatpush1.xpose.msra.mxu0 0.0
    %3069 = vmatprep.subr.mxu0 0.0
    %3070 = vmatpush1.xpose.msra.mxu0 0.0
    %3071 = vmatprep.subr.mxu0 0.0
    %3072 = vmatpush1.xpose.msra.mxu0 0.0
    %3073 = vmatprep.subr.mxu0 0.0
    %3074 = vmatpush1.xpose.msra.mxu0 0.0
    %3075 = vmatprep.subr.mxu0 0.0
    %3076 = vmatpush1.xpose.msra.mxu0 0.0
    %3077 = vmatprep.subr.mxu0 0.0
    %3078 = vmatpush1.xpose.msra.mxu0 0.0
    %3079 = vmatprep.subr.mxu0 0.0
    %3080 = vmatpush1.xpose.msra.mxu0 0.0
    %3081 = vmatprep.subr.mxu0 0.0
    %3082 = vmatpush1.xpose.msra.mxu0 0.0
    %3083 = vmatprep.subr.mxu0 0.0
    %3084 = vmatpush1.xpose.msra.mxu0 0.0
    %3085 = vmatprep.subr.mxu0 0.0
    %3086 = vmatpush1.xpose.msra.mxu0 0.0
    %3087 = vmatprep.subr.mxu0 0.0
    %3088 = vmatpush1.xpose.msra.mxu0 0.0
    %3089 = vmatprep.subr.mxu0 0.0
    %3090 = vmatpush1.xpose.msra.mxu0 0.0
    %3091 = vmatprep.subr.mxu0 0.0
    %3092 = vmatpush1.xpose.msra.mxu0 0.0
    %3093 = vmatprep.subr.mxu0 0.0
    %3094 = vmatpush1.xpose.msra.mxu0 0.0
    %3095 = vmatprep.subr.mxu0 0.0
    %3096 = vmatpush1.xpose.msra.mxu0 0.0
    %3097 = vmatprep.subr.mxu0 0.0
    %3098 = vmatpush1.xpose.msra.mxu0 0.0
    %3099 = vmatprep.subr.mxu0 0.0
    %3100 = vmatpush1.xpose.msra.mxu0 0.0
    %3101 = vmatprep.subr.mxu0 0.0
    %3102 = vmatpush1.xpose.msra.mxu0 0.0
    %3103 = vmatprep.subr.mxu0 0.0
    %3104 = vmatpush1.xpose.msra.mxu0 0.0
    %3105 = vmatprep.subr.mxu0 0.0
    %3106 = vmatpush1.xpose.msra.mxu0 0.0
    %3107 = vmatprep.subr.mxu0 0.0
    %3108 = vmatpush1.xpose.msra.mxu0 0.0
    %3109 = vmatprep.subr.mxu0 0.0
    %3110 = vmatpush1.xpose.msra.mxu0 0.0
    %3111 = vmatprep.subr.mxu0 0.0
    %3112 = vmatpush1.xpose.msra.mxu0 0.0
    %3113 = vmatprep.subr.mxu0 0.0
    %3114 = vmatpush1.xpose.msra.mxu0 0.0
    %3115 = vmatprep.subr.mxu0 0.0
    %3116 = vmatpush1.xpose.msra.mxu0 0.0
    %3117 = vmatprep.subr.mxu0 0.0
    %3118 = vmatpush1.xpose.msra.mxu0 0.0
    %3119 = vmatprep.subr.mxu0 0.0
    %3120 = vmatpush1.xpose.msra.mxu0 0.0
    %3121 = vmatprep.subr.mxu0 0.0
    %3122 = vmatpush1.xpose.msra.mxu0 0.0
    %3123 = vmatprep.subr.mxu0 0.0
    %3124 = vmatpush1.xpose.msra.mxu0 0.0
    %3125 = vmatprep.subr.mxu0 0.0
    %3126 = vmatpush1.xpose.msra.mxu0 0.0
    %3127 = vmatprep.subr.mxu0 0.0
    %3128 = vmatpush1.xpose.msra.mxu0 0.0
    %3129 = vmatprep.mubr.f32.mxu0 0.0
    %3130 = vmatmul.mubr.f32.gmra.mrb[0].mxu0 %v3061
    %v3131 = vpop.f32.mrb[0].mxu0
    %v3132 = vadd.f32 0.0, %v3131
    %v3133 = vpop.f32.mrb[0].mxu0
    %3134 = vdwg.mxu0
    %v3135 = vsel %vm138, %v3054, -inf
    %3136 = vmax.xlane.f32.xlu0 %v3135
    %v3137 = vpop.xlane.xlu0 %3136
    %v3138 = vsel %vm138, %v3132, -inf
    %3139 = vmax.xlane.f32.xlu0 %v3138
    %v3140 = vpop.xlane.xlu0 %3139
    %v3141 = vsub.f32 %v3054, %v3137
    %v3142 = vsub.f32 %v3132, %v3140
    %v3143 = vmul.f32 %v3141, 1.442695
    %v3144 = vpow.pop %v3143
    %v3145 = vmul.f32 %v3142, 1.442695
    %v3146 = vpow.pop %v3145
    %v3147 = vsel %vm138, %v3144, 0.0
    %3148 = vadd.xlane.f32.xlu0 %v3147
    %v3149 = vpop.xlane.xlu0 %3148
    %v3150 = vsel %vm138, %v3146, 0.0
    %3151 = vadd.xlane.f32.xlu0 %v3150
    %v3152 = vpop.xlane.xlu0 %3151
    %v3153 = vrcp.pop %v3149
    %v3154 = vmul.f32 %v3144, %v3153
    %v3155 = vrcp.pop %v3152
    %v3156 = vmul.f32 %v3146, %v3155
    %3157 = vrot.lane.b32.xlu0 %v2146, 48
    %v3158 = vpop.permute.xlu0 %3157
    %v3161 = vsel %vm138, %v3154, 0
    %3163 = vmatprep.subr.mxu0 0.0
    %3164 = vmatpush1.msra.mxu0 %v3158
    %3165 = vmatprep.subr.mxu0 0.0
    %3166 = vmatpush1.msra.mxu0 0.0
    %3167 = vmatprep.subr.mxu0 0.0
    %3168 = vmatpush1.msra.mxu0 0.0
    %3169 = vmatprep.subr.mxu0 0.0
    %3170 = vmatpush1.msra.mxu0 0.0
    %3171 = vmatprep.subr.mxu0 0.0
    %3172 = vmatpush1.msra.mxu0 0.0
    %3173 = vmatprep.subr.mxu0 0.0
    %3174 = vmatpush1.msra.mxu0 0.0
    %3175 = vmatprep.subr.mxu0 0.0
    %3176 = vmatpush1.msra.mxu0 0.0
    %3177 = vmatprep.subr.mxu0 0.0
    %3178 = vmatpush1.msra.mxu0 0.0
    %3179 = vmatprep.subr.mxu0 0.0
    %3180 = vmatpush1.msra.mxu0 0.0
    %3181 = vmatprep.subr.mxu0 0.0
    %3182 = vmatpush1.msra.mxu0 0.0
    %3183 = vmatprep.subr.mxu0 0.0
    %3184 = vmatpush1.msra.mxu0 0.0
    %3185 = vmatprep.subr.mxu0 0.0
    %3186 = vmatpush1.msra.mxu0 0.0
    %3187 = vmatprep.subr.mxu0 0.0
    %3188 = vmatpush1.msra.mxu0 0.0
    %3189 = vmatprep.subr.mxu0 0.0
    %3190 = vmatpush1.msra.mxu0 0.0
    %3191 = vmatprep.subr.mxu0 0.0
    %3192 = vmatpush1.msra.mxu0 0.0
    %3193 = vmatprep.subr.mxu0 0.0
    %3194 = vmatpush1.msra.mxu0 0.0
    %3195 = vmatprep.subr.mxu0 0.0
    %3196 = vmatpush1.msra.mxu0 0.0
    %3197 = vmatprep.subr.mxu0 0.0
    %3198 = vmatpush1.msra.mxu0 0.0
    %3199 = vmatprep.subr.mxu0 0.0
    %3200 = vmatpush1.msra.mxu0 0.0
    %3201 = vmatprep.subr.mxu0 0.0
    %3202 = vmatpush1.msra.mxu0 0.0
    %3203 = vmatprep.subr.mxu0 0.0
    %3204 = vmatpush1.msra.mxu0 0.0
    %3205 = vmatprep.subr.mxu0 0.0
    %3206 = vmatpush1.msra.mxu0 0.0
    %3207 = vmatprep.subr.mxu0 0.0
    %3208 = vmatpush1.msra.mxu0 0.0
    %3209 = vmatprep.subr.mxu0 0.0
    %3210 = vmatpush1.msra.mxu0 0.0
    %3211 = vmatprep.subr.mxu0 0.0
    %3212 = vmatpush1.msra.mxu0 0.0
    %3213 = vmatprep.subr.mxu0 0.0
    %3214 = vmatpush1.msra.mxu0 0.0
    %3215 = vmatprep.subr.mxu0 0.0
    %3216 = vmatpush1.msra.mxu0 0.0
    %3217 = vmatprep.subr.mxu0 0.0
    %3218 = vmatpush1.msra.mxu0 0.0
    %3219 = vmatprep.subr.mxu0 0.0
    %3220 = vmatpush1.msra.mxu0 0.0
    %3221 = vmatprep.subr.mxu0 0.0
    %3222 = vmatpush1.msra.mxu0 0.0
    %3223 = vmatprep.subr.mxu0 0.0
    %3224 = vmatpush1.msra.mxu0 0.0
    %3225 = vmatprep.subr.mxu0 0.0
    %3226 = vmatpush1.msra.mxu0 0.0
    %3227 = vmatprep.mubr.f32.mxu0 0.0
    %3228 = vmatmul.mubr.f32.gmra.mrb[0].mxu0 %v3161
    %v3229 = vpop.f32.mrb[0].mxu0
    %v3230 = vadd.f32 0.0, %v3229
    %v3231 = vpop.f32.mrb[0].mxu0
    %3232 = vdwg.mxu0
    %3233 = vrot.lane.b32.xlu0 %v2151, 48
    %v3234 = vpop.permute.xlu0 %3233
    %v3237 = vsel %vm138, %v3156, 0
    %3239 = vmatprep.subr.mxu0 0.0
    %3240 = vmatpush1.msra.mxu0 %v3234
    %3241 = vmatprep.subr.mxu0 0.0
    %3242 = vmatpush1.msra.mxu0 0.0
    %3243 = vmatprep.subr.mxu0 0.0
    %3244 = vmatpush1.msra.mxu0 0.0
    %3245 = vmatprep.subr.mxu0 0.0
    %3246 = vmatpush1.msra.mxu0 0.0
    %3247 = vmatprep.subr.mxu0 0.0
    %3248 = vmatpush1.msra.mxu0 0.0
    %3249 = vmatprep.subr.mxu0 0.0
    %3250 = vmatpush1.msra.mxu0 0.0
    %3251 = vmatprep.subr.mxu0 0.0
    %3252 = vmatpush1.msra.mxu0 0.0
    %3253 = vmatprep.subr.mxu0 0.0
    %3254 = vmatpush1.msra.mxu0 0.0
    %3255 = vmatprep.subr.mxu0 0.0
    %3256 = vmatpush1.msra.mxu0 0.0
    %3257 = vmatprep.subr.mxu0 0.0
    %3258 = vmatpush1.msra.mxu0 0.0
    %3259 = vmatprep.subr.mxu0 0.0
    %3260 = vmatpush1.msra.mxu0 0.0
    %3261 = vmatprep.subr.mxu0 0.0
    %3262 = vmatpush1.msra.mxu0 0.0
    %3263 = vmatprep.subr.mxu0 0.0
    %3264 = vmatpush1.msra.mxu0 0.0
    %3265 = vmatprep.subr.mxu0 0.0
    %3266 = vmatpush1.msra.mxu0 0.0
    %3267 = vmatprep.subr.mxu0 0.0
    %3268 = vmatpush1.msra.mxu0 0.0
    %3269 = vmatprep.subr.mxu0 0.0
    %3270 = vmatpush1.msra.mxu0 0.0
    %3271 = vmatprep.subr.mxu0 0.0
    %3272 = vmatpush1.msra.mxu0 0.0
    %3273 = vmatprep.subr.mxu0 0.0
    %3274 = vmatpush1.msra.mxu0 0.0
    %3275 = vmatprep.subr.mxu0 0.0
    %3276 = vmatpush1.msra.mxu0 0.0
    %3277 = vmatprep.subr.mxu0 0.0
    %3278 = vmatpush1.msra.mxu0 0.0
    %3279 = vmatprep.subr.mxu0 0.0
    %3280 = vmatpush1.msra.mxu0 0.0
    %3281 = vmatprep.subr.mxu0 0.0
    %3282 = vmatpush1.msra.mxu0 0.0
    %3283 = vmatprep.subr.mxu0 0.0
    %3284 = vmatpush1.msra.mxu0 0.0
    %3285 = vmatprep.subr.mxu0 0.0
    %3286 = vmatpush1.msra.mxu0 0.0
    %3287 = vmatprep.subr.mxu0 0.0
    %3288 = vmatpush1.msra.mxu0 0.0
    %3289 = vmatprep.subr.mxu0 0.0
    %3290 = vmatpush1.msra.mxu0 0.0
    %3291 = vmatprep.subr.mxu0 0.0
    %3292 = vmatpush1.msra.mxu0 0.0
    %3293 = vmatprep.subr.mxu0 0.0
    %3294 = vmatpush1.msra.mxu0 0.0
    %3295 = vmatprep.subr.mxu0 0.0
    %3296 = vmatpush1.msra.mxu0 0.0
    %3297 = vmatprep.subr.mxu0 0.0
    %3298 = vmatpush1.msra.mxu0 0.0
    %3299 = vmatprep.subr.mxu0 0.0
    %3300 = vmatpush1.msra.mxu0 0.0
    %3301 = vmatprep.subr.mxu0 0.0
    %3302 = vmatpush1.msra.mxu0 0.0
    %3303 = vmatprep.mubr.f32.mxu0 0.0
    %3304 = vmatmul.mubr.f32.gmra.mrb[0].mxu0 %v3237
    %v3305 = vpop.f32.mrb[0].mxu0
    %v3306 = vadd.f32 0.0, %v3305
    %v3307 = vpop.f32.mrb[0].mxu0
    %3308 = vdwg.mxu0
    %v3310 = vsel %vm138, %v3230, 0
    %v3313 = vsel %vm138, %v3306, 0
    %3315 = vmatprep.subr.mxu0 0.0
    %3316 = vmatpush1.msra.mxu0 %v2157
    %3317 = vmatprep.subr.mxu0 0.0
    %3318 = vmatpush1.msra.mxu0 0.0
    %3319 = vmatprep.subr.mxu0 0.0
    %3320 = vmatpush1.msra.mxu0 0.0
    %3321 = vmatprep.subr.mxu0 0.0
    %3322 = vmatpush1.msra.mxu0 0.0
    %3323 = vmatprep.subr.mxu0 0.0
    %3324 = vmatpush1.msra.mxu0 0.0
    %3325 = vmatprep.subr.mxu0 0.0
    %3326 = vmatpush1.msra.mxu0 0.0
    %3327 = vmatprep.subr.mxu0 0.0
    %3328 = vmatpush1.msra.mxu0 0.0
    %3329 = vmatprep.subr.mxu0 0.0
    %3330 = vmatpush1.msra.mxu0 0.0
    %3331 = vmatprep.subr.mxu0 0.0
    %3332 = vmatpush1.msra.mxu0 0.0
    %3333 = vmatprep.subr.mxu0 0.0
    %3334 = vmatpush1.msra.mxu0 0.0
    %3335 = vmatprep.subr.mxu0 0.0
    %3336 = vmatpush1.msra.mxu0 0.0
    %3337 = vmatprep.subr.mxu0 0.0
    %3338 = vmatpush1.msra.mxu0 0.0
    %3339 = vmatprep.subr.mxu0 0.0
    %3340 = vmatpush1.msra.mxu0 0.0
    %3341 = vmatprep.subr.mxu0 0.0
    %3342 = vmatpush1.msra.mxu0 0.0
    %3343 = vmatprep.subr.mxu0 0.0
    %3344 = vmatpush1.msra.mxu0 0.0
    %3345 = vmatprep.subr.mxu0 0.0
    %3346 = vmatpush1.msra.mxu0 0.0
    %3347 = vmatprep.subr.mxu0 0.0
    %3348 = vmatpush1.msra.mxu0 0.0
    %3349 = vmatprep.subr.mxu0 0.0
    %3350 = vmatpush1.msra.mxu0 0.0
    %3351 = vmatprep.subr.mxu0 0.0
    %3352 = vmatpush1.msra.mxu0 0.0
    %3353 = vmatprep.subr.mxu0 0.0
    %3354 = vmatpush1.msra.mxu0 0.0
    %3355 = vmatprep.subr.mxu0 0.0
    %3356 = vmatpush1.msra.mxu0 0.0
    %3357 = vmatprep.subr.mxu0 0.0
    %3358 = vmatpush1.msra.mxu0 0.0
    %3359 = vmatprep.subr.mxu0 0.0
    %3360 = vmatpush1.msra.mxu0 0.0
    %3361 = vmatprep.subr.mxu0 0.0
    %3362 = vmatpush1.msra.mxu0 0.0
    %3363 = vmatprep.subr.mxu0 0.0
    %3364 = vmatpush1.msra.mxu0 0.0
    %3365 = vmatprep.subr.mxu0 0.0
    %3366 = vmatpush1.msra.mxu0 0.0
    %3367 = vmatprep.subr.mxu0 0.0
    %3368 = vmatpush1.msra.mxu0 0.0
    %3369 = vmatprep.subr.mxu0 0.0
    %3370 = vmatpush1.msra.mxu0 0.0
    %3371 = vmatprep.subr.mxu0 0.0
    %3372 = vmatpush1.msra.mxu0 0.0
    %3373 = vmatprep.subr.mxu0 0.0
    %3374 = vmatpush1.msra.mxu0 0.0
    %3375 = vmatprep.subr.mxu0 0.0
    %3376 = vmatpush1.msra.mxu0 0.0
    %3377 = vmatprep.subr.mxu0 0.0
    %3378 = vmatpush1.msra.mxu0 0.0
    %3379 = vmatprep.mubr.f32.mxu0 0.0
    %3380 = vmatmul.mubr.f32.gmra.mrb[0].mxu0 %v3310
    %v3381 = vpop.f32.mrb[0].mxu0
    %v3382 = vadd.f32 0.0, %v3381
    %v3383 = vpop.f32.mrb[0].mxu0
    %3384 = vmatprep.mubr.f32.mxu0 0.0
    %3385 = vmatmul.mubr.f32.gmra.mrb[0].mxu0 %v3313
    %v3386 = vpop.f32.mrb[0].mxu0
    %v3387 = vadd.f32 0.0, %v3386
    %v3388 = vpop.f32.mrb[0].mxu0
    %3389 = vdwg.mxu0
    %v3390 = vadd.f32 %v2971, %v3382
    %v3391 = vadd.f32 %v2976, %v3387
    %3392 = vrot.lane.b32.xlu0 %v2146, 104
    %v3393 = vpop.permute.xlu0 %3392
    %3394 = vrot.lane.b32.xlu0 %v2146, 72
    %v3395 = vpop.permute.xlu0 %3394
    %v3396 = vsel %vm138, %v3393, 0
    %v3398 = vsel %vm138, %v3395, 0
    %3400 = vmatprep.subr.mxu0 0.0
    %3401 = vmatpush1.xpose.msra.mxu0 %v3398
    %3402 = vmatprep.subr.mxu0 0.0
    %3403 = vmatpush1.xpose.msra.mxu0 0.0
    %3404 = vmatprep.subr.mxu0 0.0
    %3405 = vmatpush1.xpose.msra.mxu0 0.0
    %3406 = vmatprep.subr.mxu0 0.0
    %3407 = vmatpush1.xpose.msra.mxu0 0.0
    %3408 = vmatprep.subr.mxu0 0.0
    %3409 = vmatpush1.xpose.msra.mxu0 0.0
    %3410 = vmatprep.subr.mxu0 0.0
    %3411 = vmatpush1.xpose.msra.mxu0 0.0
    %3412 = vmatprep.subr.mxu0 0.0
    %3413 = vmatpush1.xpose.msra.mxu0 0.0
    %3414 = vmatprep.subr.mxu0 0.0
    %3415 = vmatpush1.xpose.msra.mxu0 0.0
    %3416 = vmatprep.subr.mxu0 0.0
    %3417 = vmatpush1.xpose.msra.mxu0 0.0
    %3418 = vmatprep.subr.mxu0 0.0
    %3419 = vmatpush1.xpose.msra.mxu0 0.0
    %3420 = vmatprep.subr.mxu0 0.0
    %3421 = vmatpush1.xpose.msra.mxu0 0.0
    %3422 = vmatprep.subr.mxu0 0.0
    %3423 = vmatpush1.xpose.msra.mxu0 0.0
    %3424 = vmatprep.subr.mxu0 0.0
    %3425 = vmatpush1.xpose.msra.mxu0 0.0
    %3426 = vmatprep.subr.mxu0 0.0
    %3427 = vmatpush1.xpose.msra.mxu0 0.0
    %3428 = vmatprep.subr.mxu0 0.0
    %3429 = vmatpush1.xpose.msra.mxu0 0.0
    %3430 = vmatprep.subr.mxu0 0.0
    %3431 = vmatpush1.xpose.msra.mxu0 0.0
    %3432 = vmatprep.subr.mxu0 0.0
    %3433 = vmatpush1.xpose.msra.mxu0 0.0
    %3434 = vmatprep.subr.mxu0 0.0
    %3435 = vmatpush1.xpose.msra.mxu0 0.0
    %3436 = vmatprep.subr.mxu0 0.0
    %3437 = vmatpush1.xpose.msra.mxu0 0.0
    %3438 = vmatprep.subr.mxu0 0.0
    %3439 = vmatpush1.xpose.msra.mxu0 0.0
    %3440 = vmatprep.subr.mxu0 0.0
    %3441 = vmatpush1.xpose.msra.mxu0 0.0
    %3442 = vmatprep.subr.mxu0 0.0
    %3443 = vmatpush1.xpose.msra.mxu0 0.0
    %3444 = vmatprep.subr.mxu0 0.0
    %3445 = vmatpush1.xpose.msra.mxu0 0.0
    %3446 = vmatprep.subr.mxu0 0.0
    %3447 = vmatpush1.xpose.msra.mxu0 0.0
    %3448 = vmatprep.subr.mxu0 0.0
    %3449 = vmatpush1.xpose.msra.mxu0 0.0
    %3450 = vmatprep.subr.mxu0 0.0
    %3451 = vmatpush1.xpose.msra.mxu0 0.0
    %3452 = vmatprep.subr.mxu0 0.0
    %3453 = vmatpush1.xpose.msra.mxu0 0.0
    %3454 = vmatprep.subr.mxu0 0.0
    %3455 = vmatpush1.xpose.msra.mxu0 0.0
    %3456 = vmatprep.subr.mxu0 0.0
    %3457 = vmatpush1.xpose.msra.mxu0 0.0
    %3458 = vmatprep.subr.mxu0 0.0
    %3459 = vmatpush1.xpose.msra.mxu0 0.0
    %3460 = vmatprep.subr.mxu0 0.0
    %3461 = vmatpush1.xpose.msra.mxu0 0.0
    %3462 = vmatprep.subr.mxu0 0.0
    %3463 = vmatpush1.xpose.msra.mxu0 0.0
    %3464 = vmatprep.mubr.f32.mxu0 0.0
    %3465 = vmatmul.mubr.f32.gmra.mrb[0].mxu0 %v3396
    %v3466 = vpop.f32.mrb[0].mxu0
    %v3467 = vadd.f32 0.0, %v3466
    %v3468 = vpop.f32.mrb[0].mxu0
    %3469 = vdwg.mxu0
    %3470 = vrot.lane.b32.xlu0 %v2151, 104
    %v3471 = vpop.permute.xlu0 %3470
    %3472 = vrot.lane.b32.xlu0 %v2151, 72
    %v3473 = vpop.permute.xlu0 %3472
    %v3474 = vsel %vm138, %v3471, 0
    %v3476 = vsel %vm138, %v3473, 0
    %3478 = vmatprep.subr.mxu0 0.0
    %3479 = vmatpush1.xpose.msra.mxu0 %v3476
    %3480 = vmatprep.subr.mxu0 0.0
    %3481 = vmatpush1.xpose.msra.mxu0 0.0
    %3482 = vmatprep.subr.mxu0 0.0
    %3483 = vmatpush1.xpose.msra.mxu0 0.0
    %3484 = vmatprep.subr.mxu0 0.0
    %3485 = vmatpush1.xpose.msra.mxu0 0.0
    %3486 = vmatprep.subr.mxu0 0.0
    %3487 = vmatpush1.xpose.msra.mxu0 0.0
    %3488 = vmatprep.subr.mxu0 0.0
    %3489 = vmatpush1.xpose.msra.mxu0 0.0
    %3490 = vmatprep.subr.mxu0 0.0
    %3491 = vmatpush1.xpose.msra.mxu0 0.0
    %3492 = vmatprep.subr.mxu0 0.0
    %3493 = vmatpush1.xpose.msra.mxu0 0.0
    %3494 = vmatprep.subr.mxu0 0.0
    %3495 = vmatpush1.xpose.msra.mxu0 0.0
    %3496 = vmatprep.subr.mxu0 0.0
    %3497 = vmatpush1.xpose.msra.mxu0 0.0
    %3498 = vmatprep.subr.mxu0 0.0
    %3499 = vmatpush1.xpose.msra.mxu0 0.0
    %3500 = vmatprep.subr.mxu0 0.0
    %3501 = vmatpush1.xpose.msra.mxu0 0.0
    %3502 = vmatprep.subr.mxu0 0.0
    %3503 = vmatpush1.xpose.msra.mxu0 0.0
    %3504 = vmatprep.subr.mxu0 0.0
    %3505 = vmatpush1.xpose.msra.mxu0 0.0
    %3506 = vmatprep.subr.mxu0 0.0
    %3507 = vmatpush1.xpose.msra.mxu0 0.0
    %3508 = vmatprep.subr.mxu0 0.0
    %3509 = vmatpush1.xpose.msra.mxu0 0.0
    %3510 = vmatprep.subr.mxu0 0.0
    %3511 = vmatpush1.xpose.msra.mxu0 0.0
    %3512 = vmatprep.subr.mxu0 0.0
    %3513 = vmatpush1.xpose.msra.mxu0 0.0
    %3514 = vmatprep.subr.mxu0 0.0
    %3515 = vmatpush1.xpose.msra.mxu0 0.0
    %3516 = vmatprep.subr.mxu0 0.0
    %3517 = vmatpush1.xpose.msra.mxu0 0.0
    %3518 = vmatprep.subr.mxu0 0.0
    %3519 = vmatpush1.xpose.msra.mxu0 0.0
    %3520 = vmatprep.subr.mxu0 0.0
    %3521 = vmatpush1.xpose.msra.mxu0 0.0
    %3522 = vmatprep.subr.mxu0 0.0
    %3523 = vmatpush1.xpose.msra.mxu0 0.0
    %3524 = vmatprep.subr.mxu0 0.0
    %3525 = vmatpush1.xpose.msra.mxu0 0.0
    %3526 = vmatprep.subr.mxu0 0.0
    %3527 = vmatpush1.xpose.msra.mxu0 0.0
    %3528 = vmatprep.subr.mxu0 0.0
    %3529 = vmatpush1.xpose.msra.mxu0 0.0
    %3530 = vmatprep.subr.mxu0 0.0
    %3531 = vmatpush1.xpose.msra.mxu0 0.0
    %3532 = vmatprep.subr.mxu0 0.0
    %3533 = vmatpush1.xpose.msra.mxu0 0.0
    %3534 = vmatprep.subr.mxu0 0.0
    %3535 = vmatpush1.xpose.msra.mxu0 0.0
    %3536 = vmatprep.subr.mxu0 0.0
    %3537 = vmatpush1.xpose.msra.mxu0 0.0
    %3538 = vmatprep.subr.mxu0 0.0
    %3539 = vmatpush1.xpose.msra.mxu0 0.0
    %3540 = vmatprep.subr.mxu0 0.0
    %3541 = vmatpush1.xpose.msra.mxu0 0.0
    %3542 = vmatprep.mubr.f32.mxu0 0.0
    %3543 = vmatmul.mubr.f32.gmra.mrb[0].mxu0 %v3474
    %v3544 = vpop.f32.mrb[0].mxu0
    %v3545 = vadd.f32 0.0, %v3544
    %v3546 = vpop.f32.mrb[0].mxu0
    %3547 = vdwg.mxu0
    %v3548 = vsel %vm138, %v3467, -inf
    %3549 = vmax.xlane.f32.xlu0 %v3548
    %v3550 = vpop.xlane.xlu0 %3549
    %v3551 = vsel %vm138, %v3545, -inf
    %3552 = vmax.xlane.f32.xlu0 %v3551
    %v3553 = vpop.xlane.xlu0 %3552
    %v3554 = vsub.f32 %v3467, %v3550
    %v3555 = vsub.f32 %v3545, %v3553
    %v3556 = vmul.f32 %v3554, 1.442695
    %v3557 = vpow.pop %v3556
    %v3558 = vmul.f32 %v3555, 1.442695
    %v3559 = vpow.pop %v3558
    %v3560 = vsel %vm138, %v3557, 0.0
    %3561 = vadd.xlane.f32.xlu0 %v3560
    %v3562 = vpop.xlane.xlu0 %3561
    %v3563 = vsel %vm138, %v3559, 0.0
    %3564 = vadd.xlane.f32.xlu0 %v3563
    %v3565 = vpop.xlane.xlu0 %3564
    %v3566 = vrcp.pop %v3562
    %v3567 = vmul.f32 %v3557, %v3566
    %v3568 = vrcp.pop %v3565
    %v3569 = vmul.f32 %v3559, %v3568
    %3570 = vrot.lane.b32.xlu0 %v2146, 40
    %v3571 = vpop.permute.xlu0 %3570
    %v3574 = vsel %vm138, %v3567, 0
    %3576 = vmatprep.subr.mxu0 0.0
    %3577 = vmatpush1.msra.mxu0 %v3571
    %3578 = vmatprep.subr.mxu0 0.0
    %3579 = vmatpush1.msra.mxu0 0.0
    %3580 = vmatprep.subr.mxu0 0.0
    %3581 = vmatpush1.msra.mxu0 0.0
    %3582 = vmatprep.subr.mxu0 0.0
    %3583 = vmatpush1.msra.mxu0 0.0
    %3584 = vmatprep.subr.mxu0 0.0
    %3585 = vmatpush1.msra.mxu0 0.0
    %3586 = vmatprep.subr.mxu0 0.0
    %3587 = vmatpush1.msra.mxu0 0.0
    %3588 = vmatprep.subr.mxu0 0.0
    %3589 = vmatpush1.msra.mxu0 0.0
    %3590 = vmatprep.subr.mxu0 0.0
    %3591 = vmatpush1.msra.mxu0 0.0
    %3592 = vmatprep.subr.mxu0 0.0
    %3593 = vmatpush1.msra.mxu0 0.0
    %3594 = vmatprep.subr.mxu0 0.0
    %3595 = vmatpush1.msra.mxu0 0.0
    %3596 = vmatprep.subr.mxu0 0.0
    %3597 = vmatpush1.msra.mxu0 0.0
    %3598 = vmatprep.subr.mxu0 0.0
    %3599 = vmatpush1.msra.mxu0 0.0
    %3600 = vmatprep.subr.mxu0 0.0
    %3601 = vmatpush1.msra.mxu0 0.0
    %3602 = vmatprep.subr.mxu0 0.0
    %3603 = vmatpush1.msra.mxu0 0.0
    %3604 = vmatprep.subr.mxu0 0.0
    %3605 = vmatpush1.msra.mxu0 0.0
    %3606 = vmatprep.subr.mxu0 0.0
    %3607 = vmatpush1.msra.mxu0 0.0
    %3608 = vmatprep.subr.mxu0 0.0
    %3609 = vmatpush1.msra.mxu0 0.0
    %3610 = vmatprep.subr.mxu0 0.0
    %3611 = vmatpush1.msra.mxu0 0.0
    %3612 = vmatprep.subr.mxu0 0.0
    %3613 = vmatpush1.msra.mxu0 0.0
    %3614 = vmatprep.subr.mxu0 0.0
    %3615 = vmatpush1.msra.mxu0 0.0
    %3616 = vmatprep.subr.mxu0 0.0
    %3617 = vmatpush1.msra.mxu0 0.0
    %3618 = vmatprep.subr.mxu0 0.0
    %3619 = vmatpush1.msra.mxu0 0.0
    %3620 = vmatprep.subr.mxu0 0.0
    %3621 = vmatpush1.msra.mxu0 0.0
    %3622 = vmatprep.subr.mxu0 0.0
    %3623 = vmatpush1.msra.mxu0 0.0
    %3624 = vmatprep.subr.mxu0 0.0
    %3625 = vmatpush1.msra.mxu0 0.0
    %3626 = vmatprep.subr.mxu0 0.0
    %3627 = vmatpush1.msra.mxu0 0.0
    %3628 = vmatprep.subr.mxu0 0.0
    %3629 = vmatpush1.msra.mxu0 0.0
    %3630 = vmatprep.subr.mxu0 0.0
    %3631 = vmatpush1.msra.mxu0 0.0
    %3632 = vmatprep.subr.mxu0 0.0
    %3633 = vmatpush1.msra.mxu0 0.0
    %3634 = vmatprep.subr.mxu0 0.0
    %3635 = vmatpush1.msra.mxu0 0.0
    %3636 = vmatprep.subr.mxu0 0.0
    %3637 = vmatpush1.msra.mxu0 0.0
    %3638 = vmatprep.subr.mxu0 0.0
    %3639 = vmatpush1.msra.mxu0 0.0
    %3640 = vmatprep.mubr.f32.mxu0 0.0
    %3641 = vmatmul.mubr.f32.gmra.mrb[0].mxu0 %v3574
    %v3642 = vpop.f32.mrb[0].mxu0
    %v3643 = vadd.f32 0.0, %v3642
    %v3644 = vpop.f32.mrb[0].mxu0
    %3645 = vdwg.mxu0
    %3646 = vrot.lane.b32.xlu0 %v2151, 40
    %v3647 = vpop.permute.xlu0 %3646
    %v3650 = vsel %vm138, %v3569, 0
    %3652 = vmatprep.subr.mxu0 0.0
    %3653 = vmatpush1.msra.mxu0 %v3647
    %3654 = vmatprep.subr.mxu0 0.0
    %3655 = vmatpush1.msra.mxu0 0.0
    %3656 = vmatprep.subr.mxu0 0.0
    %3657 = vmatpush1.msra.mxu0 0.0
    %3658 = vmatprep.subr.mxu0 0.0
    %3659 = vmatpush1.msra.mxu0 0.0
    %3660 = vmatprep.subr.mxu0 0.0
    %3661 = vmatpush1.msra.mxu0 0.0
    %3662 = vmatprep.subr.mxu0 0.0
    %3663 = vmatpush1.msra.mxu0 0.0
    %3664 = vmatprep.subr.mxu0 0.0
    %3665 = vmatpush1.msra.mxu0 0.0
    %3666 = vmatprep.subr.mxu0 0.0
    %3667 = vmatpush1.msra.mxu0 0.0
    %3668 = vmatprep.subr.mxu0 0.0
    %3669 = vmatpush1.msra.mxu0 0.0
    %3670 = vmatprep.subr.mxu0 0.0
    %3671 = vmatpush1.msra.mxu0 0.0
    %3672 = vmatprep.subr.mxu0 0.0
    %3673 = vmatpush1.msra.mxu0 0.0
    %3674 = vmatprep.subr.mxu0 0.0
    %3675 = vmatpush1.msra.mxu0 0.0
    %3676 = vmatprep.subr.mxu0 0.0
    %3677 = vmatpush1.msra.mxu0 0.0
    %3678 = vmatprep.subr.mxu0 0.0
    %3679 = vmatpush1.msra.mxu0 0.0
    %3680 = vmatprep.subr.mxu0 0.0
    %3681 = vmatpush1.msra.mxu0 0.0
    %3682 = vmatprep.subr.mxu0 0.0
    %3683 = vmatpush1.msra.mxu0 0.0
    %3684 = vmatprep.subr.mxu0 0.0
    %3685 = vmatpush1.msra.mxu0 0.0
    %3686 = vmatprep.subr.mxu0 0.0
    %3687 = vmatpush1.msra.mxu0 0.0
    %3688 = vmatprep.subr.mxu0 0.0
    %3689 = vmatpush1.msra.mxu0 0.0
    %3690 = vmatprep.subr.mxu0 0.0
    %3691 = vmatpush1.msra.mxu0 0.0
    %3692 = vmatprep.subr.mxu0 0.0
    %3693 = vmatpush1.msra.mxu0 0.0
    %3694 = vmatprep.subr.mxu0 0.0
    %3695 = vmatpush1.msra.mxu0 0.0
    %3696 = vmatprep.subr.mxu0 0.0
    %3697 = vmatpush1.msra.mxu0 0.0
    %3698 = vmatprep.subr.mxu0 0.0
    %3699 = vmatpush1.msra.mxu0 0.0
    %3700 = vmatprep.subr.mxu0 0.0
    %3701 = vmatpush1.msra.mxu0 0.0
    %3702 = vmatprep.subr.mxu0 0.0
    %3703 = vmatpush1.msra.mxu0 0.0
    %3704 = vmatprep.subr.mxu0 0.0
    %3705 = vmatpush1.msra.mxu0 0.0
    %3706 = vmatprep.subr.mxu0 0.0
    %3707 = vmatpush1.msra.mxu0 0.0
    %3708 = vmatprep.subr.mxu0 0.0
    %3709 = vmatpush1.msra.mxu0 0.0
    %3710 = vmatprep.subr.mxu0 0.0
    %3711 = vmatpush1.msra.mxu0 0.0
    %3712 = vmatprep.subr.mxu0 0.0
    %3713 = vmatpush1.msra.mxu0 0.0
    %3714 = vmatprep.subr.mxu0 0.0
    %3715 = vmatpush1.msra.mxu0 0.0
    %3716 = vmatprep.mubr.f32.mxu0 0.0
    %3717 = vmatmul.mubr.f32.gmra.mrb[0].mxu0 %v3650
    %v3718 = vpop.f32.mrb[0].mxu0
    %v3719 = vadd.f32 0.0, %v3718
    %v3720 = vpop.f32.mrb[0].mxu0
    %3721 = vdwg.mxu0
    %v3723 = vsel %vm138, %v3643, 0
    %v3726 = vsel %vm138, %v3719, 0
    %3728 = vmatprep.subr.mxu0 0.0
    %3729 = vmatpush1.msra.mxu0 %v2158
    %3730 = vmatprep.subr.mxu0 0.0
    %3731 = vmatpush1.msra.mxu0 0.0
    %3732 = vmatprep.subr.mxu0 0.0
    %3733 = vmatpush1.msra.mxu0 0.0
    %3734 = vmatprep.subr.mxu0 0.0
    %3735 = vmatpush1.msra.mxu0 0.0
    %3736 = vmatprep.subr.mxu0 0.0
    %3737 = vmatpush1.msra.mxu0 0.0
    %3738 = vmatprep.subr.mxu0 0.0
    %3739 = vmatpush1.msra.mxu0 0.0
    %3740 = vmatprep.subr.mxu0 0.0
    %3741 = vmatpush1.msra.mxu0 0.0
    %3742 = vmatprep.subr.mxu0 0.0
    %3743 = vmatpush1.msra.mxu0 0.0
    %3744 = vmatprep.subr.mxu0 0.0
    %3745 = vmatpush1.msra.mxu0 0.0
    %3746 = vmatprep.subr.mxu0 0.0
    %3747 = vmatpush1.msra.mxu0 0.0
    %3748 = vmatprep.subr.mxu0 0.0
    %3749 = vmatpush1.msra.mxu0 0.0
    %3750 = vmatprep.subr.mxu0 0.0
    %3751 = vmatpush1.msra.mxu0 0.0
    %3752 = vmatprep.subr.mxu0 0.0
    %3753 = vmatpush1.msra.mxu0 0.0
    %3754 = vmatprep.subr.mxu0 0.0
    %3755 = vmatpush1.msra.mxu0 0.0
    %3756 = vmatprep.subr.mxu0 0.0
    %3757 = vmatpush1.msra.mxu0 0.0
    %3758 = vmatprep.subr.mxu0 0.0
    %3759 = vmatpush1.msra.mxu0 0.0
    %3760 = vmatprep.subr.mxu0 0.0
    %3761 = vmatpush1.msra.mxu0 0.0
    %3762 = vmatprep.subr.mxu0 0.0
    %3763 = vmatpush1.msra.mxu0 0.0
    %3764 = vmatprep.subr.mxu0 0.0
    %3765 = vmatpush1.msra.mxu0 0.0
    %3766 = vmatprep.subr.mxu0 0.0
    %3767 = vmatpush1.msra.mxu0 0.0
    %3768 = vmatprep.subr.mxu0 0.0
    %3769 = vmatpush1.msra.mxu0 0.0
    %3770 = vmatprep.subr.mxu0 0.0
    %3771 = vmatpush1.msra.mxu0 0.0
    %3772 = vmatprep.subr.mxu0 0.0
    %3773 = vmatpush1.msra.mxu0 0.0
    %3774 = vmatprep.subr.mxu0 0.0
    %3775 = vmatpush1.msra.mxu0 0.0
    %3776 = vmatprep.subr.mxu0 0.0
    %3777 = vmatpush1.msra.mxu0 0.0
    %3778 = vmatprep.subr.mxu0 0.0
    %3779 = vmatpush1.msra.mxu0 0.0
    %3780 = vmatprep.subr.mxu0 0.0
    %3781 = vmatpush1.msra.mxu0 0.0
    %3782 = vmatprep.subr.mxu0 0.0
    %3783 = vmatpush1.msra.mxu0 0.0
    %3784 = vmatprep.subr.mxu0 0.0
    %3785 = vmatpush1.msra.mxu0 0.0
    %3786 = vmatprep.subr.mxu0 0.0
    %3787 = vmatpush1.msra.mxu0 0.0
    %3788 = vmatprep.subr.mxu0 0.0
    %3789 = vmatpush1.msra.mxu0 0.0
    %3790 = vmatprep.subr.mxu0 0.0
    %3791 = vmatpush1.msra.mxu0 0.0
    %3792 = vmatprep.mubr.f32.mxu0 0.0
    %3793 = vmatmul.mubr.f32.gmra.mrb[0].mxu0 %v3723
    %v3794 = vpop.f32.mrb[0].mxu0
    %v3795 = vadd.f32 0.0, %v3794
    %v3796 = vpop.f32.mrb[0].mxu0
    %3797 = vmatprep.mubr.f32.mxu0 0.0
    %3798 = vmatmul.mubr.f32.gmra.mrb[0].mxu0 %v3726
    %v3799 = vpop.f32.mrb[0].mxu0
    %v3800 = vadd.f32 0.0, %v3799
    %v3801 = vpop.f32.mrb[0].mxu0
    %3802 = vdwg.mxu0
    %v3803 = vadd.f32 %v3390, %v3795
    %v3804 = vadd.f32 %v3391, %v3800
    %v3805 = vlaneseq
    %v3806 = vshrl.u32 %v3805, 7
    %v3807 = vsub.s32 1, %v3806
    %v3808 = vrot.slane %v2063, %v3807
    %v3809 = vadd.f32 %v3803, %v3808
    %v3810 = vadd.f32 %v3804, %v3808
    %v3811 = vadd.f32 %v2060, %v3809
    %v3812 = vadd.f32 %v2061, %v3810
    %v3813 = vsel %vm49, %v3811, 0.0
    %3814 = vadd.xlane.f32.xlu0 %v3813
    %v3815 = vpop.xlane.xlu0 %3814
    %v3816 = vsel %vm49, %v3812, 0.0
    %3817 = vadd.xlane.f32.xlu0 %v3816
    %v3818 = vpop.xlane.xlu0 %3817
    %v3819 = vmul.f32 %v3815, %v1796
    %v3820 = vmul.f32 %v3818, %v1796
    %v3821 = vmul.f32 %v3811, %v3811
    %v3822 = vmul.f32 %v3812, %v3812
    %v3823 = vsel %vm49, %v3821, 0.0
    %3824 = vadd.xlane.f32.xlu0 %v3823
    %v3825 = vpop.xlane.xlu0 %3824
    %v3826 = vsel %vm49, %v3822, 0.0
    %3827 = vadd.xlane.f32.xlu0 %v3826
    %v3828 = vpop.xlane.xlu0 %3827
    %v3829 = vmul.f32 %v3825, %v1796
    %v3830 = vmul.f32 %v3828, %v1796
    %v3831 = vmul.f32 %v3819, %v3819
    %v3832 = vmul.f32 %v3820, %v3820
    %v3833 = vsub.f32 %v3829, %v3831
    %v3834 = vsub.f32 %v3830, %v3832
    %v3835 = vsub.f32 %v3811, %v3819
    %v3836 = vsub.f32 %v3812, %v3820
    %v3837 = vadd.f32 %v3833, 1e-05
    %v3838 = vadd.f32 %v3834, 1e-05
    %v3839 = vrsqrt.pop %v3837
    %v3840 = vrsqrt.pop %v3838
    %v3841 = vmul.f32 %v3835, %v3839
    %v3842 = vmul.f32 %v3836, %v3840
    %v3843 = vlaneseq
    %v3844 = vshrl.u32 %v3843, 7
    %v3845 = vsub.s32 4, %v3844
    %v3846 = vrot.slane %v2063, %v3845
    %v3847 = vmul.f32 %v3841, %v3846
    %v3848 = vmul.f32 %v3842, %v3846
    %v3849 = vlaneseq
    %v3850 = vshrl.u32 %v3849, 7
    %v3851 = vsub.s32 5, %v3850
    %v3852 = vrot.slane %v2063, %v3851
    %v3853 = vadd.f32 %v3847, %v3852
    %v3854 = vadd.f32 %v3848, %v3852
    %s3855 = scalar_lea.vmem %s3, 32
    %v3856 = vld [vmem:[%s3855] sm:$0xff]
    %v3857 = vld [vmem:[%s3855 + $0x8] sm:$0xff]
    %v3858 = vld [vmem:[%s3855 + $0x10] sm:$0xff]
    %v3859 = vld [vmem:[%s3855 + $0x18] sm:$0xff]
    %v3860 = vlaneseq
    %v3861 = vshrl.u32 %v3860, 7
    %v3862 = vsub.s32 2, %v3861
    %v3863 = vrot.slane %v2063, %v3862
    %v3865 = vsel %vm49, %v3853, 0
    %v3868 = vsel %vm49, %v3854, 0
    %3870 = vmatprep.subr.mxu0 0.0
    %3871 = vmatpush1.msra.mxu0 %v3856
    %3872 = vmatprep.subr.mxu0 0.0
    %3873 = vmatpush1.msra.mxu0 %v3857
    %3874 = vmatprep.subr.mxu0 0.0
    %3875 = vmatpush1.msra.mxu0 %v3858
    %3876 = vmatprep.subr.mxu0 0.0
    %3877 = vmatpush1.msra.mxu0 %v3859
    %3878 = vmatprep.subr.mxu0 0.0
    %3879 = vmatpush1.msra.mxu0 0.0
    %3880 = vmatprep.subr.mxu0 0.0
    %3881 = vmatpush1.msra.mxu0 0.0
    %3882 = vmatprep.subr.mxu0 0.0
    %3883 = vmatpush1.msra.mxu0 0.0
    %3884 = vmatprep.subr.mxu0 0.0
    %3885 = vmatpush1.msra.mxu0 0.0
    %3886 = vmatprep.subr.mxu0 0.0
    %3887 = vmatpush1.msra.mxu0 0.0
    %3888 = vmatprep.subr.mxu0 0.0
    %3889 = vmatpush1.msra.mxu0 0.0
    %3890 = vmatprep.subr.mxu0 0.0
    %3891 = vmatpush1.msra.mxu0 0.0
    %3892 = vmatprep.subr.mxu0 0.0
    %3893 = vmatpush1.msra.mxu0 0.0
    %3894 = vmatprep.subr.mxu0 0.0
    %3895 = vmatpush1.msra.mxu0 0.0
    %3896 = vmatprep.subr.mxu0 0.0
    %3897 = vmatpush1.msra.mxu0 0.0
    %3898 = vmatprep.subr.mxu0 0.0
    %3899 = vmatpush1.msra.mxu0 0.0
    %3900 = vmatprep.subr.mxu0 0.0
    %3901 = vmatpush1.msra.mxu0 0.0
    %3902 = vmatprep.subr.mxu0 0.0
    %3903 = vmatpush1.msra.mxu0 0.0
    %3904 = vmatprep.subr.mxu0 0.0
    %3905 = vmatpush1.msra.mxu0 0.0
    %3906 = vmatprep.subr.mxu0 0.0
    %3907 = vmatpush1.msra.mxu0 0.0
    %3908 = vmatprep.subr.mxu0 0.0
    %3909 = vmatpush1.msra.mxu0 0.0
    %3910 = vmatprep.subr.mxu0 0.0
    %3911 = vmatpush1.msra.mxu0 0.0
    %3912 = vmatprep.subr.mxu0 0.0
    %3913 = vmatpush1.msra.mxu0 0.0
    %3914 = vmatprep.subr.mxu0 0.0
    %3915 = vmatpush1.msra.mxu0 0.0
    %3916 = vmatprep.subr.mxu0 0.0
    %3917 = vmatpush1.msra.mxu0 0.0
    %3918 = vmatprep.subr.mxu0 0.0
    %3919 = vmatpush1.msra.mxu0 0.0
    %3920 = vmatprep.subr.mxu0 0.0
    %3921 = vmatpush1.msra.mxu0 0.0
    %3922 = vmatprep.subr.mxu0 0.0
    %3923 = vmatpush1.msra.mxu0 0.0
    %3924 = vmatprep.subr.mxu0 0.0
    %3925 = vmatpush1.msra.mxu0 0.0
    %3926 = vmatprep.subr.mxu0 0.0
    %3927 = vmatpush1.msra.mxu0 0.0
    %3928 = vmatprep.subr.mxu0 0.0
    %3929 = vmatpush1.msra.mxu0 0.0
    %3930 = vmatprep.subr.mxu0 0.0
    %3931 = vmatpush1.msra.mxu0 0.0
    %3932 = vmatprep.subr.mxu0 0.0
    %3933 = vmatpush1.msra.mxu0 0.0
    %3934 = vmatprep.mubr.f32.mxu0 0.0
    %3935 = vmatmul.mubr.f32.gmra.mrb[0].mxu0 %v3865
    %v3936 = vpop.f32.mrb[0].mxu0
    %v3937 = vadd.f32 %v3863, %v3936
    %v3938 = vpop.f32.mrb[0].mxu0
    %3939 = vmatprep.mubr.f32.mxu0 0.0
    %3940 = vmatmul.mubr.f32.gmra.mrb[0].mxu0 %v3868
    %v3941 = vpop.f32.mrb[0].mxu0
    %v3942 = vadd.f32 %v3863, %v3941
    %v3943 = vpop.f32.mrb[0].mxu0
    %3944 = vdwg.mxu0
    %v3945 = vmax.f32 %v3937, 0.0
    %v3946 = vmax.f32 %v3942, 0.0
    %s3947 = scalar_lea.vmem %s4, 64
    %v3948 = vld [vmem:[%s3947] sm:$0xff]
    %v3949 = vld [vmem:[%s3947 + $0x8] sm:$0xff]
    %v3950 = vld [vmem:[%s3947 + $0x10] sm:$0xff]
    %v3951 = vld [vmem:[%s3947 + $0x18] sm:$0xff]
    %v3952 = vld [vmem:[%s3947 + $0x20] sm:$0xff]
    %v3953 = vld [vmem:[%s3947 + $0x28] sm:$0xff]
    %v3954 = vld [vmem:[%s3947 + $0x30] sm:$0xff]
    %v3955 = vld [vmem:[%s3947 + $0x38] sm:$0xff]
    %v3956 = vlaneseq
    %v3957 = vshrl.u32 %v3956, 7
    %v3958 = vsub.s32 3, %v3957
    %v3959 = vrot.slane %v2063, %v3958
    %v3961 = vsel %vm1936, %v3945, 0
    %v3964 = vsel %vm1936, %v3946, 0
    %3966 = vmatprep.subr.mxu0 0.0
    %3967 = vmatpush1.msra.mxu0 %v3948
    %3968 = vmatprep.subr.mxu0 0.0
    %3969 = vmatpush1.msra.mxu0 %v3949
    %3970 = vmatprep.subr.mxu0 0.0
    %3971 = vmatpush1.msra.mxu0 %v3950
    %3972 = vmatprep.subr.mxu0 0.0
    %3973 = vmatpush1.msra.mxu0 %v3951
    %3974 = vmatprep.subr.mxu0 0.0
    %3975 = vmatpush1.msra.mxu0 %v3952
    %3976 = vmatprep.subr.mxu0 0.0
    %3977 = vmatpush1.msra.mxu0 %v3953
    %3978 = vmatprep.subr.mxu0 0.0
    %3979 = vmatpush1.msra.mxu0 %v3954
    %3980 = vmatprep.subr.mxu0 0.0
    %3981 = vmatpush1.msra.mxu0 %v3955
    %3982 = vmatprep.subr.mxu0 0.0
    %3983 = vmatpush1.msra.mxu0 0.0
    %3984 = vmatprep.subr.mxu0 0.0
    %3985 = vmatpush1.msra.mxu0 0.0
    %3986 = vmatprep.subr.mxu0 0.0
    %3987 = vmatpush1.msra.mxu0 0.0
    %3988 = vmatprep.subr.mxu0 0.0
    %3989 = vmatpush1.msra.mxu0 0.0
    %3990 = vmatprep.subr.mxu0 0.0
    %3991 = vmatpush1.msra.mxu0 0.0
    %3992 = vmatprep.subr.mxu0 0.0
    %3993 = vmatpush1.msra.mxu0 0.0
    %3994 = vmatprep.subr.mxu0 0.0
    %3995 = vmatpush1.msra.mxu0 0.0
    %3996 = vmatprep.subr.mxu0 0.0
    %3997 = vmatpush1.msra.mxu0 0.0
    %3998 = vmatprep.subr.mxu0 0.0
    %3999 = vmatpush1.msra.mxu0 0.0
    %4000 = vmatprep.subr.mxu0 0.0
    %4001 = vmatpush1.msra.mxu0 0.0
    %4002 = vmatprep.subr.mxu0 0.0
    %4003 = vmatpush1.msra.mxu0 0.0
    %4004 = vmatprep.subr.mxu0 0.0
    %4005 = vmatpush1.msra.mxu0 0.0
    %4006 = vmatprep.subr.mxu0 0.0
    %4007 = vmatpush1.msra.mxu0 0.0
    %4008 = vmatprep.subr.mxu0 0.0
    %4009 = vmatpush1.msra.mxu0 0.0
    %4010 = vmatprep.subr.mxu0 0.0
    %4011 = vmatpush1.msra.mxu0 0.0
    %4012 = vmatprep.subr.mxu0 0.0
    %4013 = vmatpush1.msra.mxu0 0.0
    %4014 = vmatprep.subr.mxu0 0.0
    %4015 = vmatpush1.msra.mxu0 0.0
    %4016 = vmatprep.subr.mxu0 0.0
    %4017 = vmatpush1.msra.mxu0 0.0
    %4018 = vmatprep.subr.mxu0 0.0
    %4019 = vmatpush1.msra.mxu0 0.0
    %4020 = vmatprep.subr.mxu0 0.0
    %4021 = vmatpush1.msra.mxu0 0.0
    %4022 = vmatprep.subr.mxu0 0.0
    %4023 = vmatpush1.msra.mxu0 0.0
    %4024 = vmatprep.subr.mxu0 0.0
    %4025 = vmatpush1.msra.mxu0 0.0
    %4026 = vmatprep.subr.mxu0 0.0
    %4027 = vmatpush1.msra.mxu0 0.0
    %4028 = vmatprep.subr.mxu0 0.0
    %4029 = vmatpush1.msra.mxu0 0.0
    %4030 = vmatprep.mubr.f32.mxu0 0.0
    %4031 = vmatmul.mubr.f32.gmra.mrb[0].mxu0 %v3961
    %v4032 = vpop.f32.mrb[0].mxu0
    %v4033 = vadd.f32 %v3959, %v4032
    %v4034 = vpop.f32.mrb[0].mxu0
    %4035 = vmatprep.mubr.f32.mxu0 0.0
    %4036 = vmatmul.mubr.f32.gmra.mrb[0].mxu0 %v3964
    %v4037 = vpop.f32.mrb[0].mxu0
    %v4038 = vadd.f32 %v3959, %v4037
    %v4039 = vpop.f32.mrb[0].mxu0
    %4040 = vdwg.mxu0
    %v4041 = vadd.f32 %v3853, %v4033
    %v4042 = vadd.f32 %v3854, %v4038
    %v4043 = vsel %vm49, %v4041, 0.0
    %4044 = vadd.xlane.f32.xlu0 %v4043
    %v4045 = vpop.xlane.xlu0 %4044
    %v4046 = vsel %vm49, %v4042, 0.0
    %4047 = vadd.xlane.f32.xlu0 %v4046
    %v4048 = vpop.xlane.xlu0 %4047
    %v4049 = vmul.f32 %v4045, %v1796
    %v4050 = vmul.f32 %v4048, %v1796
    %v4051 = vmul.f32 %v4041, %v4041
    %v4052 = vmul.f32 %v4042, %v4042
    %v4053 = vsel %vm49, %v4051, 0.0
    %4054 = vadd.xlane.f32.xlu0 %v4053
    %v4055 = vpop.xlane.xlu0 %4054
    %v4056 = vsel %vm49, %v4052, 0.0
    %4057 = vadd.xlane.f32.xlu0 %v4056
    %v4058 = vpop.xlane.xlu0 %4057
    %v4059 = vmul.f32 %v4055, %v1796
    %v4060 = vmul.f32 %v4058, %v1796
    %v4061 = vmul.f32 %v4049, %v4049
    %v4062 = vmul.f32 %v4050, %v4050
    %v4063 = vsub.f32 %v4059, %v4061
    %v4064 = vsub.f32 %v4060, %v4062
    %v4065 = vsub.f32 %v4041, %v4049
    %v4066 = vsub.f32 %v4042, %v4050
    %v4067 = vadd.f32 %v4063, 1e-05
    %v4068 = vadd.f32 %v4064, 1e-05
    %v4069 = vrsqrt.pop %v4067
    %v4070 = vrsqrt.pop %v4068
    %v4071 = vmul.f32 %v4065, %v4069
    %v4072 = vmul.f32 %v4066, %v4070
    %v4073 = vlaneseq
    %v4074 = vshrl.u32 %v4073, 7
    %v4075 = vsub.s32 6, %v4074
    %v4076 = vrot.slane %v2063, %v4075
    %v4077 = vmul.f32 %v4071, %v4076
    %v4078 = vmul.f32 %v4072, %v4076
    %v4079 = vlaneseq
    %v4080 = vshrl.u32 %v4079, 7
    %v4081 = vsub.s32 7, %v4080
    %v4082 = vrot.slane %v2063, %v4081
    %v4083 = vadd.f32 %v4077, %v4082
    %v4084 = vadd.f32 %v4078, %v4082
    %4085 = vst.msk [vmem:[#allocation5] sm:$0xff] %vm49, %v4083
    %4086 = vst.msk [vmem:[#allocation5 + $0x8] sm:$0xff] %vm49, %v4084
    // Predicated region
    $region30: #{transformer_decoder.1} parent=1 // pred_check
      _
    $region31: #{transformer_decoder.1} parent=1 // pred_check_branch
      %4088 = sbr.rel (0) target = $region33
    $region32: #{transformer_decoder.1} parent=1 // pred_region
      %s4090 = ssub.s32 256, 256
      %4091 = vsyncadd [#allocation4], %s4090
      %s4092 = sshll.u32 [#allocation5], 4
      %s4093 = int_to_ptr.vmem [resolvable:$true] %s4092
      %4098 = dma.vmem_to_hbm [thread:$0]  %s4093, 256, %s6, [#allocation4], 128, 128, 8
    $region33: #{transformer_decoder.1} parent=1 // pred_fallthru
      _
    // Predicated region
    $region34: #{transformer_decoder.1} parent=1 // pred_check
      _
    $region35: #{transformer_decoder.1} parent=1 // pred_check_branch
      %4100 = sbr.rel (0) target = $region37
    $region36: #{transformer_decoder.1} parent=1 // pred_region
      %4101 = dma.done [#allocation4], 256
    $region37: #{transformer_decoder.1} parent=1 // pred_fallthru
      _
    %4102 = vsyncpa [#allocation3], 1
    %4103 = vsyncpa [#allocation4], 1

</llo_original>
